<compile_context>
chip_gen: v6e
topology: v6e:2x2x1
jax: 0.10.0
libtpu: 0.0.40
codegen_flags: <defaults>
</compile_context>

<pallas_src>
import functools
import math

import jax
import jax.numpy as jnp
from jax.experimental import pallas as pl
from jax.experimental.pallas import tpu as pltpu


def _mhsa_kernel(x_ref, y_ref,
                 wq_ref, bq_ref,          # fused, group-tiled q projection
                 wkv_ref, bkv_ref,        # fused, group-tiled k|v projection
                 wo_ref, bo_ref,          # group-tiled, lane-padded fc_o
                 o_ref,
                 *, n_head, d_k):
    # One grid step == one block of b_blk batch rows ("parallel" over blocks).
    b_blk, n_q, d_x = x_ref.shape
    n_k = y_ref.shape[1]
    G = b_blk * n_head                      # group dim: g = batch_row * H + head
    d_o_pad = wo_ref.shape[-1]
    cdt = wq_ref.dtype                      # MXU operand dtype

    x = x_ref[...]                          # (b_blk, n_q, d_x)
    y = y_ref[...]                          # (b_blk, n_k, d_x)

    # Replicate activations over heads and fold (batch_row, head) -> group.
    # Only leading dims are touched, so these reshapes are layout-trivial.
    xg = jnp.broadcast_to(x[:, None], (b_blk, n_head, n_q, d_x)).reshape(G, n_q, d_x)
    yg = jnp.broadcast_to(y[:, None], (b_blk, n_head, n_k, d_x)).reshape(G, n_k, d_x)

    # Fused projections (wq/wk/wv folded into fc_q/fc_k/fc_v offline; the
    # 1/sqrt(d_k) scale is folded into wq/bq).  f32 accumulation on the MXU.
    qg32 = jnp.einsum('gqx,gxd->gqd', xg, wq_ref[...],
                      preferred_element_type=jnp.float32) + bq_ref[...]
    kvg32 = jnp.einsum('gkx,gxd->gkd', yg, wkv_ref[...],
                       preferred_element_type=jnp.float32) + bkv_ref[...]

    qg = qg32.astype(cdt)                   # (G, n_q, d_k)
    kg = kvg32[:, :, :d_k].astype(cdt)      # (G, n_k, d_k)
    vg = kvg32[:, :, d_k:].astype(cdt)      # (G, n_k, d_v)

    # Scores: contraction on the last dim of both operands (no explicit
    # transpose); the scale is already folded into the q projection.
    s = jnp.einsum('gqd,gkd->gqk', qg, kg,
                   preferred_element_type=jnp.float32)           # (G, n_q, n_k)

    # Softmax over keys in f32; reciprocal goes to the (otherwise idle) EUP.
    s = s - jnp.max(s, axis=-1, keepdims=True)
    e = jnp.exp(s)
    attn = e * pl.reciprocal(jnp.sum(e, axis=-1, keepdims=True), approx=True)

    # Attention output per group, then fc_o as one group-batched matmul
    # (wo_ref is (G, d_v, d_o_pad)); summing over heads == concatenating the
    # head outputs head-major and multiplying by the full fc_o weight.
    og = jnp.einsum('gqk,gkd->gqd', attn.astype(cdt), vg,
                    preferred_element_type=jnp.float32)          # (G, n_q, d_v)
    out_g = jnp.einsum('gqd,gde->gqe', og.astype(cdt), wo_ref[...],
                       preferred_element_type=jnp.float32)       # (G, n_q, d_o_pad)
    out = jnp.sum(out_g.reshape(b_blk, n_head, n_q, d_o_pad), axis=1) + bo_ref[...]

    o_ref[...] = out.astype(o_ref.dtype)                         # (b_blk, n_q, d_o_pad)


def _resident_spec(arr):
    """Grid-invariant (weight) input: whole array, constant index_map, so the
    pipeline keeps it resident across grid steps instead of re-streaming it."""
    nd = arr.ndim
    return pl.BlockSpec(arr.shape, lambda b, _nd=nd: (0,) * _nd)


def multihead_self_attention(x, y, params, *, n_head, d_k, d_v, d_o,
                             compute_dtype=jnp.float32, block_batch=8):
    batch, n_q, d_x = x.shape
    _, n_k, _ = y.shape
    out_dtype = x.dtype

    # ----- batch blocking: b_blk rows per grid step (pad batch if needed) -----
    b_blk = max(1, min(batch, block_batch))
    n_blocks = pl.cdiv(batch, b_blk)
    batch_pad = n_blocks * b_blk
    if batch_pad != batch:
        pad = batch_pad - batch
        x = jnp.pad(x, ((0, pad), (0, 0), (0, 0)))
        y = jnp.pad(y, ((0, pad), (0, 0), (0, 0)))
    G = b_blk * n_head

    # ---------- offline weight fusion (plain XLA, outside the kernel) ----------
    inv_scale = 1.0 / math.sqrt(d_k)
    wq_eff = (params["wq"] @ params["fq_w"]) * inv_scale          # (d_x, H*d_k)
    bq_eff = params["fq_b"] * inv_scale                           # (1, H*d_k)
    wk_eff = params["wk"] @ params["fk_w"]                        # (d_x, H*d_k)
    wv_eff = params["wv"] @ params["fv_w"]                        # (d_x, H*d_v)

    # Head-major layouts: (n_head, d_in, d_out).
    wq_h = wq_eff.reshape(d_x, n_head, d_k).transpose(1, 0, 2)    # (H, d_x, d_k)
    wk_h = wk_eff.reshape(d_x, n_head, d_k).transpose(1, 0, 2)    # (H, d_x, d_k)
    wv_h = wv_eff.reshape(d_x, n_head, d_v).transpose(1, 0, 2)    # (H, d_x, d_v)
    bq_h = bq_eff.reshape(n_head, 1, d_k)                         # (H, 1, d_k)
    bk_h = params["fk_b"].reshape(n_head, 1, d_k)
    bv_h = params["fv_b"].reshape(n_head, 1, d_v)

    # Fuse the K and V projections into a single matmul (wider N per MXU push).
    wkv_h = jnp.concatenate([wk_h, wv_h], axis=-1)                # (H, d_x, d_k+d_v)
    bkv_h = jnp.concatenate([bk_h, bv_h], axis=-1)                # (H, 1, d_k+d_v)

    # Lane-dense output: pad fc_o columns to a multiple of 128 so the kernel's
    # store is unmasked; slice back to d_o after the call.
    d_o_pad = ((d_o + 127) // 128) * 128
    wo_h = params["fo_w"].reshape(n_head, d_v, d_o)               # (H, d_v, d_o)
    wo_h = jnp.pad(wo_h, ((0, 0), (0, 0), (0, d_o_pad - d_o)))
    bo = jnp.pad(params["fo_b"], ((0, 0), (0, d_o_pad - d_o)))    # (1, d_o_pad)

    # Pre-tile the head-major weights over the batch block so every kernel
    # stage is a single group-batched dot_general and the kernel never copies
    # weights.  They are grid-invariant, so the pipeline keeps them resident.
    def tile_g(w):  # (H, a, b) -> (G, a, b), g = batch_row * H + head
        return jnp.broadcast_to(w[None], (b_blk,) + w.shape).reshape((G,) + w.shape[1:])

    wq_g = tile_g(wq_h).astype(compute_dtype)                     # (G, d_x, d_k)
    wkv_g = tile_g(wkv_h).astype(compute_dtype)                   # (G, d_x, d_k+d_v)
    wo_g = tile_g(wo_h).astype(compute_dtype)                     # (G, d_v, d_o_pad)
    bq_g = tile_g(bq_h).astype(jnp.float32)                       # (G, 1, d_k)
    bkv_g = tile_g(bkv_h).astype(jnp.float32)                     # (G, 1, d_k+d_v)
    bo = bo.astype(jnp.float32)

    # MXU operand dtype (bf16 recommended on v6e/v7x; accumulation stays f32).
    xc = x.astype(compute_dtype)
    yc = y.astype(compute_dtype)

    kernel = functools.partial(_mhsa_kernel, n_head=n_head, d_k=d_k)

    out = pl.pallas_call(
        kernel,
        out_shape=jax.ShapeDtypeStruct((batch_pad, n_q, d_o_pad), out_dtype),
        grid_spec=pltpu.PrefetchScalarGridSpec(
            num_scalar_prefetch=0,
            grid=(n_blocks,),
            in_specs=[
                pl.BlockSpec((b_blk, n_q, d_x), lambda b: (b, 0, 0)),   # x block
                pl.BlockSpec((b_blk, n_k, d_x), lambda b: (b, 0, 0)),   # y block
                _resident_spec(wq_g),
                _resident_spec(bq_g),
                _resident_spec(wkv_g),
                _resident_spec(bkv_g),
                _resident_spec(wo_g),
                _resident_spec(bo),
            ],
            out_specs=pl.BlockSpec((b_blk, n_q, d_o_pad), lambda b: (b, 0, 0)),
        ),
        compiler_params=pltpu.CompilerParams(dimension_semantics=("parallel",)),
    )(xc, yc, wq_g, bq_g, wkv_g, bkv_g, wo_g, bo)

    return out[:batch, :, :d_o]


def init_params(key, *, n_head, d_k, d_v, d_x, d_o):
    """Deterministic synthetic init mirroring MultiHead_SelfAttention.init_parameters:
    every parameter ~ U(-stdv, stdv) with stdv = 1/sqrt(size(-1))."""
    ks = jax.random.split(key, 11)

    def u(k, shape, last_dim):
        stdv = 1.0 / math.sqrt(last_dim)
        return jax.random.uniform(k, shape, jnp.float32, -stdv, stdv)

    # Linear weights stored pre-transposed as (in, out). For init bounds, the
    # PyTorch param is (out, in) so size(-1) == in_features; biases use their
    # own length.
    return {
        "wq": u(ks[0], (d_x, d_k), d_k),
        "wk": u(ks[1], (d_x, d_k), d_k),
        "wv": u(ks[2], (d_x, d_v), d_v),
        "fq_w": u(ks[3], (d_k, n_head * d_k), d_k),
        "fq_b": u(ks[4], (1, n_head * d_k), n_head * d_k),
        "fk_w": u(ks[5], (d_k, n_head * d_k), d_k),
        "fk_b": u(ks[6], (1, n_head * d_k), n_head * d_k),
        "fv_w": u(ks[7], (d_v, n_head * d_v), d_v),
        "fv_b": u(ks[8], (1, n_head * d_v), n_head * d_v),
        "fo_w": u(ks[9], (n_head * d_v, d_o), n_head * d_v),
        "fo_b": u(ks[10], (1, d_o), d_o),
    }


def reference_forward(x, y, p, *, n_head, d_k, d_v):
    """Pure-JAX transcription of the PyTorch forward (unfused) for validation."""
    batch, n_q, _ = x.shape
    _, n_k, _ = y.shape
    q = x @ p["wq"]
    k = y @ p["wk"]
    v = y @ p["wv"]
    qp = q @ p["fq_w"] + p["fq_b"]
    kp = k @ p["fk_w"] + p["fk_b"]
    vp = v @ p["fv_w"] + p["fv_b"]
    qh = qp.reshape(batch, n_q, n_head, d_k).transpose(2, 0, 1, 3)
    kh = kp.reshape(batch, n_k, n_head, d_k).transpose(2, 0, 1, 3)
    vh = vp.reshape(batch, n_k, n_head, d_v).transpose(2, 0, 1, 3)
    s = jnp.einsum("hbqd,hbkd->hbqk", qh, kh) / math.pow(d_k, 0.5)
    attn = jax.nn.softmax(s, axis=-1)
    o = jnp.einsum("hbqk,hbkd->hbqd", attn, vh)
    o = o.transpose(1, 2, 0, 3).reshape(batch, n_q, n_head * d_v)
    return o @ p["fo_w"] + p["fo_b"]


if __name__ == "__main__":
    n_head, d_k, d_v, d_x, d_o = 4, 16, 16, 32, 32
    batch, seq = 2, 8

    key = jax.random.PRNGKey(0)
    kx, ky, kp = jax.random.split(key, 3)
    x = jax.random.normal(kx, (batch, seq, d_x), jnp.float32)
    y = jax.random.normal(ky, (batch, seq, d_x), jnp.float32)
    params = init_params(kp, n_head=n_head, d_k=d_k, d_v=d_v, d_x=d_x, d_o=d_o)

    out = multihead_self_attention(x, y, params, n_head=n_head, d_k=d_k,
                                   d_v=d_v, d_o=d_o,
                                   compute_dtype=jnp.float32)
    out = jax.block_until_ready(out)

    ref = reference_forward(x, y, params, n_head=n_head, d_k=d_k, d_v=d_v)
    assert out.shape == (batch, seq, d_o)
    # Tolerance slightly relaxed vs 1e-4: approx-reciprocal softmax denominator
    # and offline weight folding re-associate a few f32 ops.
    assert jnp.allclose(out, ref, atol=5e-3, rtol=5e-3), "mismatch vs pure-JAX reference"

    print("KERNEL_OK")
</pallas_src>

<mosaic_0001>
module attributes {stable_mosaic.version = 11 : i64} {
  func.func @_mhsa_kernel(%arg0: i32, %arg1: memref<2x8x32xf32, #tpu.memory_space<vmem>>, %arg2: memref<2x8x32xf32, #tpu.memory_space<vmem>>, %arg3: memref<8x32x16xf32, #tpu.memory_space<vmem>>, %arg4: memref<8x1x16xf32, #tpu.memory_space<vmem>>, %arg5: memref<8x32x32xf32, #tpu.memory_space<vmem>>, %arg6: memref<8x1x32xf32, #tpu.memory_space<vmem>>, %arg7: memref<8x16x128xf32, #tpu.memory_space<vmem>>, %arg8: memref<1x128xf32, #tpu.memory_space<vmem>>, %arg9: memref<2x8x128xf32, #tpu.memory_space<vmem>>) attributes {dimension_semantics = [#tpu.dimension_semantics<parallel>], iteration_bounds = array<i64: 1>, scalar_prefetch = 0 : i64, scratch_operands = 0 : i64, tpu.core_type = #tpu.core_type<tc>, window_params = [{transform_indices = @transform_0, window_bounds = array<i64: 2, 8, 32>}, {transform_indices = @transform_1, window_bounds = array<i64: 2, 8, 32>}, {pipeline_mode = #tpu.pipeline_mode<synchronous>, transform_indices = @transform_2, window_bounds = array<i64: 8, 32, 16>}, {pipeline_mode = #tpu.pipeline_mode<synchronous>, transform_indices = @transform_3, window_bounds = array<i64: 8, 1, 16>}, {pipeline_mode = #tpu.pipeline_mode<synchronous>, transform_indices = @transform_4, window_bounds = array<i64: 8, 32, 32>}, {pipeline_mode = #tpu.pipeline_mode<synchronous>, transform_indices = @transform_5, window_bounds = array<i64: 8, 1, 32>}, {pipeline_mode = #tpu.pipeline_mode<synchronous>, transform_indices = @transform_6, window_bounds = array<i64: 8, 16, 128>}, {pipeline_mode = #tpu.pipeline_mode<synchronous>, transform_indices = @transform_7, window_bounds = array<i64: 1, 128>}, {transform_indices = @transform_8, window_bounds = array<i64: 2, 8, 128>}]} {
    %c0 = arith.constant 0 : index
    %c0_0 = arith.constant 0 : index
    %c0_1 = arith.constant 0 : index
    %0 = vector.load %arg1[%c0, %c0_0, %c0_1] : memref<2x8x32xf32, #tpu.memory_space<vmem>>, vector<2x8x32xf32>
    %c0_2 = arith.constant 0 : index
    %c0_3 = arith.constant 0 : index
    %c0_4 = arith.constant 0 : index
    %1 = vector.load %arg2[%c0_2, %c0_3, %c0_4] : memref<2x8x32xf32, #tpu.memory_space<vmem>>, vector<2x8x32xf32>
    %2 = vector.shape_cast %0 : vector<2x8x32xf32> to vector<2x1x8x32xf32>
    %3 = vector.shape_cast %2 : vector<2x1x8x32xf32> to vector<2x1x8x32xf32>
    %4 = vector.broadcast %3 : vector<2x1x8x32xf32> to vector<2x4x8x32xf32>
    %5 = vector.shape_cast %4 : vector<2x4x8x32xf32> to vector<8x8x32xf32>
    %6 = vector.shape_cast %1 : vector<2x8x32xf32> to vector<2x1x8x32xf32>
    %7 = vector.shape_cast %6 : vector<2x1x8x32xf32> to vector<2x1x8x32xf32>
    %8 = vector.broadcast %7 : vector<2x1x8x32xf32> to vector<2x4x8x32xf32>
    %9 = vector.shape_cast %8 : vector<2x4x8x32xf32> to vector<8x8x32xf32>
    %c0_5 = arith.constant 0 : index
    %c0_6 = arith.constant 0 : index
    %c0_7 = arith.constant 0 : index
    %10 = vector.load %arg3[%c0_5, %c0_6, %c0_7] : memref<8x32x16xf32, #tpu.memory_space<vmem>>, vector<8x32x16xf32>
    "tpu.trace_start"() <{level = 10 : i32, message = "gqx,gxd->gqd"}> : () -> ()
    %cst = arith.constant dense<0.000000e+00> : vector<8x8x16xf32>
    %11 = tpu.matmul %5, %10, %cst {dimension_numbers = #tpu.dot_dimension_numbers<[2], [1], [1], [2], [0, 0, 0, 1, 1, 2], [0], [0]>} : vector<8x8x32xf32>, vector<8x32x16xf32>, vector<8x8x16xf32> -> vector<8x8x16xf32>
    "tpu.trace_stop"() : () -> ()
    %c0_8 = arith.constant 0 : index
    %c0_9 = arith.constant 0 : index
    %c0_10 = arith.constant 0 : index
    %12 = vector.load %arg4[%c0_8, %c0_9, %c0_10] : memref<8x1x16xf32, #tpu.memory_space<vmem>>, vector<8x1x16xf32>
    %13 = vector.broadcast %12 : vector<8x1x16xf32> to vector<8x8x16xf32>
    %14 = arith.addf %11, %13 : vector<8x8x16xf32>
    %c0_11 = arith.constant 0 : index
    %c0_12 = arith.constant 0 : index
    %c0_13 = arith.constant 0 : index
    %15 = vector.load %arg5[%c0_11, %c0_12, %c0_13] : memref<8x32x32xf32, #tpu.memory_space<vmem>>, vector<8x32x32xf32>
    "tpu.trace_start"() <{level = 10 : i32, message = "gkx,gxd->gkd"}> : () -> ()
    %cst_14 = arith.constant dense<0.000000e+00> : vector<8x8x32xf32>
    %16 = tpu.matmul %9, %15, %cst_14 {dimension_numbers = #tpu.dot_dimension_numbers<[2], [1], [1], [2], [0, 0, 0, 1, 1, 2], [0], [0]>} : vector<8x8x32xf32>, vector<8x32x32xf32>, vector<8x8x32xf32> -> vector<8x8x32xf32>
    "tpu.trace_stop"() : () -> ()
    %c0_15 = arith.constant 0 : index
    %c0_16 = arith.constant 0 : index
    %c0_17 = arith.constant 0 : index
    %17 = vector.load %arg6[%c0_15, %c0_16, %c0_17] : memref<8x1x32xf32, #tpu.memory_space<vmem>>, vector<8x1x32xf32>
    %18 = vector.broadcast %17 : vector<8x1x32xf32> to vector<8x8x32xf32>
    %19 = arith.addf %16, %18 : vector<8x8x32xf32>
    %20 = vector.extract_strided_slice %19 {offsets = [0, 0, 0], sizes = [8, 8, 16], strides = [1, 1, 1]} : vector<8x8x32xf32> to vector<8x8x16xf32>
    %21 = vector.extract_strided_slice %19 {offsets = [0, 0, 16], sizes = [8, 8, 16], strides = [1, 1, 1]} : vector<8x8x32xf32> to vector<8x8x16xf32>
    "tpu.trace_start"() <{level = 10 : i32, message = "gqd,gkd->gqk"}> : () -> ()
    %cst_18 = arith.constant dense<0.000000e+00> : vector<8x8x8xf32>
    %22 = tpu.matmul %14, %20, %cst_18 {dimension_numbers = #tpu.dot_dimension_numbers<[2], [2], [1], [1], [0, 0, 0, 1, 1, 1], [0], [0]>} : vector<8x8x16xf32>, vector<8x8x16xf32>, vector<8x8x8xf32> -> vector<8x8x8xf32>
    "tpu.trace_stop"() : () -> ()
    %cst_19 = arith.constant dense<0xFF800000> : vector<8x8xf32>
    %23 = vector.multi_reduction <maximumf>, %22, %cst_19 [2] : vector<8x8x8xf32> to vector<8x8xf32>
    %24 = vector.shape_cast %23 : vector<8x8xf32> to vector<8x8x1xf32>
    %25 = vector.broadcast %24 : vector<8x8x1xf32> to vector<8x8x8xf32>
    %26 = arith.subf %22, %25 : vector<8x8x8xf32>
    %27 = math.exp %26 : vector<8x8x8xf32>
    %cst_20 = arith.constant dense<0.000000e+00> : vector<8x8xf32>
    %28 = vector.multi_reduction <add>, %27, %cst_20 [2] : vector<8x8x8xf32> to vector<8x8xf32>
    %29 = vector.shape_cast %28 : vector<8x8xf32> to vector<8x8x1xf32>
    %30 = tpu.reciprocal %29 {approx = true} : vector<8x8x1xf32> -> vector<8x8x1xf32>
    %31 = vector.broadcast %30 : vector<8x8x1xf32> to vector<8x8x8xf32>
    %32 = arith.mulf %27, %31 : vector<8x8x8xf32>
    "tpu.trace_start"() <{level = 10 : i32, message = "gqk,gkd->gqd"}> : () -> ()
    %cst_21 = arith.constant dense<0.000000e+00> : vector<8x8x16xf32>
    %33 = tpu.matmul %32, %21, %cst_21 {dimension_numbers = #tpu.dot_dimension_numbers<[2], [1], [1], [2], [0, 0, 0, 1, 1, 2], [0], [0]>} : vector<8x8x8xf32>, vector<8x8x16xf32>, vector<8x8x16xf32> -> vector<8x8x16xf32>
    "tpu.trace_stop"() : () -> ()
    %c0_22 = arith.constant 0 : index
    %c0_23 = arith.constant 0 : index
    %c0_24 = arith.constant 0 : index
    %34 = vector.load %arg7[%c0_22, %c0_23, %c0_24] : memref<8x16x128xf32, #tpu.memory_space<vmem>>, vector<8x16x128xf32>
    "tpu.trace_start"() <{level = 10 : i32, message = "gqd,gde->gqe"}> : () -> ()
    %cst_25 = arith.constant dense<0.000000e+00> : vector<8x8x128xf32>
    %35 = tpu.matmul %33, %34, %cst_25 {dimension_numbers = #tpu.dot_dimension_numbers<[2], [1], [1], [2], [0, 0, 0, 1, 1, 2], [0], [0]>} : vector<8x8x16xf32>, vector<8x16x128xf32>, vector<8x8x128xf32> -> vector<8x8x128xf32>
    "tpu.trace_stop"() : () -> ()
    %36 = vector.shape_cast %35 : vector<8x8x128xf32> to vector<2x4x8x128xf32>
    %cst_26 = arith.constant dense<0.000000e+00> : vector<2x8x128xf32>
    %37 = vector.multi_reduction <add>, %36, %cst_26 [1] : vector<2x4x8x128xf32> to vector<2x8x128xf32>
    %c0_27 = arith.constant 0 : index
    %c0_28 = arith.constant 0 : index
    %38 = vector.load %arg8[%c0_27, %c0_28] : memref<1x128xf32, #tpu.memory_space<vmem>>, vector<1x128xf32>
    %39 = vector.shape_cast %38 : vector<1x128xf32> to vector<1x1x128xf32>
    %40 = vector.broadcast %39 : vector<1x1x128xf32> to vector<2x8x128xf32>
    %41 = arith.addf %37, %40 : vector<2x8x128xf32>
    %c0_29 = arith.constant 0 : index
    %c0_30 = arith.constant 0 : index
    %c0_31 = arith.constant 0 : index
    %42 = vector.load %arg9[%c0_29, %c0_30, %c0_31] : memref<2x8x128xf32, #tpu.memory_space<vmem>>, vector<2x8x128xf32>
    tpu.vector_store %arg9[%c0_29, %c0_30, %c0_31], %41 {strides = array<i32>} : memref<2x8x128xf32, #tpu.memory_space<vmem>>, vector<2x8x128xf32>,
    return
  }
  func.func @transform_0(%arg0: i32) -> (i32, i32, i32) {
    %c0_i32 = arith.constant 0 : i32
    %c0_i32_0 = arith.constant 0 : i32
    %c0_i32_1 = arith.constant 0 : i32
    return %arg0, %c0_i32, %c0_i32_0 : i32, i32, i32
  }
  func.func @transform_1(%arg0: i32) -> (i32, i32, i32) {
    %c0_i32 = arith.constant 0 : i32
    %c0_i32_0 = arith.constant 0 : i32
    %c0_i32_1 = arith.constant 0 : i32
    return %arg0, %c0_i32, %c0_i32_0 : i32, i32, i32
  }
  func.func @transform_2(%arg0: i32) -> (i32, i32, i32) {
    %c0_i32 = arith.constant 0 : i32
    %c0_i32_0 = arith.constant 0 : i32
    %c0_i32_1 = arith.constant 0 : i32
    %c0_i32_2 = arith.constant 0 : i32
    return %c0_i32, %c0_i32_0, %c0_i32_1 : i32, i32, i32
  }
  func.func @transform_3(%arg0: i32) -> (i32, i32, i32) {
    %c0_i32 = arith.constant 0 : i32
    %c0_i32_0 = arith.constant 0 : i32
    %c0_i32_1 = arith.constant 0 : i32
    %c0_i32_2 = arith.constant 0 : i32
    return %c0_i32, %c0_i32_0, %c0_i32_1 : i32, i32, i32
  }
  func.func @transform_4(%arg0: i32) -> (i32, i32, i32) {
    %c0_i32 = arith.constant 0 : i32
    %c0_i32_0 = arith.constant 0 : i32
    %c0_i32_1 = arith.constant 0 : i32
    %c0_i32_2 = arith.constant 0 : i32
    return %c0_i32, %c0_i32_0, %c0_i32_1 : i32, i32, i32
  }
  func.func @transform_5(%arg0: i32) -> (i32, i32, i32) {
    %c0_i32 = arith.constant 0 : i32
    %c0_i32_0 = arith.constant 0 : i32
    %c0_i32_1 = arith.constant 0 : i32
    %c0_i32_2 = arith.constant 0 : i32
    return %c0_i32, %c0_i32_0, %c0_i32_1 : i32, i32, i32
  }
  func.func @transform_6(%arg0: i32) -> (i32, i32, i32) {
    %c0_i32 = arith.constant 0 : i32
    %c0_i32_0 = arith.constant 0 : i32
    %c0_i32_1 = arith.constant 0 : i32
    %c0_i32_2 = arith.constant 0 : i32
    return %c0_i32, %c0_i32_0, %c0_i32_1 : i32, i32, i32
  }
  func.func @transform_7(%arg0: i32) -> (i32, i32) {
    %c0_i32 = arith.constant 0 : i32
    %c0_i32_0 = arith.constant 0 : i32
    %c0_i32_1 = arith.constant 0 : i32
    return %c0_i32, %c0_i32_0 : i32, i32
  }
  func.func @transform_8(%arg0: i32) -> (i32, i32, i32) {
    %c0_i32 = arith.constant 0 : i32
    %c0_i32_0 = arith.constant 0 : i32
    %c0_i32_1 = arith.constant 0 : i32
    return %arg0, %c0_i32, %c0_i32_0 : i32, i32, i32
  }
}

</mosaic_0001>

<llo_original>
// kernel: tpu_custom_call.1
$region0: #{tpu_custom_call.1}
  #allocation0 [shape = 'u32[]', space=smem, size = 0x4, offset = 0x4, fixed_abs, tag = 'smem constant byte address 0x4 - core index']
  #allocation1 [shape = 'u32[144,128]{1,0:T(1,128)}', space=vmem, size = 0x12000, scoped, tag = 'internal scratch']
  %s0 = inlined_call_operand.hbm [shape: f32[2,8,32], index: 0, kind: input, shape index: {}]
  %s1 = inlined_call_operand.hbm [shape: f32[2,8,32], index: 1, kind: input, shape index: {}]
  %s2 = inlined_call_operand.vmem [shape: f32[8,32,16], index: 2, kind: input, shape index: {}]
  %s3 = inlined_call_operand.hbm [shape: f32[8,1,16], index: 3, kind: input, shape index: {}]
  %s4 = inlined_call_operand.vmem [shape: f32[8,32,32], index: 4, kind: input, shape index: {}]
  %s5 = inlined_call_operand.hbm [shape: f32[8,1,32], index: 5, kind: input, shape index: {}]
  %s6 = inlined_call_operand.vmem [shape: f32[8,16,128], index: 6, kind: input, shape index: {}]
  %s7 = inlined_call_operand.vmem [shape: f32[1,128], index: 7, kind: input, shape index: {}]
  %s8 = inlined_call_operand.hbm [shape: f32[2,8,128], index: 8, kind: output, shape index: {}]
  %s9 = sld [smem:[#allocation0]]
  $region58: #{tpu_custom_call.1} parent=0
    _
  %s11 = ssub.s32 1, %s9
  %s12 = scalar_select 0, %s11, %s9
  $region1: #{tpu_custom_call.1} parent=0
    #allocation2 [shape = 'u8[8192]{0}', space=vmem, size = 0x2000, scoped, tag = 'input window, operand 0, single buffered']
    #allocation3 [shape = 's32[1]{0}', space=sflag, size = 0x4, scoped, tag = 'scoped memory for tpu_custom_call.1']
    #allocation4 [shape = 's32[1]{0}', space=sflag, size = 0x4, scoped, tag = 'scoped memory for tpu_custom_call.1']
    #allocation5 [shape = 'u8[8192]{0}', space=vmem, size = 0x2000, scoped, tag = 'input window, operand 1, single buffered']
    #allocation6 [shape = 's32[1]{0}', space=sflag, size = 0x4, scoped, tag = 'scoped memory for tpu_custom_call.1']
    #allocation7 [shape = 'u8[4096]{0}', space=vmem, size = 0x1000, scoped, tag = 'input window, operand 3, single buffered']
    #allocation8 [shape = 'u8[4096]{0}', space=vmem, size = 0x1000, scoped, tag = 'input window, operand 5, single buffered']
    #allocation9 [shape = 's32[1]{0}', space=sflag, size = 0x4, scoped, tag = 'scoped memory for tpu_custom_call.1']
    #allocation10 [shape = 'u8[8192]{0}', space=vmem, size = 0x2000, scoped, tag = 'output window, operand 0, single buffered']
    %13 = vsyncpa [#allocation3], 0
    %14 = vsyncpa [#allocation6], 0
    %15 = vsyncpa [#allocation9], 0
    %16 = vsyncpa [#allocation4], 0
    // Predicated region
    $region2: #{tpu_custom_call.1} parent=1 // pred_check
      _
    $region3: #{tpu_custom_call.1} parent=1 // pred_check_branch
      %18 = sbr.rel (0) target = $region5
    $region4: #{tpu_custom_call.1} parent=1 // pred_region
      %s20 = ssub.s32 256, 256
      %21 = vsyncadd [#allocation3], %s20
      %s22 = sshll.u32 [#allocation2], 4
      %s23 = int_to_ptr.vmem [resolvable:$true] %s22
      %28 = dma.hbm_to_vmem [thread:$0]  %s0, 256, %s23, [#allocation3], 128, 128, 8
    $region5: #{tpu_custom_call.1} parent=1 // pred_fallthru
      _
    // Predicated region
    $region6: #{tpu_custom_call.1} parent=1 // pred_check
      _
    $region7: #{tpu_custom_call.1} parent=1 // pred_check_branch
      %30 = sbr.rel (0) target = $region9
    $region8: #{tpu_custom_call.1} parent=1 // pred_region
      %s32 = ssub.s32 256, 256
      %33 = vsyncadd [#allocation6], %s32
      %s34 = sshll.u32 [#allocation5], 4
      %s35 = int_to_ptr.vmem [resolvable:$true] %s34
      %40 = dma.hbm_to_vmem [thread:$0]  %s1, 256, %s35, [#allocation6], 128, 128, 8
    $region9: #{tpu_custom_call.1} parent=1 // pred_fallthru
      _
    // Predicated region
    $region10: #{tpu_custom_call.1} parent=1 // pred_check
      _
    $region11: #{tpu_custom_call.1} parent=1 // pred_check_branch
      %42 = sbr.rel (0) target = $region13
    $region12: #{tpu_custom_call.1} parent=1 // pred_region
      _
    $region13: #{tpu_custom_call.1} parent=1 // pred_fallthru
      _
    // Predicated region
    $region14: #{tpu_custom_call.1} parent=1 // pred_check
      _
    $region15: #{tpu_custom_call.1} parent=1 // pred_check_branch
      %44 = sbr.rel (0) target = $region17
    $region16: #{tpu_custom_call.1} parent=1 // pred_region
      %s46 = ssub.s32 128, 128
      %47 = vsyncadd [#allocation6], %s46
      %s48 = sshll.u32 [#allocation7], 4
      %s49 = int_to_ptr.vmem [resolvable:$true] %s48
      %54 = dma.hbm_to_vmem [thread:$0]  %s3, 128, %s49, [#allocation6], 16, 16, 1
    $region17: #{tpu_custom_call.1} parent=1 // pred_fallthru
      _
    // Predicated region
    $region18: #{tpu_custom_call.1} parent=1 // pred_check
      _
    $region19: #{tpu_custom_call.1} parent=1 // pred_check_branch
      %56 = sbr.rel (0) target = $region21
    $region20: #{tpu_custom_call.1} parent=1 // pred_region
      _
    $region21: #{tpu_custom_call.1} parent=1 // pred_fallthru
      _
    // Predicated region
    $region22: #{tpu_custom_call.1} parent=1 // pred_check
      _
    $region23: #{tpu_custom_call.1} parent=1 // pred_check_branch
      %58 = sbr.rel (0) target = $region25
    $region24: #{tpu_custom_call.1} parent=1 // pred_region
      %s60 = ssub.s32 128, 128
      %61 = vsyncadd [#allocation9], %s60
      %s62 = sshll.u32 [#allocation8], 4
      %s63 = int_to_ptr.vmem [resolvable:$true] %s62
      %68 = dma.hbm_to_vmem [thread:$0]  %s5, 128, %s63, [#allocation9], 16, 16, 1
    $region25: #{tpu_custom_call.1} parent=1 // pred_fallthru
      _
    // Predicated region
    $region26: #{tpu_custom_call.1} parent=1 // pred_check
      _
    $region27: #{tpu_custom_call.1} parent=1 // pred_check_branch
      %70 = sbr.rel (0) target = $region29
    $region28: #{tpu_custom_call.1} parent=1 // pred_region
      _
    $region29: #{tpu_custom_call.1} parent=1 // pred_fallthru
      _
    // Predicated region
    $region30: #{tpu_custom_call.1} parent=1 // pred_check
      _
    $region31: #{tpu_custom_call.1} parent=1 // pred_check_branch
      %72 = sbr.rel (0) target = $region33
    $region32: #{tpu_custom_call.1} parent=1 // pred_region
      _
    $region33: #{tpu_custom_call.1} parent=1 // pred_fallthru
      _
    // Predicated region
    $region34: #{tpu_custom_call.1} parent=1 // pred_check
      _
    $region35: #{tpu_custom_call.1} parent=1 // pred_check_branch
      %74 = sbr.rel (0) target = $region37
    $region36: #{tpu_custom_call.1} parent=1 // pred_region
      %75 = dma.done [#allocation3], 256
    $region37: #{tpu_custom_call.1} parent=1 // pred_fallthru
      _
    // Predicated region
    $region38: #{tpu_custom_call.1} parent=1 // pred_check
      _
    $region39: #{tpu_custom_call.1} parent=1 // pred_check_branch
      %77 = sbr.rel (0) target = $region41
    $region40: #{tpu_custom_call.1} parent=1 // pred_region
      %78 = dma.done [#allocation6], 256
    $region41: #{tpu_custom_call.1} parent=1 // pred_fallthru
      _
    // Predicated region
    $region42: #{tpu_custom_call.1} parent=1 // pred_check
      _
    $region43: #{tpu_custom_call.1} parent=1 // pred_check_branch
      %80 = sbr.rel (0) target = $region45
    $region44: #{tpu_custom_call.1} parent=1 // pred_region
      %81 = dma.done [#allocation6], 128
    $region45: #{tpu_custom_call.1} parent=1 // pred_fallthru
      _
    // Predicated region
    $region46: #{tpu_custom_call.1} parent=1 // pred_check
      _
    $region47: #{tpu_custom_call.1} parent=1 // pred_check_branch
      %83 = sbr.rel (0) target = $region49
    $region48: #{tpu_custom_call.1} parent=1 // pred_region
      %84 = dma.done [#allocation9], 128
    $region49: #{tpu_custom_call.1} parent=1 // pred_fallthru
      _
    %v85 = vld [vmem:[#allocation2] sm:$0xff]
    %v86 = vld [vmem:[#allocation2 + $0x8] sm:$0xff]
    %v87 = vld [vmem:[#allocation5] sm:$0xff]
    %v88 = vld [vmem:[#allocation5 + $0x8] sm:$0xff]
    %v89 = vld [vmem:[%s2] sm:$0xff]
    %v90 = vld [vmem:[%s2 + $0x8] sm:$0xff]
    %v91 = vld [vmem:[%s2 + $0x10] sm:$0xff]
    %v92 = vld [vmem:[%s2 + $0x18] sm:$0xff]
    %v93 = vld [vmem:[%s2 + $0x20] sm:$0xff]
    %v94 = vld [vmem:[%s2 + $0x28] sm:$0xff]
    %v95 = vld [vmem:[%s2 + $0x30] sm:$0xff]
    %v96 = vld [vmem:[%s2 + $0x38] sm:$0xff]
    %v97 = vld [vmem:[%s2 + $0x40] sm:$0xff]
    %v98 = vld [vmem:[%s2 + $0x48] sm:$0xff]
    %v99 = vld [vmem:[%s2 + $0x50] sm:$0xff]
    %v100 = vld [vmem:[%s2 + $0x58] sm:$0xff]
    %v101 = vld [vmem:[%s2 + $0x60] sm:$0xff]
    %v102 = vld [vmem:[%s2 + $0x68] sm:$0xff]
    %v103 = vld [vmem:[%s2 + $0x70] sm:$0xff]
    %v104 = vld [vmem:[%s2 + $0x78] sm:$0xff]
    %v105 = vld [vmem:[%s2 + $0x80] sm:$0xff]
    %v106 = vld [vmem:[%s2 + $0x88] sm:$0xff]
    %v107 = vld [vmem:[%s2 + $0x90] sm:$0xff]
    %v108 = vld [vmem:[%s2 + $0x98] sm:$0xff]
    %v109 = vld [vmem:[%s2 + $0xa0] sm:$0xff]
    %v110 = vld [vmem:[%s2 + $0xa8] sm:$0xff]
    %v111 = vld [vmem:[%s2 + $0xb0] sm:$0xff]
    %v112 = vld [vmem:[%s2 + $0xb8] sm:$0xff]
    %v113 = vld [vmem:[%s2 + $0xc0] sm:$0xff]
    %v114 = vld [vmem:[%s2 + $0xc8] sm:$0xff]
    %v115 = vld [vmem:[%s2 + $0xd0] sm:$0xff]
    %v116 = vld [vmem:[%s2 + $0xd8] sm:$0xff]
    %v117 = vld [vmem:[%s2 + $0xe0] sm:$0xff]
    %v118 = vld [vmem:[%s2 + $0xe8] sm:$0xff]
    %v119 = vld [vmem:[%s2 + $0xf0] sm:$0xff]
    %v120 = vld [vmem:[%s2 + $0xf8] sm:$0xff]
    %v121 = vld [vmem:[#allocation7] sm:$0x1]
    %v122 = vld [vmem:[#allocation7 + $0x1] sm:$0x1]
    %v123 = vld [vmem:[#allocation7 + $0x2] sm:$0x1]
    %v124 = vld [vmem:[#allocation7 + $0x3] sm:$0x1]
    %v125 = vld [vmem:[#allocation7 + $0x4] sm:$0x1]
    %v126 = vld [vmem:[#allocation7 + $0x5] sm:$0x1]
    %v127 = vld [vmem:[#allocation7 + $0x6] sm:$0x1]
    %v128 = vld [vmem:[#allocation7 + $0x7] sm:$0x1]
    %v137 = vlaneseq
    %v138 = vshrl.u32 %v137, 7
    %v139 = vsub.s32 0, %v138
    %v140 = vrot.slane %v121, %v139
    %v141 = vlaneseq
    %v142 = vshrl.u32 %v141, 7
    %v143 = vsub.s32 0, %v142
    %v144 = vrot.slane %v122, %v143
    %v145 = vlaneseq
    %v146 = vshrl.u32 %v145, 7
    %v147 = vsub.s32 0, %v146
    %v148 = vrot.slane %v123, %v147
    %v149 = vlaneseq
    %v150 = vshrl.u32 %v149, 7
    %v151 = vsub.s32 0, %v150
    %v152 = vrot.slane %v124, %v151
    %v153 = vlaneseq
    %v154 = vshrl.u32 %v153, 7
    %v155 = vsub.s32 0, %v154
    %v156 = vrot.slane %v125, %v155
    %v157 = vlaneseq
    %v158 = vshrl.u32 %v157, 7
    %v159 = vsub.s32 0, %v158
    %v160 = vrot.slane %v126, %v159
    %v161 = vlaneseq
    %v162 = vshrl.u32 %v161, 7
    %v163 = vsub.s32 0, %v162
    %v164 = vrot.slane %v127, %v163
    %v165 = vlaneseq
    %v166 = vshrl.u32 %v165, 7
    %v167 = vsub.s32 0, %v166
    %v168 = vrot.slane %v128, %v167
    %vm177 = vcmask 261120
    %v179 = vsel %vm177, %v85, 0
    %181 = vmatprep.subr.mxu0 0.0
    %182 = vmatpush1.msra.mxu0 0.0
    %183 = vmatprep.subr.mxu0 0.0
    %184 = vmatpush1.msra.mxu0 0.0
    %185 = vmatprep.subr.mxu0 0.0
    %186 = vmatpush1.msra.mxu0 0.0
    %187 = vmatprep.subr.mxu0 0.0
    %188 = vmatpush1.msra.mxu0 0.0
    %189 = vmatprep.subr.mxu0 0.0
    %190 = vmatpush1.msra.mxu0 0.0
    %191 = vmatprep.subr.mxu0 0.0
    %192 = vmatpush1.msra.mxu0 0.0
    %193 = vmatprep.subr.mxu0 0.0
    %194 = vmatpush1.msra.mxu0 0.0
    %195 = vmatprep.subr.mxu0 0.0
    %196 = vmatpush1.msra.mxu0 0.0
    %197 = vmatprep.subr.mxu0 0.0
    %198 = vmatpush1.msra.mxu0 0.0
    %199 = vmatprep.subr.mxu0 0.0
    %200 = vmatpush1.msra.mxu0 0.0
    %201 = vmatprep.subr.mxu0 0.0
    %202 = vmatpush1.msra.mxu0 0.0
    %203 = vmatprep.subr.mxu0 0.0
    %204 = vmatpush1.msra.mxu0 0.0
    %205 = vmatprep.subr.mxu0 0.0
    %206 = vmatpush1.msra.mxu0 %v92
    %207 = vmatprep.subr.mxu0 0.0
    %208 = vmatpush1.msra.mxu0 %v91
    %209 = vmatprep.subr.mxu0 0.0
    %210 = vmatpush1.msra.mxu0 %v90
    %211 = vmatprep.subr.mxu0 0.0
    %212 = vmatpush1.msra.mxu0 %v89
    %213 = vmatprep.subr.mxu0 0.0
    %214 = vmatpush2.msra.mxu0 0.0
    %215 = vmatprep.subr.mxu0 0.0
    %216 = vmatpush2.msra.mxu0 0.0
    %217 = vmatprep.subr.mxu0 0.0
    %218 = vmatpush2.msra.mxu0 0.0
    %219 = vmatprep.subr.mxu0 0.0
    %220 = vmatpush2.msra.mxu0 0.0
    %221 = vmatprep.subr.mxu0 0.0
    %222 = vmatpush2.msra.mxu0 0.0
    %223 = vmatprep.subr.mxu0 0.0
    %224 = vmatpush2.msra.mxu0 0.0
    %225 = vmatprep.subr.mxu0 0.0
    %226 = vmatpush2.msra.mxu0 0.0
    %227 = vmatprep.subr.mxu0 0.0
    %228 = vmatpush2.msra.mxu0 0.0
    %229 = vmatprep.subr.mxu0 0.0
    %230 = vmatpush2.msra.mxu0 0.0
    %231 = vmatprep.subr.mxu0 0.0
    %232 = vmatpush2.msra.mxu0 0.0
    %233 = vmatprep.subr.mxu0 0.0
    %234 = vmatpush2.msra.mxu0 0.0
    %235 = vmatprep.subr.mxu0 0.0
    %236 = vmatpush2.msra.mxu0 0.0
    %237 = vmatprep.subr.mxu0 0.0
    %238 = vmatpush2.msra.mxu0 0.0
    %239 = vmatprep.subr.mxu0 0.0
    %240 = vmatpush2.msra.mxu0 0.0
    %241 = vmatprep.subr.mxu0 0.0
    %242 = vmatpush2.msra.mxu0 0.0
    %243 = vmatprep.subr.mxu0 0.0
    %244 = vmatpush2.msra.mxu0 0.0
    %245 = vmatprep.mubr.f32.mxu0 0.0
    %246 = vmatmul.mubr.f32.gmra.mxu0 %v179
    %v247 = vpop.f32.mrf.mxu0
    %v248 = vadd.f32 %v140, %v247
    %v249 = vpop.f32.mrf.mxu0
    %250 = vdwg.mxu0
    %251 = vmatprep.subr.mxu0 0.0
    %252 = vmatpush1.msra.mxu0 0.0
    %253 = vmatprep.subr.mxu0 0.0
    %254 = vmatpush1.msra.mxu0 0.0
    %255 = vmatprep.subr.mxu0 0.0
    %256 = vmatpush1.msra.mxu0 0.0
    %257 = vmatprep.subr.mxu0 0.0
    %258 = vmatpush1.msra.mxu0 0.0
    %259 = vmatprep.subr.mxu0 0.0
    %260 = vmatpush1.msra.mxu0 0.0
    %261 = vmatprep.subr.mxu0 0.0
    %262 = vmatpush1.msra.mxu0 0.0
    %263 = vmatprep.subr.mxu0 0.0
    %264 = vmatpush1.msra.mxu0 0.0
    %265 = vmatprep.subr.mxu0 0.0
    %266 = vmatpush1.msra.mxu0 0.0
    %267 = vmatprep.subr.mxu0 0.0
    %268 = vmatpush1.msra.mxu0 0.0
    %269 = vmatprep.subr.mxu0 0.0
    %270 = vmatpush1.msra.mxu0 0.0
    %271 = vmatprep.subr.mxu0 0.0
    %272 = vmatpush1.msra.mxu0 0.0
    %273 = vmatprep.subr.mxu0 0.0
    %274 = vmatpush1.msra.mxu0 0.0
    %275 = vmatprep.subr.mxu0 0.0
    %276 = vmatpush1.msra.mxu0 %v96
    %277 = vmatprep.subr.mxu0 0.0
    %278 = vmatpush1.msra.mxu0 %v95
    %279 = vmatprep.subr.mxu0 0.0
    %280 = vmatpush1.msra.mxu0 %v94
    %281 = vmatprep.subr.mxu0 0.0
    %282 = vmatpush1.msra.mxu0 %v93
    %283 = vmatprep.subr.mxu0 0.0
    %284 = vmatpush2.msra.mxu0 0.0
    %285 = vmatprep.subr.mxu0 0.0
    %286 = vmatpush2.msra.mxu0 0.0
    %287 = vmatprep.subr.mxu0 0.0
    %288 = vmatpush2.msra.mxu0 0.0
    %289 = vmatprep.subr.mxu0 0.0
    %290 = vmatpush2.msra.mxu0 0.0
    %291 = vmatprep.subr.mxu0 0.0
    %292 = vmatpush2.msra.mxu0 0.0
    %293 = vmatprep.subr.mxu0 0.0
    %294 = vmatpush2.msra.mxu0 0.0
    %295 = vmatprep.subr.mxu0 0.0
    %296 = vmatpush2.msra.mxu0 0.0
    %297 = vmatprep.subr.mxu0 0.0
    %298 = vmatpush2.msra.mxu0 0.0
    %299 = vmatprep.subr.mxu0 0.0
    %300 = vmatpush2.msra.mxu0 0.0
    %301 = vmatprep.subr.mxu0 0.0
    %302 = vmatpush2.msra.mxu0 0.0
    %303 = vmatprep.subr.mxu0 0.0
    %304 = vmatpush2.msra.mxu0 0.0
    %305 = vmatprep.subr.mxu0 0.0
    %306 = vmatpush2.msra.mxu0 0.0
    %307 = vmatprep.subr.mxu0 0.0
    %308 = vmatpush2.msra.mxu0 0.0
    %309 = vmatprep.subr.mxu0 0.0
    %310 = vmatpush2.msra.mxu0 0.0
    %311 = vmatprep.subr.mxu0 0.0
    %312 = vmatpush2.msra.mxu0 0.0
    %313 = vmatprep.subr.mxu0 0.0
    %314 = vmatpush2.msra.mxu0 0.0
    %315 = vmatprep.mubr.f32.mxu0 0.0
    %316 = vmatmul.mubr.f32.gmra.mxu0 %v179
    %v317 = vpop.f32.mrf.mxu0
    %v318 = vadd.f32 %v144, %v317
    %v319 = vpop.f32.mrf.mxu0
    %320 = vdwg.mxu0
    %321 = vmatprep.subr.mxu0 0.0
    %322 = vmatpush1.msra.mxu0 0.0
    %323 = vmatprep.subr.mxu0 0.0
    %324 = vmatpush1.msra.mxu0 0.0
    %325 = vmatprep.subr.mxu0 0.0
    %326 = vmatpush1.msra.mxu0 0.0
    %327 = vmatprep.subr.mxu0 0.0
    %328 = vmatpush1.msra.mxu0 0.0
    %329 = vmatprep.subr.mxu0 0.0
    %330 = vmatpush1.msra.mxu0 0.0
    %331 = vmatprep.subr.mxu0 0.0
    %332 = vmatpush1.msra.mxu0 0.0
    %333 = vmatprep.subr.mxu0 0.0
    %334 = vmatpush1.msra.mxu0 0.0
    %335 = vmatprep.subr.mxu0 0.0
    %336 = vmatpush1.msra.mxu0 0.0
    %337 = vmatprep.subr.mxu0 0.0
    %338 = vmatpush1.msra.mxu0 0.0
    %339 = vmatprep.subr.mxu0 0.0
    %340 = vmatpush1.msra.mxu0 0.0
    %341 = vmatprep.subr.mxu0 0.0
    %342 = vmatpush1.msra.mxu0 0.0
    %343 = vmatprep.subr.mxu0 0.0
    %344 = vmatpush1.msra.mxu0 0.0
    %345 = vmatprep.subr.mxu0 0.0
    %346 = vmatpush1.msra.mxu0 %v100
    %347 = vmatprep.subr.mxu0 0.0
    %348 = vmatpush1.msra.mxu0 %v99
    %349 = vmatprep.subr.mxu0 0.0
    %350 = vmatpush1.msra.mxu0 %v98
    %351 = vmatprep.subr.mxu0 0.0
    %352 = vmatpush1.msra.mxu0 %v97
    %353 = vmatprep.subr.mxu0 0.0
    %354 = vmatpush2.msra.mxu0 0.0
    %355 = vmatprep.subr.mxu0 0.0
    %356 = vmatpush2.msra.mxu0 0.0
    %357 = vmatprep.subr.mxu0 0.0
    %358 = vmatpush2.msra.mxu0 0.0
    %359 = vmatprep.subr.mxu0 0.0
    %360 = vmatpush2.msra.mxu0 0.0
    %361 = vmatprep.subr.mxu0 0.0
    %362 = vmatpush2.msra.mxu0 0.0
    %363 = vmatprep.subr.mxu0 0.0
    %364 = vmatpush2.msra.mxu0 0.0
    %365 = vmatprep.subr.mxu0 0.0
    %366 = vmatpush2.msra.mxu0 0.0
    %367 = vmatprep.subr.mxu0 0.0
    %368 = vmatpush2.msra.mxu0 0.0
    %369 = vmatprep.subr.mxu0 0.0
    %370 = vmatpush2.msra.mxu0 0.0
    %371 = vmatprep.subr.mxu0 0.0
    %372 = vmatpush2.msra.mxu0 0.0
    %373 = vmatprep.subr.mxu0 0.0
    %374 = vmatpush2.msra.mxu0 0.0
    %375 = vmatprep.subr.mxu0 0.0
    %376 = vmatpush2.msra.mxu0 0.0
    %377 = vmatprep.subr.mxu0 0.0
    %378 = vmatpush2.msra.mxu0 0.0
    %379 = vmatprep.subr.mxu0 0.0
    %380 = vmatpush2.msra.mxu0 0.0
    %381 = vmatprep.subr.mxu0 0.0
    %382 = vmatpush2.msra.mxu0 0.0
    %383 = vmatprep.subr.mxu0 0.0
    %384 = vmatpush2.msra.mxu0 0.0
    %385 = vmatprep.mubr.f32.mxu0 0.0
    %386 = vmatmul.mubr.f32.gmra.mxu0 %v179
    %v387 = vpop.f32.mrf.mxu0
    %v388 = vadd.f32 %v148, %v387
    %v389 = vpop.f32.mrf.mxu0
    %390 = vdwg.mxu0
    %391 = vmatprep.subr.mxu0 0.0
    %392 = vmatpush1.msra.mxu0 0.0
    %393 = vmatprep.subr.mxu0 0.0
    %394 = vmatpush1.msra.mxu0 0.0
    %395 = vmatprep.subr.mxu0 0.0
    %396 = vmatpush1.msra.mxu0 0.0
    %397 = vmatprep.subr.mxu0 0.0
    %398 = vmatpush1.msra.mxu0 0.0
    %399 = vmatprep.subr.mxu0 0.0
    %400 = vmatpush1.msra.mxu0 0.0
    %401 = vmatprep.subr.mxu0 0.0
    %402 = vmatpush1.msra.mxu0 0.0
    %403 = vmatprep.subr.mxu0 0.0
    %404 = vmatpush1.msra.mxu0 0.0
    %405 = vmatprep.subr.mxu0 0.0
    %406 = vmatpush1.msra.mxu0 0.0
    %407 = vmatprep.subr.mxu0 0.0
    %408 = vmatpush1.msra.mxu0 0.0
    %409 = vmatprep.subr.mxu0 0.0
    %410 = vmatpush1.msra.mxu0 0.0
    %411 = vmatprep.subr.mxu0 0.0
    %412 = vmatpush1.msra.mxu0 0.0
    %413 = vmatprep.subr.mxu0 0.0
    %414 = vmatpush1.msra.mxu0 0.0
    %415 = vmatprep.subr.mxu0 0.0
    %416 = vmatpush1.msra.mxu0 %v104
    %417 = vmatprep.subr.mxu0 0.0
    %418 = vmatpush1.msra.mxu0 %v103
    %419 = vmatprep.subr.mxu0 0.0
    %420 = vmatpush1.msra.mxu0 %v102
    %421 = vmatprep.subr.mxu0 0.0
    %422 = vmatpush1.msra.mxu0 %v101
    %423 = vmatprep.subr.mxu0 0.0
    %424 = vmatpush2.msra.mxu0 0.0
    %425 = vmatprep.subr.mxu0 0.0
    %426 = vmatpush2.msra.mxu0 0.0
    %427 = vmatprep.subr.mxu0 0.0
    %428 = vmatpush2.msra.mxu0 0.0
    %429 = vmatprep.subr.mxu0 0.0
    %430 = vmatpush2.msra.mxu0 0.0
    %431 = vmatprep.subr.mxu0 0.0
    %432 = vmatpush2.msra.mxu0 0.0
    %433 = vmatprep.subr.mxu0 0.0
    %434 = vmatpush2.msra.mxu0 0.0
    %435 = vmatprep.subr.mxu0 0.0
    %436 = vmatpush2.msra.mxu0 0.0
    %437 = vmatprep.subr.mxu0 0.0
    %438 = vmatpush2.msra.mxu0 0.0
    %439 = vmatprep.subr.mxu0 0.0
    %440 = vmatpush2.msra.mxu0 0.0
    %441 = vmatprep.subr.mxu0 0.0
    %442 = vmatpush2.msra.mxu0 0.0
    %443 = vmatprep.subr.mxu0 0.0
    %444 = vmatpush2.msra.mxu0 0.0
    %445 = vmatprep.subr.mxu0 0.0
    %446 = vmatpush2.msra.mxu0 0.0
    %447 = vmatprep.subr.mxu0 0.0
    %448 = vmatpush2.msra.mxu0 0.0
    %449 = vmatprep.subr.mxu0 0.0
    %450 = vmatpush2.msra.mxu0 0.0
    %451 = vmatprep.subr.mxu0 0.0
    %452 = vmatpush2.msra.mxu0 0.0
    %453 = vmatprep.subr.mxu0 0.0
    %454 = vmatpush2.msra.mxu0 0.0
    %455 = vmatprep.mubr.f32.mxu0 0.0
    %456 = vmatmul.mubr.f32.gmra.mxu0 %v179
    %v457 = vpop.f32.mrf.mxu0
    %v458 = vadd.f32 %v152, %v457
    %v459 = vpop.f32.mrf.mxu0
    %460 = vdwg.mxu0
    %v462 = vsel %vm177, %v86, 0
    %464 = vmatprep.subr.mxu0 0.0
    %465 = vmatpush1.msra.mxu0 0.0
    %466 = vmatprep.subr.mxu0 0.0
    %467 = vmatpush1.msra.mxu0 0.0
    %468 = vmatprep.subr.mxu0 0.0
    %469 = vmatpush1.msra.mxu0 0.0
    %470 = vmatprep.subr.mxu0 0.0
    %471 = vmatpush1.msra.mxu0 0.0
    %472 = vmatprep.subr.mxu0 0.0
    %473 = vmatpush1.msra.mxu0 0.0
    %474 = vmatprep.subr.mxu0 0.0
    %475 = vmatpush1.msra.mxu0 0.0
    %476 = vmatprep.subr.mxu0 0.0
    %477 = vmatpush1.msra.mxu0 0.0
    %478 = vmatprep.subr.mxu0 0.0
    %479 = vmatpush1.msra.mxu0 0.0
    %480 = vmatprep.subr.mxu0 0.0
    %481 = vmatpush1.msra.mxu0 0.0
    %482 = vmatprep.subr.mxu0 0.0
    %483 = vmatpush1.msra.mxu0 0.0
    %484 = vmatprep.subr.mxu0 0.0
    %485 = vmatpush1.msra.mxu0 0.0
    %486 = vmatprep.subr.mxu0 0.0
    %487 = vmatpush1.msra.mxu0 0.0
    %488 = vmatprep.subr.mxu0 0.0
    %489 = vmatpush1.msra.mxu0 %v108
    %490 = vmatprep.subr.mxu0 0.0
    %491 = vmatpush1.msra.mxu0 %v107
    %492 = vmatprep.subr.mxu0 0.0
    %493 = vmatpush1.msra.mxu0 %v106
    %494 = vmatprep.subr.mxu0 0.0
    %495 = vmatpush1.msra.mxu0 %v105
    %496 = vmatprep.subr.mxu0 0.0
    %497 = vmatpush2.msra.mxu0 0.0
    %498 = vmatprep.subr.mxu0 0.0
    %499 = vmatpush2.msra.mxu0 0.0
    %500 = vmatprep.subr.mxu0 0.0
    %501 = vmatpush2.msra.mxu0 0.0
    %502 = vmatprep.subr.mxu0 0.0
    %503 = vmatpush2.msra.mxu0 0.0
    %504 = vmatprep.subr.mxu0 0.0
    %505 = vmatpush2.msra.mxu0 0.0
    %506 = vmatprep.subr.mxu0 0.0
    %507 = vmatpush2.msra.mxu0 0.0
    %508 = vmatprep.subr.mxu0 0.0
    %509 = vmatpush2.msra.mxu0 0.0
    %510 = vmatprep.subr.mxu0 0.0
    %511 = vmatpush2.msra.mxu0 0.0
    %512 = vmatprep.subr.mxu0 0.0
    %513 = vmatpush2.msra.mxu0 0.0
    %514 = vmatprep.subr.mxu0 0.0
    %515 = vmatpush2.msra.mxu0 0.0
    %516 = vmatprep.subr.mxu0 0.0
    %517 = vmatpush2.msra.mxu0 0.0
    %518 = vmatprep.subr.mxu0 0.0
    %519 = vmatpush2.msra.mxu0 0.0
    %520 = vmatprep.subr.mxu0 0.0
    %521 = vmatpush2.msra.mxu0 0.0
    %522 = vmatprep.subr.mxu0 0.0
    %523 = vmatpush2.msra.mxu0 0.0
    %524 = vmatprep.subr.mxu0 0.0
    %525 = vmatpush2.msra.mxu0 0.0
    %526 = vmatprep.subr.mxu0 0.0
    %527 = vmatpush2.msra.mxu0 0.0
    %528 = vmatprep.mubr.f32.mxu0 0.0
    %529 = vmatmul.mubr.f32.gmra.mxu0 %v462
    %v530 = vpop.f32.mrf.mxu0
    %v531 = vadd.f32 %v156, %v530
    %v532 = vpop.f32.mrf.mxu0
    %533 = vdwg.mxu0
    %534 = vmatprep.subr.mxu0 0.0
    %535 = vmatpush1.msra.mxu0 0.0
    %536 = vmatprep.subr.mxu0 0.0
    %537 = vmatpush1.msra.mxu0 0.0
    %538 = vmatprep.subr.mxu0 0.0
    %539 = vmatpush1.msra.mxu0 0.0
    %540 = vmatprep.subr.mxu0 0.0
    %541 = vmatpush1.msra.mxu0 0.0
    %542 = vmatprep.subr.mxu0 0.0
    %543 = vmatpush1.msra.mxu0 0.0
    %544 = vmatprep.subr.mxu0 0.0
    %545 = vmatpush1.msra.mxu0 0.0
    %546 = vmatprep.subr.mxu0 0.0
    %547 = vmatpush1.msra.mxu0 0.0
    %548 = vmatprep.subr.mxu0 0.0
    %549 = vmatpush1.msra.mxu0 0.0
    %550 = vmatprep.subr.mxu0 0.0
    %551 = vmatpush1.msra.mxu0 0.0
    %552 = vmatprep.subr.mxu0 0.0
    %553 = vmatpush1.msra.mxu0 0.0
    %554 = vmatprep.subr.mxu0 0.0
    %555 = vmatpush1.msra.mxu0 0.0
    %556 = vmatprep.subr.mxu0 0.0
    %557 = vmatpush1.msra.mxu0 0.0
    %558 = vmatprep.subr.mxu0 0.0
    %559 = vmatpush1.msra.mxu0 %v112
    %560 = vmatprep.subr.mxu0 0.0
    %561 = vmatpush1.msra.mxu0 %v111
    %562 = vmatprep.subr.mxu0 0.0
    %563 = vmatpush1.msra.mxu0 %v110
    %564 = vmatprep.subr.mxu0 0.0
    %565 = vmatpush1.msra.mxu0 %v109
    %566 = vmatprep.subr.mxu0 0.0
    %567 = vmatpush2.msra.mxu0 0.0
    %568 = vmatprep.subr.mxu0 0.0
    %569 = vmatpush2.msra.mxu0 0.0
    %570 = vmatprep.subr.mxu0 0.0
    %571 = vmatpush2.msra.mxu0 0.0
    %572 = vmatprep.subr.mxu0 0.0
    %573 = vmatpush2.msra.mxu0 0.0
    %574 = vmatprep.subr.mxu0 0.0
    %575 = vmatpush2.msra.mxu0 0.0
    %576 = vmatprep.subr.mxu0 0.0
    %577 = vmatpush2.msra.mxu0 0.0
    %578 = vmatprep.subr.mxu0 0.0
    %579 = vmatpush2.msra.mxu0 0.0
    %580 = vmatprep.subr.mxu0 0.0
    %581 = vmatpush2.msra.mxu0 0.0
    %582 = vmatprep.subr.mxu0 0.0
    %583 = vmatpush2.msra.mxu0 0.0
    %584 = vmatprep.subr.mxu0 0.0
    %585 = vmatpush2.msra.mxu0 0.0
    %586 = vmatprep.subr.mxu0 0.0
    %587 = vmatpush2.msra.mxu0 0.0
    %588 = vmatprep.subr.mxu0 0.0
    %589 = vmatpush2.msra.mxu0 0.0
    %590 = vmatprep.subr.mxu0 0.0
    %591 = vmatpush2.msra.mxu0 0.0
    %592 = vmatprep.subr.mxu0 0.0
    %593 = vmatpush2.msra.mxu0 0.0
    %594 = vmatprep.subr.mxu0 0.0
    %595 = vmatpush2.msra.mxu0 0.0
    %596 = vmatprep.subr.mxu0 0.0
    %597 = vmatpush2.msra.mxu0 0.0
    %598 = vmatprep.mubr.f32.mxu0 0.0
    %599 = vmatmul.mubr.f32.gmra.mxu0 %v462
    %v600 = vpop.f32.mrf.mxu0
    %v601 = vadd.f32 %v160, %v600
    %v602 = vpop.f32.mrf.mxu0
    %603 = vdwg.mxu0
    %604 = vmatprep.subr.mxu0 0.0
    %605 = vmatpush1.msra.mxu0 0.0
    %606 = vmatprep.subr.mxu0 0.0
    %607 = vmatpush1.msra.mxu0 0.0
    %608 = vmatprep.subr.mxu0 0.0
    %609 = vmatpush1.msra.mxu0 0.0
    %610 = vmatprep.subr.mxu0 0.0
    %611 = vmatpush1.msra.mxu0 0.0
    %612 = vmatprep.subr.mxu0 0.0
    %613 = vmatpush1.msra.mxu0 0.0
    %614 = vmatprep.subr.mxu0 0.0
    %615 = vmatpush1.msra.mxu0 0.0
    %616 = vmatprep.subr.mxu0 0.0
    %617 = vmatpush1.msra.mxu0 0.0
    %618 = vmatprep.subr.mxu0 0.0
    %619 = vmatpush1.msra.mxu0 0.0
    %620 = vmatprep.subr.mxu0 0.0
    %621 = vmatpush1.msra.mxu0 0.0
    %622 = vmatprep.subr.mxu0 0.0
    %623 = vmatpush1.msra.mxu0 0.0
    %624 = vmatprep.subr.mxu0 0.0
    %625 = vmatpush1.msra.mxu0 0.0
    %626 = vmatprep.subr.mxu0 0.0
    %627 = vmatpush1.msra.mxu0 0.0
    %628 = vmatprep.subr.mxu0 0.0
    %629 = vmatpush1.msra.mxu0 %v116
    %630 = vmatprep.subr.mxu0 0.0
    %631 = vmatpush1.msra.mxu0 %v115
    %632 = vmatprep.subr.mxu0 0.0
    %633 = vmatpush1.msra.mxu0 %v114
    %634 = vmatprep.subr.mxu0 0.0
    %635 = vmatpush1.msra.mxu0 %v113
    %636 = vmatprep.subr.mxu0 0.0
    %637 = vmatpush2.msra.mxu0 0.0
    %638 = vmatprep.subr.mxu0 0.0
    %639 = vmatpush2.msra.mxu0 0.0
    %640 = vmatprep.subr.mxu0 0.0
    %641 = vmatpush2.msra.mxu0 0.0
    %642 = vmatprep.subr.mxu0 0.0
    %643 = vmatpush2.msra.mxu0 0.0
    %644 = vmatprep.subr.mxu0 0.0
    %645 = vmatpush2.msra.mxu0 0.0
    %646 = vmatprep.subr.mxu0 0.0
    %647 = vmatpush2.msra.mxu0 0.0
    %648 = vmatprep.subr.mxu0 0.0
    %649 = vmatpush2.msra.mxu0 0.0
    %650 = vmatprep.subr.mxu0 0.0
    %651 = vmatpush2.msra.mxu0 0.0
    %652 = vmatprep.subr.mxu0 0.0
    %653 = vmatpush2.msra.mxu0 0.0
    %654 = vmatprep.subr.mxu0 0.0
    %655 = vmatpush2.msra.mxu0 0.0
    %656 = vmatprep.subr.mxu0 0.0
    %657 = vmatpush2.msra.mxu0 0.0
    %658 = vmatprep.subr.mxu0 0.0
    %659 = vmatpush2.msra.mxu0 0.0
    %660 = vmatprep.subr.mxu0 0.0
    %661 = vmatpush2.msra.mxu0 0.0
    %662 = vmatprep.subr.mxu0 0.0
    %663 = vmatpush2.msra.mxu0 0.0
    %664 = vmatprep.subr.mxu0 0.0
    %665 = vmatpush2.msra.mxu0 0.0
    %666 = vmatprep.subr.mxu0 0.0
    %667 = vmatpush2.msra.mxu0 0.0
    %668 = vmatprep.mubr.f32.mxu0 0.0
    %669 = vmatmul.mubr.f32.gmra.mxu0 %v462
    %v670 = vpop.f32.mrf.mxu0
    %v671 = vadd.f32 %v164, %v670
    %v672 = vpop.f32.mrf.mxu0
    %673 = vdwg.mxu0
    %674 = vmatprep.subr.mxu0 0.0
    %675 = vmatpush1.msra.mxu0 0.0
    %676 = vmatprep.subr.mxu0 0.0
    %677 = vmatpush1.msra.mxu0 0.0
    %678 = vmatprep.subr.mxu0 0.0
    %679 = vmatpush1.msra.mxu0 0.0
    %680 = vmatprep.subr.mxu0 0.0
    %681 = vmatpush1.msra.mxu0 0.0
    %682 = vmatprep.subr.mxu0 0.0
    %683 = vmatpush1.msra.mxu0 0.0
    %684 = vmatprep.subr.mxu0 0.0
    %685 = vmatpush1.msra.mxu0 0.0
    %686 = vmatprep.subr.mxu0 0.0
    %687 = vmatpush1.msra.mxu0 0.0
    %688 = vmatprep.subr.mxu0 0.0
    %689 = vmatpush1.msra.mxu0 0.0
    %690 = vmatprep.subr.mxu0 0.0
    %691 = vmatpush1.msra.mxu0 0.0
    %692 = vmatprep.subr.mxu0 0.0
    %693 = vmatpush1.msra.mxu0 0.0
    %694 = vmatprep.subr.mxu0 0.0
    %695 = vmatpush1.msra.mxu0 0.0
    %696 = vmatprep.subr.mxu0 0.0
    %697 = vmatpush1.msra.mxu0 0.0
    %698 = vmatprep.subr.mxu0 0.0
    %699 = vmatpush1.msra.mxu0 %v120
    %700 = vmatprep.subr.mxu0 0.0
    %701 = vmatpush1.msra.mxu0 %v119
    %702 = vmatprep.subr.mxu0 0.0
    %703 = vmatpush1.msra.mxu0 %v118
    %704 = vmatprep.subr.mxu0 0.0
    %705 = vmatpush1.msra.mxu0 %v117
    %706 = vmatprep.subr.mxu0 0.0
    %707 = vmatpush2.msra.mxu0 0.0
    %708 = vmatprep.subr.mxu0 0.0
    %709 = vmatpush2.msra.mxu0 0.0
    %710 = vmatprep.subr.mxu0 0.0
    %711 = vmatpush2.msra.mxu0 0.0
    %712 = vmatprep.subr.mxu0 0.0
    %713 = vmatpush2.msra.mxu0 0.0
    %714 = vmatprep.subr.mxu0 0.0
    %715 = vmatpush2.msra.mxu0 0.0
    %716 = vmatprep.subr.mxu0 0.0
    %717 = vmatpush2.msra.mxu0 0.0
    %718 = vmatprep.subr.mxu0 0.0
    %719 = vmatpush2.msra.mxu0 0.0
    %720 = vmatprep.subr.mxu0 0.0
    %721 = vmatpush2.msra.mxu0 0.0
    %722 = vmatprep.subr.mxu0 0.0
    %723 = vmatpush2.msra.mxu0 0.0
    %724 = vmatprep.subr.mxu0 0.0
    %725 = vmatpush2.msra.mxu0 0.0
    %726 = vmatprep.subr.mxu0 0.0
    %727 = vmatpush2.msra.mxu0 0.0
    %728 = vmatprep.subr.mxu0 0.0
    %729 = vmatpush2.msra.mxu0 0.0
    %730 = vmatprep.subr.mxu0 0.0
    %731 = vmatpush2.msra.mxu0 0.0
    %732 = vmatprep.subr.mxu0 0.0
    %733 = vmatpush2.msra.mxu0 0.0
    %734 = vmatprep.subr.mxu0 0.0
    %735 = vmatpush2.msra.mxu0 0.0
    %736 = vmatprep.subr.mxu0 0.0
    %737 = vmatpush2.msra.mxu0 0.0
    %738 = vmatprep.mubr.f32.mxu0 0.0
    %739 = vmatmul.mubr.f32.gmra.mxu0 %v462
    %v740 = vpop.f32.mrf.mxu0
    %v741 = vadd.f32 %v168, %v740
    %v742 = vpop.f32.mrf.mxu0
    %743 = vdwg.mxu0
    %v744 = vld [vmem:[%s4] sm:$0xff]
    %v745 = vld [vmem:[%s4 + $0x8] sm:$0xff]
    %v746 = vld [vmem:[%s4 + $0x10] sm:$0xff]
    %v747 = vld [vmem:[%s4 + $0x18] sm:$0xff]
    %v748 = vld [vmem:[%s4 + $0x20] sm:$0xff]
    %v749 = vld [vmem:[%s4 + $0x28] sm:$0xff]
    %v750 = vld [vmem:[%s4 + $0x30] sm:$0xff]
    %v751 = vld [vmem:[%s4 + $0x38] sm:$0xff]
    %v752 = vld [vmem:[%s4 + $0x40] sm:$0xff]
    %v753 = vld [vmem:[%s4 + $0x48] sm:$0xff]
    %v754 = vld [vmem:[%s4 + $0x50] sm:$0xff]
    %v755 = vld [vmem:[%s4 + $0x58] sm:$0xff]
    %v756 = vld [vmem:[%s4 + $0x60] sm:$0xff]
    %v757 = vld [vmem:[%s4 + $0x68] sm:$0xff]
    %v758 = vld [vmem:[%s4 + $0x70] sm:$0xff]
    %v759 = vld [vmem:[%s4 + $0x78] sm:$0xff]
    %v760 = vld [vmem:[%s4 + $0x80] sm:$0xff]
    %v761 = vld [vmem:[%s4 + $0x88] sm:$0xff]
    %v762 = vld [vmem:[%s4 + $0x90] sm:$0xff]
    %v763 = vld [vmem:[%s4 + $0x98] sm:$0xff]
    %v764 = vld [vmem:[%s4 + $0xa0] sm:$0xff]
    %v765 = vld [vmem:[%s4 + $0xa8] sm:$0xff]
    %v766 = vld [vmem:[%s4 + $0xb0] sm:$0xff]
    %v767 = vld [vmem:[%s4 + $0xb8] sm:$0xff]
    %v768 = vld [vmem:[%s4 + $0xc0] sm:$0xff]
    %v769 = vld [vmem:[%s4 + $0xc8] sm:$0xff]
    %v770 = vld [vmem:[%s4 + $0xd0] sm:$0xff]
    %v771 = vld [vmem:[%s4 + $0xd8] sm:$0xff]
    %v772 = vld [vmem:[%s4 + $0xe0] sm:$0xff]
    %v773 = vld [vmem:[%s4 + $0xe8] sm:$0xff]
    %v774 = vld [vmem:[%s4 + $0xf0] sm:$0xff]
    %v775 = vld [vmem:[%s4 + $0xf8] sm:$0xff]
    %v776 = vld [vmem:[#allocation8] sm:$0x1]
    %v777 = vld [vmem:[#allocation8 + $0x1] sm:$0x1]
    %v778 = vld [vmem:[#allocation8 + $0x2] sm:$0x1]
    %v779 = vld [vmem:[#allocation8 + $0x3] sm:$0x1]
    %v780 = vld [vmem:[#allocation8 + $0x4] sm:$0x1]
    %v781 = vld [vmem:[#allocation8 + $0x5] sm:$0x1]
    %v782 = vld [vmem:[#allocation8 + $0x6] sm:$0x1]
    %v783 = vld [vmem:[#allocation8 + $0x7] sm:$0x1]
    %v792 = vlaneseq
    %v793 = vshrl.u32 %v792, 7
    %v794 = vsub.s32 0, %v793
    %v795 = vrot.slane %v776, %v794
    %v796 = vlaneseq
    %v797 = vshrl.u32 %v796, 7
    %v798 = vsub.s32 0, %v797
    %v799 = vrot.slane %v777, %v798
    %v800 = vlaneseq
    %v801 = vshrl.u32 %v800, 7
    %v802 = vsub.s32 0, %v801
    %v803 = vrot.slane %v778, %v802
    %v804 = vlaneseq
    %v805 = vshrl.u32 %v804, 7
    %v806 = vsub.s32 0, %v805
    %v807 = vrot.slane %v779, %v806
    %v808 = vlaneseq
    %v809 = vshrl.u32 %v808, 7
    %v810 = vsub.s32 0, %v809
    %v811 = vrot.slane %v780, %v810
    %v812 = vlaneseq
    %v813 = vshrl.u32 %v812, 7
    %v814 = vsub.s32 0, %v813
    %v815 = vrot.slane %v781, %v814
    %v816 = vlaneseq
    %v817 = vshrl.u32 %v816, 7
    %v818 = vsub.s32 0, %v817
    %v819 = vrot.slane %v782, %v818
    %v820 = vlaneseq
    %v821 = vshrl.u32 %v820, 7
    %v822 = vsub.s32 0, %v821
    %v823 = vrot.slane %v783, %v822
    %v833 = vsel %vm177, %v87, 0
    %835 = vmatprep.subr.mxu0 0.0
    %836 = vmatpush1.msra.mxu0 0.0
    %837 = vmatprep.subr.mxu0 0.0
    %838 = vmatpush1.msra.mxu0 0.0
    %839 = vmatprep.subr.mxu0 0.0
    %840 = vmatpush1.msra.mxu0 0.0
    %841 = vmatprep.subr.mxu0 0.0
    %842 = vmatpush1.msra.mxu0 0.0
    %843 = vmatprep.subr.mxu0 0.0
    %844 = vmatpush1.msra.mxu0 0.0
    %845 = vmatprep.subr.mxu0 0.0
    %846 = vmatpush1.msra.mxu0 0.0
    %847 = vmatprep.subr.mxu0 0.0
    %848 = vmatpush1.msra.mxu0 0.0
    %849 = vmatprep.subr.mxu0 0.0
    %850 = vmatpush1.msra.mxu0 0.0
    %851 = vmatprep.subr.mxu0 0.0
    %852 = vmatpush1.msra.mxu0 0.0
    %853 = vmatprep.subr.mxu0 0.0
    %854 = vmatpush1.msra.mxu0 0.0
    %855 = vmatprep.subr.mxu0 0.0
    %856 = vmatpush1.msra.mxu0 0.0
    %857 = vmatprep.subr.mxu0 0.0
    %858 = vmatpush1.msra.mxu0 0.0
    %859 = vmatprep.subr.mxu0 0.0
    %860 = vmatpush1.msra.mxu0 %v747
    %861 = vmatprep.subr.mxu0 0.0
    %862 = vmatpush1.msra.mxu0 %v746
    %863 = vmatprep.subr.mxu0 0.0
    %864 = vmatpush1.msra.mxu0 %v745
    %865 = vmatprep.subr.mxu0 0.0
    %866 = vmatpush1.msra.mxu0 %v744
    %867 = vmatprep.subr.mxu0 0.0
    %868 = vmatpush2.msra.mxu0 0.0
    %869 = vmatprep.subr.mxu0 0.0
    %870 = vmatpush2.msra.mxu0 0.0
    %871 = vmatprep.subr.mxu0 0.0
    %872 = vmatpush2.msra.mxu0 0.0
    %873 = vmatprep.subr.mxu0 0.0
    %874 = vmatpush2.msra.mxu0 0.0
    %875 = vmatprep.subr.mxu0 0.0
    %876 = vmatpush2.msra.mxu0 0.0
    %877 = vmatprep.subr.mxu0 0.0
    %878 = vmatpush2.msra.mxu0 0.0
    %879 = vmatprep.subr.mxu0 0.0
    %880 = vmatpush2.msra.mxu0 0.0
    %881 = vmatprep.subr.mxu0 0.0
    %882 = vmatpush2.msra.mxu0 0.0
    %883 = vmatprep.subr.mxu0 0.0
    %884 = vmatpush2.msra.mxu0 0.0
    %885 = vmatprep.subr.mxu0 0.0
    %886 = vmatpush2.msra.mxu0 0.0
    %887 = vmatprep.subr.mxu0 0.0
    %888 = vmatpush2.msra.mxu0 0.0
    %889 = vmatprep.subr.mxu0 0.0
    %890 = vmatpush2.msra.mxu0 0.0
    %891 = vmatprep.subr.mxu0 0.0
    %892 = vmatpush2.msra.mxu0 0.0
    %893 = vmatprep.subr.mxu0 0.0
    %894 = vmatpush2.msra.mxu0 0.0
    %895 = vmatprep.subr.mxu0 0.0
    %896 = vmatpush2.msra.mxu0 0.0
    %897 = vmatprep.subr.mxu0 0.0
    %898 = vmatpush2.msra.mxu0 0.0
    %899 = vmatprep.mubr.f32.mxu0 0.0
    %900 = vmatmul.mubr.f32.gmra.mxu0 %v833
    %v901 = vpop.f32.mrf.mxu0
    %v902 = vadd.f32 %v795, %v901
    %v903 = vpop.f32.mrf.mxu0
    %904 = vdwg.mxu0
    %905 = vmatprep.subr.mxu0 0.0
    %906 = vmatpush1.msra.mxu0 0.0
    %907 = vmatprep.subr.mxu0 0.0
    %908 = vmatpush1.msra.mxu0 0.0
    %909 = vmatprep.subr.mxu0 0.0
    %910 = vmatpush1.msra.mxu0 0.0
    %911 = vmatprep.subr.mxu0 0.0
    %912 = vmatpush1.msra.mxu0 0.0
    %913 = vmatprep.subr.mxu0 0.0
    %914 = vmatpush1.msra.mxu0 0.0
    %915 = vmatprep.subr.mxu0 0.0
    %916 = vmatpush1.msra.mxu0 0.0
    %917 = vmatprep.subr.mxu0 0.0
    %918 = vmatpush1.msra.mxu0 0.0
    %919 = vmatprep.subr.mxu0 0.0
    %920 = vmatpush1.msra.mxu0 0.0
    %921 = vmatprep.subr.mxu0 0.0
    %922 = vmatpush1.msra.mxu0 0.0
    %923 = vmatprep.subr.mxu0 0.0
    %924 = vmatpush1.msra.mxu0 0.0
    %925 = vmatprep.subr.mxu0 0.0
    %926 = vmatpush1.msra.mxu0 0.0
    %927 = vmatprep.subr.mxu0 0.0
    %928 = vmatpush1.msra.mxu0 0.0
    %929 = vmatprep.subr.mxu0 0.0
    %930 = vmatpush1.msra.mxu0 %v751
    %931 = vmatprep.subr.mxu0 0.0
    %932 = vmatpush1.msra.mxu0 %v750
    %933 = vmatprep.subr.mxu0 0.0
    %934 = vmatpush1.msra.mxu0 %v749
    %935 = vmatprep.subr.mxu0 0.0
    %936 = vmatpush1.msra.mxu0 %v748
    %937 = vmatprep.subr.mxu0 0.0
    %938 = vmatpush2.msra.mxu0 0.0
    %939 = vmatprep.subr.mxu0 0.0
    %940 = vmatpush2.msra.mxu0 0.0
    %941 = vmatprep.subr.mxu0 0.0
    %942 = vmatpush2.msra.mxu0 0.0
    %943 = vmatprep.subr.mxu0 0.0
    %944 = vmatpush2.msra.mxu0 0.0
    %945 = vmatprep.subr.mxu0 0.0
    %946 = vmatpush2.msra.mxu0 0.0
    %947 = vmatprep.subr.mxu0 0.0
    %948 = vmatpush2.msra.mxu0 0.0
    %949 = vmatprep.subr.mxu0 0.0
    %950 = vmatpush2.msra.mxu0 0.0
    %951 = vmatprep.subr.mxu0 0.0
    %952 = vmatpush2.msra.mxu0 0.0
    %953 = vmatprep.subr.mxu0 0.0
    %954 = vmatpush2.msra.mxu0 0.0
    %955 = vmatprep.subr.mxu0 0.0
    %956 = vmatpush2.msra.mxu0 0.0
    %957 = vmatprep.subr.mxu0 0.0
    %958 = vmatpush2.msra.mxu0 0.0
    %959 = vmatprep.subr.mxu0 0.0
    %960 = vmatpush2.msra.mxu0 0.0
    %961 = vmatprep.subr.mxu0 0.0
    %962 = vmatpush2.msra.mxu0 0.0
    %963 = vmatprep.subr.mxu0 0.0
    %964 = vmatpush2.msra.mxu0 0.0
    %965 = vmatprep.subr.mxu0 0.0
    %966 = vmatpush2.msra.mxu0 0.0
    %967 = vmatprep.subr.mxu0 0.0
    %968 = vmatpush2.msra.mxu0 0.0
    %969 = vmatprep.mubr.f32.mxu0 0.0
    %970 = vmatmul.mubr.f32.gmra.mxu0 %v833
    %v971 = vpop.f32.mrf.mxu0
    %v972 = vadd.f32 %v799, %v971
    %v973 = vpop.f32.mrf.mxu0
    %974 = vdwg.mxu0
    %975 = vmatprep.subr.mxu0 0.0
    %976 = vmatpush1.msra.mxu0 0.0
    %977 = vmatprep.subr.mxu0 0.0
    %978 = vmatpush1.msra.mxu0 0.0
    %979 = vmatprep.subr.mxu0 0.0
    %980 = vmatpush1.msra.mxu0 0.0
    %981 = vmatprep.subr.mxu0 0.0
    %982 = vmatpush1.msra.mxu0 0.0
    %983 = vmatprep.subr.mxu0 0.0
    %984 = vmatpush1.msra.mxu0 0.0
    %985 = vmatprep.subr.mxu0 0.0
    %986 = vmatpush1.msra.mxu0 0.0
    %987 = vmatprep.subr.mxu0 0.0
    %988 = vmatpush1.msra.mxu0 0.0
    %989 = vmatprep.subr.mxu0 0.0
    %990 = vmatpush1.msra.mxu0 0.0
    %991 = vmatprep.subr.mxu0 0.0
    %992 = vmatpush1.msra.mxu0 0.0
    %993 = vmatprep.subr.mxu0 0.0
    %994 = vmatpush1.msra.mxu0 0.0
    %995 = vmatprep.subr.mxu0 0.0
    %996 = vmatpush1.msra.mxu0 0.0
    %997 = vmatprep.subr.mxu0 0.0
    %998 = vmatpush1.msra.mxu0 0.0
    %999 = vmatprep.subr.mxu0 0.0
    %1000 = vmatpush1.msra.mxu0 %v755
    %1001 = vmatprep.subr.mxu0 0.0
    %1002 = vmatpush1.msra.mxu0 %v754
    %1003 = vmatprep.subr.mxu0 0.0
    %1004 = vmatpush1.msra.mxu0 %v753
    %1005 = vmatprep.subr.mxu0 0.0
    %1006 = vmatpush1.msra.mxu0 %v752
    %1007 = vmatprep.subr.mxu0 0.0
    %1008 = vmatpush2.msra.mxu0 0.0
    %1009 = vmatprep.subr.mxu0 0.0
    %1010 = vmatpush2.msra.mxu0 0.0
    %1011 = vmatprep.subr.mxu0 0.0
    %1012 = vmatpush2.msra.mxu0 0.0
    %1013 = vmatprep.subr.mxu0 0.0
    %1014 = vmatpush2.msra.mxu0 0.0
    %1015 = vmatprep.subr.mxu0 0.0
    %1016 = vmatpush2.msra.mxu0 0.0
    %1017 = vmatprep.subr.mxu0 0.0
    %1018 = vmatpush2.msra.mxu0 0.0
    %1019 = vmatprep.subr.mxu0 0.0
    %1020 = vmatpush2.msra.mxu0 0.0
    %1021 = vmatprep.subr.mxu0 0.0
    %1022 = vmatpush2.msra.mxu0 0.0
    %1023 = vmatprep.subr.mxu0 0.0
    %1024 = vmatpush2.msra.mxu0 0.0
    %1025 = vmatprep.subr.mxu0 0.0
    %1026 = vmatpush2.msra.mxu0 0.0
    %1027 = vmatprep.subr.mxu0 0.0
    %1028 = vmatpush2.msra.mxu0 0.0
    %1029 = vmatprep.subr.mxu0 0.0
    %1030 = vmatpush2.msra.mxu0 0.0
    %1031 = vmatprep.subr.mxu0 0.0
    %1032 = vmatpush2.msra.mxu0 0.0
    %1033 = vmatprep.subr.mxu0 0.0
    %1034 = vmatpush2.msra.mxu0 0.0
    %1035 = vmatprep.subr.mxu0 0.0
    %1036 = vmatpush2.msra.mxu0 0.0
    %1037 = vmatprep.subr.mxu0 0.0
    %1038 = vmatpush2.msra.mxu0 0.0
    %1039 = vmatprep.mubr.f32.mxu0 0.0
    %1040 = vmatmul.mubr.f32.gmra.mxu0 %v833
    %v1041 = vpop.f32.mrf.mxu0
    %v1042 = vadd.f32 %v803, %v1041
    %v1043 = vpop.f32.mrf.mxu0
    %1044 = vdwg.mxu0
    %1045 = vmatprep.subr.mxu0 0.0
    %1046 = vmatpush1.msra.mxu0 0.0
    %1047 = vmatprep.subr.mxu0 0.0
    %1048 = vmatpush1.msra.mxu0 0.0
    %1049 = vmatprep.subr.mxu0 0.0
    %1050 = vmatpush1.msra.mxu0 0.0
    %1051 = vmatprep.subr.mxu0 0.0
    %1052 = vmatpush1.msra.mxu0 0.0
    %1053 = vmatprep.subr.mxu0 0.0
    %1054 = vmatpush1.msra.mxu0 0.0
    %1055 = vmatprep.subr.mxu0 0.0
    %1056 = vmatpush1.msra.mxu0 0.0
    %1057 = vmatprep.subr.mxu0 0.0
    %1058 = vmatpush1.msra.mxu0 0.0
    %1059 = vmatprep.subr.mxu0 0.0
    %1060 = vmatpush1.msra.mxu0 0.0
    %1061 = vmatprep.subr.mxu0 0.0
    %1062 = vmatpush1.msra.mxu0 0.0
    %1063 = vmatprep.subr.mxu0 0.0
    %1064 = vmatpush1.msra.mxu0 0.0
    %1065 = vmatprep.subr.mxu0 0.0
    %1066 = vmatpush1.msra.mxu0 0.0
    %1067 = vmatprep.subr.mxu0 0.0
    %1068 = vmatpush1.msra.mxu0 0.0
    %1069 = vmatprep.subr.mxu0 0.0
    %1070 = vmatpush1.msra.mxu0 %v759
    %1071 = vmatprep.subr.mxu0 0.0
    %1072 = vmatpush1.msra.mxu0 %v758
    %1073 = vmatprep.subr.mxu0 0.0
    %1074 = vmatpush1.msra.mxu0 %v757
    %1075 = vmatprep.subr.mxu0 0.0
    %1076 = vmatpush1.msra.mxu0 %v756
    %1077 = vmatprep.subr.mxu0 0.0
    %1078 = vmatpush2.msra.mxu0 0.0
    %1079 = vmatprep.subr.mxu0 0.0
    %1080 = vmatpush2.msra.mxu0 0.0
    %1081 = vmatprep.subr.mxu0 0.0
    %1082 = vmatpush2.msra.mxu0 0.0
    %1083 = vmatprep.subr.mxu0 0.0
    %1084 = vmatpush2.msra.mxu0 0.0
    %1085 = vmatprep.subr.mxu0 0.0
    %1086 = vmatpush2.msra.mxu0 0.0
    %1087 = vmatprep.subr.mxu0 0.0
    %1088 = vmatpush2.msra.mxu0 0.0
    %1089 = vmatprep.subr.mxu0 0.0
    %1090 = vmatpush2.msra.mxu0 0.0
    %1091 = vmatprep.subr.mxu0 0.0
    %1092 = vmatpush2.msra.mxu0 0.0
    %1093 = vmatprep.subr.mxu0 0.0
    %1094 = vmatpush2.msra.mxu0 0.0
    %1095 = vmatprep.subr.mxu0 0.0
    %1096 = vmatpush2.msra.mxu0 0.0
    %1097 = vmatprep.subr.mxu0 0.0
    %1098 = vmatpush2.msra.mxu0 0.0
    %1099 = vmatprep.subr.mxu0 0.0
    %1100 = vmatpush2.msra.mxu0 0.0
    %1101 = vmatprep.subr.mxu0 0.0
    %1102 = vmatpush2.msra.mxu0 0.0
    %1103 = vmatprep.subr.mxu0 0.0
    %1104 = vmatpush2.msra.mxu0 0.0
    %1105 = vmatprep.subr.mxu0 0.0
    %1106 = vmatpush2.msra.mxu0 0.0
    %1107 = vmatprep.subr.mxu0 0.0
    %1108 = vmatpush2.msra.mxu0 0.0
    %1109 = vmatprep.mubr.f32.mxu0 0.0
    %1110 = vmatmul.mubr.f32.gmra.mxu0 %v833
    %v1111 = vpop.f32.mrf.mxu0
    %v1112 = vadd.f32 %v807, %v1111
    %v1113 = vpop.f32.mrf.mxu0
    %1114 = vdwg.mxu0
    %v1116 = vsel %vm177, %v88, 0
    %1118 = vmatprep.subr.mxu0 0.0
    %1119 = vmatpush1.msra.mxu0 0.0
    %1120 = vmatprep.subr.mxu0 0.0
    %1121 = vmatpush1.msra.mxu0 0.0
    %1122 = vmatprep.subr.mxu0 0.0
    %1123 = vmatpush1.msra.mxu0 0.0
    %1124 = vmatprep.subr.mxu0 0.0
    %1125 = vmatpush1.msra.mxu0 0.0
    %1126 = vmatprep.subr.mxu0 0.0
    %1127 = vmatpush1.msra.mxu0 0.0
    %1128 = vmatprep.subr.mxu0 0.0
    %1129 = vmatpush1.msra.mxu0 0.0
    %1130 = vmatprep.subr.mxu0 0.0
    %1131 = vmatpush1.msra.mxu0 0.0
    %1132 = vmatprep.subr.mxu0 0.0
    %1133 = vmatpush1.msra.mxu0 0.0
    %1134 = vmatprep.subr.mxu0 0.0
    %1135 = vmatpush1.msra.mxu0 0.0
    %1136 = vmatprep.subr.mxu0 0.0
    %1137 = vmatpush1.msra.mxu0 0.0
    %1138 = vmatprep.subr.mxu0 0.0
    %1139 = vmatpush1.msra.mxu0 0.0
    %1140 = vmatprep.subr.mxu0 0.0
    %1141 = vmatpush1.msra.mxu0 0.0
    %1142 = vmatprep.subr.mxu0 0.0
    %1143 = vmatpush1.msra.mxu0 %v763
    %1144 = vmatprep.subr.mxu0 0.0
    %1145 = vmatpush1.msra.mxu0 %v762
    %1146 = vmatprep.subr.mxu0 0.0
    %1147 = vmatpush1.msra.mxu0 %v761
    %1148 = vmatprep.subr.mxu0 0.0
    %1149 = vmatpush1.msra.mxu0 %v760
    %1150 = vmatprep.subr.mxu0 0.0
    %1151 = vmatpush2.msra.mxu0 0.0
    %1152 = vmatprep.subr.mxu0 0.0
    %1153 = vmatpush2.msra.mxu0 0.0
    %1154 = vmatprep.subr.mxu0 0.0
    %1155 = vmatpush2.msra.mxu0 0.0
    %1156 = vmatprep.subr.mxu0 0.0
    %1157 = vmatpush2.msra.mxu0 0.0
    %1158 = vmatprep.subr.mxu0 0.0
    %1159 = vmatpush2.msra.mxu0 0.0
    %1160 = vmatprep.subr.mxu0 0.0
    %1161 = vmatpush2.msra.mxu0 0.0
    %1162 = vmatprep.subr.mxu0 0.0
    %1163 = vmatpush2.msra.mxu0 0.0
    %1164 = vmatprep.subr.mxu0 0.0
    %1165 = vmatpush2.msra.mxu0 0.0
    %1166 = vmatprep.subr.mxu0 0.0
    %1167 = vmatpush2.msra.mxu0 0.0
    %1168 = vmatprep.subr.mxu0 0.0
    %1169 = vmatpush2.msra.mxu0 0.0
    %1170 = vmatprep.subr.mxu0 0.0
    %1171 = vmatpush2.msra.mxu0 0.0
    %1172 = vmatprep.subr.mxu0 0.0
    %1173 = vmatpush2.msra.mxu0 0.0
    %1174 = vmatprep.subr.mxu0 0.0
    %1175 = vmatpush2.msra.mxu0 0.0
    %1176 = vmatprep.subr.mxu0 0.0
    %1177 = vmatpush2.msra.mxu0 0.0
    %1178 = vmatprep.subr.mxu0 0.0
    %1179 = vmatpush2.msra.mxu0 0.0
    %1180 = vmatprep.subr.mxu0 0.0
    %1181 = vmatpush2.msra.mxu0 0.0
    %1182 = vmatprep.mubr.f32.mxu0 0.0
    %1183 = vmatmul.mubr.f32.gmra.mxu0 %v1116
    %v1184 = vpop.f32.mrf.mxu0
    %v1185 = vadd.f32 %v811, %v1184
    %v1186 = vpop.f32.mrf.mxu0
    %1187 = vdwg.mxu0
    %1188 = vmatprep.subr.mxu0 0.0
    %1189 = vmatpush1.msra.mxu0 0.0
    %1190 = vmatprep.subr.mxu0 0.0
    %1191 = vmatpush1.msra.mxu0 0.0
    %1192 = vmatprep.subr.mxu0 0.0
    %1193 = vmatpush1.msra.mxu0 0.0
    %1194 = vmatprep.subr.mxu0 0.0
    %1195 = vmatpush1.msra.mxu0 0.0
    %1196 = vmatprep.subr.mxu0 0.0
    %1197 = vmatpush1.msra.mxu0 0.0
    %1198 = vmatprep.subr.mxu0 0.0
    %1199 = vmatpush1.msra.mxu0 0.0
    %1200 = vmatprep.subr.mxu0 0.0
    %1201 = vmatpush1.msra.mxu0 0.0
    %1202 = vmatprep.subr.mxu0 0.0
    %1203 = vmatpush1.msra.mxu0 0.0
    %1204 = vmatprep.subr.mxu0 0.0
    %1205 = vmatpush1.msra.mxu0 0.0
    %1206 = vmatprep.subr.mxu0 0.0
    %1207 = vmatpush1.msra.mxu0 0.0
    %1208 = vmatprep.subr.mxu0 0.0
    %1209 = vmatpush1.msra.mxu0 0.0
    %1210 = vmatprep.subr.mxu0 0.0
    %1211 = vmatpush1.msra.mxu0 0.0
    %1212 = vmatprep.subr.mxu0 0.0
    %1213 = vmatpush1.msra.mxu0 %v767
    %1214 = vmatprep.subr.mxu0 0.0
    %1215 = vmatpush1.msra.mxu0 %v766
    %1216 = vmatprep.subr.mxu0 0.0
    %1217 = vmatpush1.msra.mxu0 %v765
    %1218 = vmatprep.subr.mxu0 0.0
    %1219 = vmatpush1.msra.mxu0 %v764
    %1220 = vmatprep.subr.mxu0 0.0
    %1221 = vmatpush2.msra.mxu0 0.0
    %1222 = vmatprep.subr.mxu0 0.0
    %1223 = vmatpush2.msra.mxu0 0.0
    %1224 = vmatprep.subr.mxu0 0.0
    %1225 = vmatpush2.msra.mxu0 0.0
    %1226 = vmatprep.subr.mxu0 0.0
    %1227 = vmatpush2.msra.mxu0 0.0
    %1228 = vmatprep.subr.mxu0 0.0
    %1229 = vmatpush2.msra.mxu0 0.0
    %1230 = vmatprep.subr.mxu0 0.0
    %1231 = vmatpush2.msra.mxu0 0.0
    %1232 = vmatprep.subr.mxu0 0.0
    %1233 = vmatpush2.msra.mxu0 0.0
    %1234 = vmatprep.subr.mxu0 0.0
    %1235 = vmatpush2.msra.mxu0 0.0
    %1236 = vmatprep.subr.mxu0 0.0
    %1237 = vmatpush2.msra.mxu0 0.0
    %1238 = vmatprep.subr.mxu0 0.0
    %1239 = vmatpush2.msra.mxu0 0.0
    %1240 = vmatprep.subr.mxu0 0.0
    %1241 = vmatpush2.msra.mxu0 0.0
    %1242 = vmatprep.subr.mxu0 0.0
    %1243 = vmatpush2.msra.mxu0 0.0
    %1244 = vmatprep.subr.mxu0 0.0
    %1245 = vmatpush2.msra.mxu0 0.0
    %1246 = vmatprep.subr.mxu0 0.0
    %1247 = vmatpush2.msra.mxu0 0.0
    %1248 = vmatprep.subr.mxu0 0.0
    %1249 = vmatpush2.msra.mxu0 0.0
    %1250 = vmatprep.subr.mxu0 0.0
    %1251 = vmatpush2.msra.mxu0 0.0
    %1252 = vmatprep.mubr.f32.mxu0 0.0
    %1253 = vmatmul.mubr.f32.gmra.mxu0 %v1116
    %v1254 = vpop.f32.mrf.mxu0
    %v1255 = vadd.f32 %v815, %v1254
    %v1256 = vpop.f32.mrf.mxu0
    %1257 = vdwg.mxu0
    %1258 = vmatprep.subr.mxu0 0.0
    %1259 = vmatpush1.msra.mxu0 0.0
    %1260 = vmatprep.subr.mxu0 0.0
    %1261 = vmatpush1.msra.mxu0 0.0
    %1262 = vmatprep.subr.mxu0 0.0
    %1263 = vmatpush1.msra.mxu0 0.0
    %1264 = vmatprep.subr.mxu0 0.0
    %1265 = vmatpush1.msra.mxu0 0.0
    %1266 = vmatprep.subr.mxu0 0.0
    %1267 = vmatpush1.msra.mxu0 0.0
    %1268 = vmatprep.subr.mxu0 0.0
    %1269 = vmatpush1.msra.mxu0 0.0
    %1270 = vmatprep.subr.mxu0 0.0
    %1271 = vmatpush1.msra.mxu0 0.0
    %1272 = vmatprep.subr.mxu0 0.0
    %1273 = vmatpush1.msra.mxu0 0.0
    %1274 = vmatprep.subr.mxu0 0.0
    %1275 = vmatpush1.msra.mxu0 0.0
    %1276 = vmatprep.subr.mxu0 0.0
    %1277 = vmatpush1.msra.mxu0 0.0
    %1278 = vmatprep.subr.mxu0 0.0
    %1279 = vmatpush1.msra.mxu0 0.0
    %1280 = vmatprep.subr.mxu0 0.0
    %1281 = vmatpush1.msra.mxu0 0.0
    %1282 = vmatprep.subr.mxu0 0.0
    %1283 = vmatpush1.msra.mxu0 %v771
    %1284 = vmatprep.subr.mxu0 0.0
    %1285 = vmatpush1.msra.mxu0 %v770
    %1286 = vmatprep.subr.mxu0 0.0
    %1287 = vmatpush1.msra.mxu0 %v769
    %1288 = vmatprep.subr.mxu0 0.0
    %1289 = vmatpush1.msra.mxu0 %v768
    %1290 = vmatprep.subr.mxu0 0.0
    %1291 = vmatpush2.msra.mxu0 0.0
    %1292 = vmatprep.subr.mxu0 0.0
    %1293 = vmatpush2.msra.mxu0 0.0
    %1294 = vmatprep.subr.mxu0 0.0
    %1295 = vmatpush2.msra.mxu0 0.0
    %1296 = vmatprep.subr.mxu0 0.0
    %1297 = vmatpush2.msra.mxu0 0.0
    %1298 = vmatprep.subr.mxu0 0.0
    %1299 = vmatpush2.msra.mxu0 0.0
    %1300 = vmatprep.subr.mxu0 0.0
    %1301 = vmatpush2.msra.mxu0 0.0
    %1302 = vmatprep.subr.mxu0 0.0
    %1303 = vmatpush2.msra.mxu0 0.0
    %1304 = vmatprep.subr.mxu0 0.0
    %1305 = vmatpush2.msra.mxu0 0.0
    %1306 = vmatprep.subr.mxu0 0.0
    %1307 = vmatpush2.msra.mxu0 0.0
    %1308 = vmatprep.subr.mxu0 0.0
    %1309 = vmatpush2.msra.mxu0 0.0
    %1310 = vmatprep.subr.mxu0 0.0
    %1311 = vmatpush2.msra.mxu0 0.0
    %1312 = vmatprep.subr.mxu0 0.0
    %1313 = vmatpush2.msra.mxu0 0.0
    %1314 = vmatprep.subr.mxu0 0.0
    %1315 = vmatpush2.msra.mxu0 0.0
    %1316 = vmatprep.subr.mxu0 0.0
    %1317 = vmatpush2.msra.mxu0 0.0
    %1318 = vmatprep.subr.mxu0 0.0
    %1319 = vmatpush2.msra.mxu0 0.0
    %1320 = vmatprep.subr.mxu0 0.0
    %1321 = vmatpush2.msra.mxu0 0.0
    %1322 = vmatprep.mubr.f32.mxu0 0.0
    %1323 = vmatmul.mubr.f32.gmra.mxu0 %v1116
    %v1324 = vpop.f32.mrf.mxu0
    %v1325 = vadd.f32 %v819, %v1324
    %v1326 = vpop.f32.mrf.mxu0
    %1327 = vdwg.mxu0
    %1328 = vmatprep.subr.mxu0 0.0
    %1329 = vmatpush1.msra.mxu0 0.0
    %1330 = vmatprep.subr.mxu0 0.0
    %1331 = vmatpush1.msra.mxu0 0.0
    %1332 = vmatprep.subr.mxu0 0.0
    %1333 = vmatpush1.msra.mxu0 0.0
    %1334 = vmatprep.subr.mxu0 0.0
    %1335 = vmatpush1.msra.mxu0 0.0
    %1336 = vmatprep.subr.mxu0 0.0
    %1337 = vmatpush1.msra.mxu0 0.0
    %1338 = vmatprep.subr.mxu0 0.0
    %1339 = vmatpush1.msra.mxu0 0.0
    %1340 = vmatprep.subr.mxu0 0.0
    %1341 = vmatpush1.msra.mxu0 0.0
    %1342 = vmatprep.subr.mxu0 0.0
    %1343 = vmatpush1.msra.mxu0 0.0
    %1344 = vmatprep.subr.mxu0 0.0
    %1345 = vmatpush1.msra.mxu0 0.0
    %1346 = vmatprep.subr.mxu0 0.0
    %1347 = vmatpush1.msra.mxu0 0.0
    %1348 = vmatprep.subr.mxu0 0.0
    %1349 = vmatpush1.msra.mxu0 0.0
    %1350 = vmatprep.subr.mxu0 0.0
    %1351 = vmatpush1.msra.mxu0 0.0
    %1352 = vmatprep.subr.mxu0 0.0
    %1353 = vmatpush1.msra.mxu0 %v775
    %1354 = vmatprep.subr.mxu0 0.0
    %1355 = vmatpush1.msra.mxu0 %v774
    %1356 = vmatprep.subr.mxu0 0.0
    %1357 = vmatpush1.msra.mxu0 %v773
    %1358 = vmatprep.subr.mxu0 0.0
    %1359 = vmatpush1.msra.mxu0 %v772
    %1360 = vmatprep.subr.mxu0 0.0
    %1361 = vmatpush2.msra.mxu0 0.0
    %1362 = vmatprep.subr.mxu0 0.0
    %1363 = vmatpush2.msra.mxu0 0.0
    %1364 = vmatprep.subr.mxu0 0.0
    %1365 = vmatpush2.msra.mxu0 0.0
    %1366 = vmatprep.subr.mxu0 0.0
    %1367 = vmatpush2.msra.mxu0 0.0
    %1368 = vmatprep.subr.mxu0 0.0
    %1369 = vmatpush2.msra.mxu0 0.0
    %1370 = vmatprep.subr.mxu0 0.0
    %1371 = vmatpush2.msra.mxu0 0.0
    %1372 = vmatprep.subr.mxu0 0.0
    %1373 = vmatpush2.msra.mxu0 0.0
    %1374 = vmatprep.subr.mxu0 0.0
    %1375 = vmatpush2.msra.mxu0 0.0
    %1376 = vmatprep.subr.mxu0 0.0
    %1377 = vmatpush2.msra.mxu0 0.0
    %1378 = vmatprep.subr.mxu0 0.0
    %1379 = vmatpush2.msra.mxu0 0.0
    %1380 = vmatprep.subr.mxu0 0.0
    %1381 = vmatpush2.msra.mxu0 0.0
    %1382 = vmatprep.subr.mxu0 0.0
    %1383 = vmatpush2.msra.mxu0 0.0
    %1384 = vmatprep.subr.mxu0 0.0
    %1385 = vmatpush2.msra.mxu0 0.0
    %1386 = vmatprep.subr.mxu0 0.0
    %1387 = vmatpush2.msra.mxu0 0.0
    %1388 = vmatprep.subr.mxu0 0.0
    %1389 = vmatpush2.msra.mxu0 0.0
    %1390 = vmatprep.subr.mxu0 0.0
    %1391 = vmatpush2.msra.mxu0 0.0
    %1392 = vmatprep.mubr.f32.mxu0 0.0
    %1393 = vmatmul.mubr.f32.gmra.mxu0 %v1116
    %v1394 = vpop.f32.mrf.mxu0
    %v1395 = vadd.f32 %v823, %v1394
    %v1396 = vpop.f32.mrf.mxu0
    %1397 = vdwg.mxu0
    %vm1398 = vcmask 130048
    %v1400 = vsel %vm1398, %v248, 0
    %v1403 = vsel %vm1398, %v902, 0
    %1405 = vmatprep.subr.mxu0 0.0
    %1406 = vmatpush1.xpose.msra.mxu0 0.0
    %1407 = vmatprep.subr.mxu0 0.0
    %1408 = vmatpush1.xpose.msra.mxu0 0.0
    %1409 = vmatprep.subr.mxu0 0.0
    %1410 = vmatpush1.xpose.msra.mxu0 0.0
    %1411 = vmatprep.subr.mxu0 0.0
    %1412 = vmatpush1.xpose.msra.mxu0 0.0
    %1413 = vmatprep.subr.mxu0 0.0
    %1414 = vmatpush1.xpose.msra.mxu0 0.0
    %1415 = vmatprep.subr.mxu0 0.0
    %1416 = vmatpush1.xpose.msra.mxu0 0.0
    %1417 = vmatprep.subr.mxu0 0.0
    %1418 = vmatpush1.xpose.msra.mxu0 0.0
    %1419 = vmatprep.subr.mxu0 0.0
    %1420 = vmatpush1.xpose.msra.mxu0 0.0
    %1421 = vmatprep.subr.mxu0 0.0
    %1422 = vmatpush1.xpose.msra.mxu0 0.0
    %1423 = vmatprep.subr.mxu0 0.0
    %1424 = vmatpush1.xpose.msra.mxu0 0.0
    %1425 = vmatprep.subr.mxu0 0.0
    %1426 = vmatpush1.xpose.msra.mxu0 0.0
    %1427 = vmatprep.subr.mxu0 0.0
    %1428 = vmatpush1.xpose.msra.mxu0 0.0
    %1429 = vmatprep.subr.mxu0 0.0
    %1430 = vmatpush1.xpose.msra.mxu0 0.0
    %1431 = vmatprep.subr.mxu0 0.0
    %1432 = vmatpush1.xpose.msra.mxu0 0.0
    %1433 = vmatprep.subr.mxu0 0.0
    %1434 = vmatpush1.xpose.msra.mxu0 0.0
    %1435 = vmatprep.subr.mxu0 0.0
    %1436 = vmatpush1.xpose.msra.mxu0 %v1403
    %1437 = vmatprep.subr.mxu0 0.0
    %1438 = vmatpush2.xpose.msra.mxu0 0.0
    %1439 = vmatprep.subr.mxu0 0.0
    %1440 = vmatpush2.xpose.msra.mxu0 0.0
    %1441 = vmatprep.subr.mxu0 0.0
    %1442 = vmatpush2.xpose.msra.mxu0 0.0
    %1443 = vmatprep.subr.mxu0 0.0
    %1444 = vmatpush2.xpose.msra.mxu0 0.0
    %1445 = vmatprep.subr.mxu0 0.0
    %1446 = vmatpush2.xpose.msra.mxu0 0.0
    %1447 = vmatprep.subr.mxu0 0.0
    %1448 = vmatpush2.xpose.msra.mxu0 0.0
    %1449 = vmatprep.subr.mxu0 0.0
    %1450 = vmatpush2.xpose.msra.mxu0 0.0
    %1451 = vmatprep.subr.mxu0 0.0
    %1452 = vmatpush2.xpose.msra.mxu0 0.0
    %1453 = vmatprep.subr.mxu0 0.0
    %1454 = vmatpush2.xpose.msra.mxu0 0.0
    %1455 = vmatprep.subr.mxu0 0.0
    %1456 = vmatpush2.xpose.msra.mxu0 0.0
    %1457 = vmatprep.subr.mxu0 0.0
    %1458 = vmatpush2.xpose.msra.mxu0 0.0
    %1459 = vmatprep.subr.mxu0 0.0
    %1460 = vmatpush2.xpose.msra.mxu0 0.0
    %1461 = vmatprep.subr.mxu0 0.0
    %1462 = vmatpush2.xpose.msra.mxu0 0.0
    %1463 = vmatprep.subr.mxu0 0.0
    %1464 = vmatpush2.xpose.msra.mxu0 0.0
    %1465 = vmatprep.subr.mxu0 0.0
    %1466 = vmatpush2.xpose.msra.mxu0 0.0
    %1467 = vmatprep.subr.mxu0 0.0
    %1468 = vmatpush2.xpose.msra.mxu0 0.0
    %1469 = vmatprep.mubr.f32.mxu0 0.0
    %1470 = vmatmul.mubr.f32.gmra.mxu0 %v1400
    %v1471 = vpop.f32.mrf.mxu0
    %v1472 = vadd.f32 0.0, %v1471
    %v1473 = vpop.f32.mrf.mxu0
    %1474 = vdwg.mxu0
    %v1476 = vsel %vm1398, %v318, 0
    %v1479 = vsel %vm1398, %v972, 0
    %1481 = vmatprep.subr.mxu0 0.0
    %1482 = vmatpush1.xpose.msra.mxu0 0.0
    %1483 = vmatprep.subr.mxu0 0.0
    %1484 = vmatpush1.xpose.msra.mxu0 0.0
    %1485 = vmatprep.subr.mxu0 0.0
    %1486 = vmatpush1.xpose.msra.mxu0 0.0
    %1487 = vmatprep.subr.mxu0 0.0
    %1488 = vmatpush1.xpose.msra.mxu0 0.0
    %1489 = vmatprep.subr.mxu0 0.0
    %1490 = vmatpush1.xpose.msra.mxu0 0.0
    %1491 = vmatprep.subr.mxu0 0.0
    %1492 = vmatpush1.xpose.msra.mxu0 0.0
    %1493 = vmatprep.subr.mxu0 0.0
    %1494 = vmatpush1.xpose.msra.mxu0 0.0
    %1495 = vmatprep.subr.mxu0 0.0
    %1496 = vmatpush1.xpose.msra.mxu0 0.0
    %1497 = vmatprep.subr.mxu0 0.0
    %1498 = vmatpush1.xpose.msra.mxu0 0.0
    %1499 = vmatprep.subr.mxu0 0.0
    %1500 = vmatpush1.xpose.msra.mxu0 0.0
    %1501 = vmatprep.subr.mxu0 0.0
    %1502 = vmatpush1.xpose.msra.mxu0 0.0
    %1503 = vmatprep.subr.mxu0 0.0
    %1504 = vmatpush1.xpose.msra.mxu0 0.0
    %1505 = vmatprep.subr.mxu0 0.0
    %1506 = vmatpush1.xpose.msra.mxu0 0.0
    %1507 = vmatprep.subr.mxu0 0.0
    %1508 = vmatpush1.xpose.msra.mxu0 0.0
    %1509 = vmatprep.subr.mxu0 0.0
    %1510 = vmatpush1.xpose.msra.mxu0 0.0
    %1511 = vmatprep.subr.mxu0 0.0
    %1512 = vmatpush1.xpose.msra.mxu0 %v1479
    %1513 = vmatprep.subr.mxu0 0.0
    %1514 = vmatpush2.xpose.msra.mxu0 0.0
    %1515 = vmatprep.subr.mxu0 0.0
    %1516 = vmatpush2.xpose.msra.mxu0 0.0
    %1517 = vmatprep.subr.mxu0 0.0
    %1518 = vmatpush2.xpose.msra.mxu0 0.0
    %1519 = vmatprep.subr.mxu0 0.0
    %1520 = vmatpush2.xpose.msra.mxu0 0.0
    %1521 = vmatprep.subr.mxu0 0.0
    %1522 = vmatpush2.xpose.msra.mxu0 0.0
    %1523 = vmatprep.subr.mxu0 0.0
    %1524 = vmatpush2.xpose.msra.mxu0 0.0
    %1525 = vmatprep.subr.mxu0 0.0
    %1526 = vmatpush2.xpose.msra.mxu0 0.0
    %1527 = vmatprep.subr.mxu0 0.0
    %1528 = vmatpush2.xpose.msra.mxu0 0.0
    %1529 = vmatprep.subr.mxu0 0.0
    %1530 = vmatpush2.xpose.msra.mxu0 0.0
    %1531 = vmatprep.subr.mxu0 0.0
    %1532 = vmatpush2.xpose.msra.mxu0 0.0
    %1533 = vmatprep.subr.mxu0 0.0
    %1534 = vmatpush2.xpose.msra.mxu0 0.0
    %1535 = vmatprep.subr.mxu0 0.0
    %1536 = vmatpush2.xpose.msra.mxu0 0.0
    %1537 = vmatprep.subr.mxu0 0.0
    %1538 = vmatpush2.xpose.msra.mxu0 0.0
    %1539 = vmatprep.subr.mxu0 0.0
    %1540 = vmatpush2.xpose.msra.mxu0 0.0
    %1541 = vmatprep.subr.mxu0 0.0
    %1542 = vmatpush2.xpose.msra.mxu0 0.0
    %1543 = vmatprep.subr.mxu0 0.0
    %1544 = vmatpush2.xpose.msra.mxu0 0.0
    %1545 = vmatprep.mubr.f32.mxu0 0.0
    %1546 = vmatmul.mubr.f32.gmra.mxu0 %v1476
    %v1547 = vpop.f32.mrf.mxu0
    %v1548 = vadd.f32 0.0, %v1547
    %v1549 = vpop.f32.mrf.mxu0
    %1550 = vdwg.mxu0
    %v1552 = vsel %vm1398, %v388, 0
    %v1555 = vsel %vm1398, %v1042, 0
    %1557 = vmatprep.subr.mxu0 0.0
    %1558 = vmatpush1.xpose.msra.mxu0 0.0
    %1559 = vmatprep.subr.mxu0 0.0
    %1560 = vmatpush1.xpose.msra.mxu0 0.0
    %1561 = vmatprep.subr.mxu0 0.0
    %1562 = vmatpush1.xpose.msra.mxu0 0.0
    %1563 = vmatprep.subr.mxu0 0.0
    %1564 = vmatpush1.xpose.msra.mxu0 0.0
    %1565 = vmatprep.subr.mxu0 0.0
    %1566 = vmatpush1.xpose.msra.mxu0 0.0
    %1567 = vmatprep.subr.mxu0 0.0
    %1568 = vmatpush1.xpose.msra.mxu0 0.0
    %1569 = vmatprep.subr.mxu0 0.0
    %1570 = vmatpush1.xpose.msra.mxu0 0.0
    %1571 = vmatprep.subr.mxu0 0.0
    %1572 = vmatpush1.xpose.msra.mxu0 0.0
    %1573 = vmatprep.subr.mxu0 0.0
    %1574 = vmatpush1.xpose.msra.mxu0 0.0
    %1575 = vmatprep.subr.mxu0 0.0
    %1576 = vmatpush1.xpose.msra.mxu0 0.0
    %1577 = vmatprep.subr.mxu0 0.0
    %1578 = vmatpush1.xpose.msra.mxu0 0.0
    %1579 = vmatprep.subr.mxu0 0.0
    %1580 = vmatpush1.xpose.msra.mxu0 0.0
    %1581 = vmatprep.subr.mxu0 0.0
    %1582 = vmatpush1.xpose.msra.mxu0 0.0
    %1583 = vmatprep.subr.mxu0 0.0
    %1584 = vmatpush1.xpose.msra.mxu0 0.0
    %1585 = vmatprep.subr.mxu0 0.0
    %1586 = vmatpush1.xpose.msra.mxu0 0.0
    %1587 = vmatprep.subr.mxu0 0.0
    %1588 = vmatpush1.xpose.msra.mxu0 %v1555
    %1589 = vmatprep.subr.mxu0 0.0
    %1590 = vmatpush2.xpose.msra.mxu0 0.0
    %1591 = vmatprep.subr.mxu0 0.0
    %1592 = vmatpush2.xpose.msra.mxu0 0.0
    %1593 = vmatprep.subr.mxu0 0.0
    %1594 = vmatpush2.xpose.msra.mxu0 0.0
    %1595 = vmatprep.subr.mxu0 0.0
    %1596 = vmatpush2.xpose.msra.mxu0 0.0
    %1597 = vmatprep.subr.mxu0 0.0
    %1598 = vmatpush2.xpose.msra.mxu0 0.0
    %1599 = vmatprep.subr.mxu0 0.0
    %1600 = vmatpush2.xpose.msra.mxu0 0.0
    %1601 = vmatprep.subr.mxu0 0.0
    %1602 = vmatpush2.xpose.msra.mxu0 0.0
    %1603 = vmatprep.subr.mxu0 0.0
    %1604 = vmatpush2.xpose.msra.mxu0 0.0
    %1605 = vmatprep.subr.mxu0 0.0
    %1606 = vmatpush2.xpose.msra.mxu0 0.0
    %1607 = vmatprep.subr.mxu0 0.0
    %1608 = vmatpush2.xpose.msra.mxu0 0.0
    %1609 = vmatprep.subr.mxu0 0.0
    %1610 = vmatpush2.xpose.msra.mxu0 0.0
    %1611 = vmatprep.subr.mxu0 0.0
    %1612 = vmatpush2.xpose.msra.mxu0 0.0
    %1613 = vmatprep.subr.mxu0 0.0
    %1614 = vmatpush2.xpose.msra.mxu0 0.0
    %1615 = vmatprep.subr.mxu0 0.0
    %1616 = vmatpush2.xpose.msra.mxu0 0.0
    %1617 = vmatprep.subr.mxu0 0.0
    %1618 = vmatpush2.xpose.msra.mxu0 0.0
    %1619 = vmatprep.subr.mxu0 0.0
    %1620 = vmatpush2.xpose.msra.mxu0 0.0
    %1621 = vmatprep.mubr.f32.mxu0 0.0
    %1622 = vmatmul.mubr.f32.gmra.mxu0 %v1552
    %v1623 = vpop.f32.mrf.mxu0
    %v1624 = vadd.f32 0.0, %v1623
    %v1625 = vpop.f32.mrf.mxu0
    %1626 = vdwg.mxu0
    %v1628 = vsel %vm1398, %v458, 0
    %v1631 = vsel %vm1398, %v1112, 0
    %1633 = vmatprep.subr.mxu0 0.0
    %1634 = vmatpush1.xpose.msra.mxu0 0.0
    %1635 = vmatprep.subr.mxu0 0.0
    %1636 = vmatpush1.xpose.msra.mxu0 0.0
    %1637 = vmatprep.subr.mxu0 0.0
    %1638 = vmatpush1.xpose.msra.mxu0 0.0
    %1639 = vmatprep.subr.mxu0 0.0
    %1640 = vmatpush1.xpose.msra.mxu0 0.0
    %1641 = vmatprep.subr.mxu0 0.0
    %1642 = vmatpush1.xpose.msra.mxu0 0.0
    %1643 = vmatprep.subr.mxu0 0.0
    %1644 = vmatpush1.xpose.msra.mxu0 0.0
    %1645 = vmatprep.subr.mxu0 0.0
    %1646 = vmatpush1.xpose.msra.mxu0 0.0
    %1647 = vmatprep.subr.mxu0 0.0
    %1648 = vmatpush1.xpose.msra.mxu0 0.0
    %1649 = vmatprep.subr.mxu0 0.0
    %1650 = vmatpush1.xpose.msra.mxu0 0.0
    %1651 = vmatprep.subr.mxu0 0.0
    %1652 = vmatpush1.xpose.msra.mxu0 0.0
    %1653 = vmatprep.subr.mxu0 0.0
    %1654 = vmatpush1.xpose.msra.mxu0 0.0
    %1655 = vmatprep.subr.mxu0 0.0
    %1656 = vmatpush1.xpose.msra.mxu0 0.0
    %1657 = vmatprep.subr.mxu0 0.0
    %1658 = vmatpush1.xpose.msra.mxu0 0.0
    %1659 = vmatprep.subr.mxu0 0.0
    %1660 = vmatpush1.xpose.msra.mxu0 0.0
    %1661 = vmatprep.subr.mxu0 0.0
    %1662 = vmatpush1.xpose.msra.mxu0 0.0
    %1663 = vmatprep.subr.mxu0 0.0
    %1664 = vmatpush1.xpose.msra.mxu0 %v1631
    %1665 = vmatprep.subr.mxu0 0.0
    %1666 = vmatpush2.xpose.msra.mxu0 0.0
    %1667 = vmatprep.subr.mxu0 0.0
    %1668 = vmatpush2.xpose.msra.mxu0 0.0
    %1669 = vmatprep.subr.mxu0 0.0
    %1670 = vmatpush2.xpose.msra.mxu0 0.0
    %1671 = vmatprep.subr.mxu0 0.0
    %1672 = vmatpush2.xpose.msra.mxu0 0.0
    %1673 = vmatprep.subr.mxu0 0.0
    %1674 = vmatpush2.xpose.msra.mxu0 0.0
    %1675 = vmatprep.subr.mxu0 0.0
    %1676 = vmatpush2.xpose.msra.mxu0 0.0
    %1677 = vmatprep.subr.mxu0 0.0
    %1678 = vmatpush2.xpose.msra.mxu0 0.0
    %1679 = vmatprep.subr.mxu0 0.0
    %1680 = vmatpush2.xpose.msra.mxu0 0.0
    %1681 = vmatprep.subr.mxu0 0.0
    %1682 = vmatpush2.xpose.msra.mxu0 0.0
    %1683 = vmatprep.subr.mxu0 0.0
    %1684 = vmatpush2.xpose.msra.mxu0 0.0
    %1685 = vmatprep.subr.mxu0 0.0
    %1686 = vmatpush2.xpose.msra.mxu0 0.0
    %1687 = vmatprep.subr.mxu0 0.0
    %1688 = vmatpush2.xpose.msra.mxu0 0.0
    %1689 = vmatprep.subr.mxu0 0.0
    %1690 = vmatpush2.xpose.msra.mxu0 0.0
    %1691 = vmatprep.subr.mxu0 0.0
    %1692 = vmatpush2.xpose.msra.mxu0 0.0
    %1693 = vmatprep.subr.mxu0 0.0
    %1694 = vmatpush2.xpose.msra.mxu0 0.0
    %1695 = vmatprep.subr.mxu0 0.0
    %1696 = vmatpush2.xpose.msra.mxu0 0.0
    %1697 = vmatprep.mubr.f32.mxu0 0.0
    %1698 = vmatmul.mubr.f32.gmra.mxu0 %v1628
    %v1699 = vpop.f32.mrf.mxu0
    %v1700 = vadd.f32 0.0, %v1699
    %v1701 = vpop.f32.mrf.mxu0
    %1702 = vdwg.mxu0
    %v1704 = vsel %vm1398, %v531, 0
    %v1707 = vsel %vm1398, %v1185, 0
    %1709 = vmatprep.subr.mxu0 0.0
    %1710 = vmatpush1.xpose.msra.mxu0 0.0
    %1711 = vmatprep.subr.mxu0 0.0
    %1712 = vmatpush1.xpose.msra.mxu0 0.0
    %1713 = vmatprep.subr.mxu0 0.0
    %1714 = vmatpush1.xpose.msra.mxu0 0.0
    %1715 = vmatprep.subr.mxu0 0.0
    %1716 = vmatpush1.xpose.msra.mxu0 0.0
    %1717 = vmatprep.subr.mxu0 0.0
    %1718 = vmatpush1.xpose.msra.mxu0 0.0
    %1719 = vmatprep.subr.mxu0 0.0
    %1720 = vmatpush1.xpose.msra.mxu0 0.0
    %1721 = vmatprep.subr.mxu0 0.0
    %1722 = vmatpush1.xpose.msra.mxu0 0.0
    %1723 = vmatprep.subr.mxu0 0.0
    %1724 = vmatpush1.xpose.msra.mxu0 0.0
    %1725 = vmatprep.subr.mxu0 0.0
    %1726 = vmatpush1.xpose.msra.mxu0 0.0
    %1727 = vmatprep.subr.mxu0 0.0
    %1728 = vmatpush1.xpose.msra.mxu0 0.0
    %1729 = vmatprep.subr.mxu0 0.0
    %1730 = vmatpush1.xpose.msra.mxu0 0.0
    %1731 = vmatprep.subr.mxu0 0.0
    %1732 = vmatpush1.xpose.msra.mxu0 0.0
    %1733 = vmatprep.subr.mxu0 0.0
    %1734 = vmatpush1.xpose.msra.mxu0 0.0
    %1735 = vmatprep.subr.mxu0 0.0
    %1736 = vmatpush1.xpose.msra.mxu0 0.0
    %1737 = vmatprep.subr.mxu0 0.0
    %1738 = vmatpush1.xpose.msra.mxu0 0.0
    %1739 = vmatprep.subr.mxu0 0.0
    %1740 = vmatpush1.xpose.msra.mxu0 %v1707
    %1741 = vmatprep.subr.mxu0 0.0
    %1742 = vmatpush2.xpose.msra.mxu0 0.0
    %1743 = vmatprep.subr.mxu0 0.0
    %1744 = vmatpush2.xpose.msra.mxu0 0.0
    %1745 = vmatprep.subr.mxu0 0.0
    %1746 = vmatpush2.xpose.msra.mxu0 0.0
    %1747 = vmatprep.subr.mxu0 0.0
    %1748 = vmatpush2.xpose.msra.mxu0 0.0
    %1749 = vmatprep.subr.mxu0 0.0
    %1750 = vmatpush2.xpose.msra.mxu0 0.0
    %1751 = vmatprep.subr.mxu0 0.0
    %1752 = vmatpush2.xpose.msra.mxu0 0.0
    %1753 = vmatprep.subr.mxu0 0.0
    %1754 = vmatpush2.xpose.msra.mxu0 0.0
    %1755 = vmatprep.subr.mxu0 0.0
    %1756 = vmatpush2.xpose.msra.mxu0 0.0
    %1757 = vmatprep.subr.mxu0 0.0
    %1758 = vmatpush2.xpose.msra.mxu0 0.0
    %1759 = vmatprep.subr.mxu0 0.0
    %1760 = vmatpush2.xpose.msra.mxu0 0.0
    %1761 = vmatprep.subr.mxu0 0.0
    %1762 = vmatpush2.xpose.msra.mxu0 0.0
    %1763 = vmatprep.subr.mxu0 0.0
    %1764 = vmatpush2.xpose.msra.mxu0 0.0
    %1765 = vmatprep.subr.mxu0 0.0
    %1766 = vmatpush2.xpose.msra.mxu0 0.0
    %1767 = vmatprep.subr.mxu0 0.0
    %1768 = vmatpush2.xpose.msra.mxu0 0.0
    %1769 = vmatprep.subr.mxu0 0.0
    %1770 = vmatpush2.xpose.msra.mxu0 0.0
    %1771 = vmatprep.subr.mxu0 0.0
    %1772 = vmatpush2.xpose.msra.mxu0 0.0
    %1773 = vmatprep.mubr.f32.mxu0 0.0
    %1774 = vmatmul.mubr.f32.gmra.mxu0 %v1704
    %v1775 = vpop.f32.mrf.mxu0
    %v1776 = vadd.f32 0.0, %v1775
    %v1777 = vpop.f32.mrf.mxu0
    %1778 = vdwg.mxu0
    %v1780 = vsel %vm1398, %v601, 0
    %v1783 = vsel %vm1398, %v1255, 0
    %1785 = vmatprep.subr.mxu0 0.0
    %1786 = vmatpush1.xpose.msra.mxu0 0.0
    %1787 = vmatprep.subr.mxu0 0.0
    %1788 = vmatpush1.xpose.msra.mxu0 0.0
    %1789 = vmatprep.subr.mxu0 0.0
    %1790 = vmatpush1.xpose.msra.mxu0 0.0
    %1791 = vmatprep.subr.mxu0 0.0
    %1792 = vmatpush1.xpose.msra.mxu0 0.0
    %1793 = vmatprep.subr.mxu0 0.0
    %1794 = vmatpush1.xpose.msra.mxu0 0.0
    %1795 = vmatprep.subr.mxu0 0.0
    %1796 = vmatpush1.xpose.msra.mxu0 0.0
    %1797 = vmatprep.subr.mxu0 0.0
    %1798 = vmatpush1.xpose.msra.mxu0 0.0
    %1799 = vmatprep.subr.mxu0 0.0
    %1800 = vmatpush1.xpose.msra.mxu0 0.0
    %1801 = vmatprep.subr.mxu0 0.0
    %1802 = vmatpush1.xpose.msra.mxu0 0.0
    %1803 = vmatprep.subr.mxu0 0.0
    %1804 = vmatpush1.xpose.msra.mxu0 0.0
    %1805 = vmatprep.subr.mxu0 0.0
    %1806 = vmatpush1.xpose.msra.mxu0 0.0
    %1807 = vmatprep.subr.mxu0 0.0
    %1808 = vmatpush1.xpose.msra.mxu0 0.0
    %1809 = vmatprep.subr.mxu0 0.0
    %1810 = vmatpush1.xpose.msra.mxu0 0.0
    %1811 = vmatprep.subr.mxu0 0.0
    %1812 = vmatpush1.xpose.msra.mxu0 0.0
    %1813 = vmatprep.subr.mxu0 0.0
    %1814 = vmatpush1.xpose.msra.mxu0 0.0
    %1815 = vmatprep.subr.mxu0 0.0
    %1816 = vmatpush1.xpose.msra.mxu0 %v1783
    %1817 = vmatprep.subr.mxu0 0.0
    %1818 = vmatpush2.xpose.msra.mxu0 0.0
    %1819 = vmatprep.subr.mxu0 0.0
    %1820 = vmatpush2.xpose.msra.mxu0 0.0
    %1821 = vmatprep.subr.mxu0 0.0
    %1822 = vmatpush2.xpose.msra.mxu0 0.0
    %1823 = vmatprep.subr.mxu0 0.0
    %1824 = vmatpush2.xpose.msra.mxu0 0.0
    %1825 = vmatprep.subr.mxu0 0.0
    %1826 = vmatpush2.xpose.msra.mxu0 0.0
    %1827 = vmatprep.subr.mxu0 0.0
    %1828 = vmatpush2.xpose.msra.mxu0 0.0
    %1829 = vmatprep.subr.mxu0 0.0
    %1830 = vmatpush2.xpose.msra.mxu0 0.0
    %1831 = vmatprep.subr.mxu0 0.0
    %1832 = vmatpush2.xpose.msra.mxu0 0.0
    %1833 = vmatprep.subr.mxu0 0.0
    %1834 = vmatpush2.xpose.msra.mxu0 0.0
    %1835 = vmatprep.subr.mxu0 0.0
    %1836 = vmatpush2.xpose.msra.mxu0 0.0
    %1837 = vmatprep.subr.mxu0 0.0
    %1838 = vmatpush2.xpose.msra.mxu0 0.0
    %1839 = vmatprep.subr.mxu0 0.0
    %1840 = vmatpush2.xpose.msra.mxu0 0.0
    %1841 = vmatprep.subr.mxu0 0.0
    %1842 = vmatpush2.xpose.msra.mxu0 0.0
    %1843 = vmatprep.subr.mxu0 0.0
    %1844 = vmatpush2.xpose.msra.mxu0 0.0
    %1845 = vmatprep.subr.mxu0 0.0
    %1846 = vmatpush2.xpose.msra.mxu0 0.0
    %1847 = vmatprep.subr.mxu0 0.0
    %1848 = vmatpush2.xpose.msra.mxu0 0.0
    %1849 = vmatprep.mubr.f32.mxu0 0.0
    %1850 = vmatmul.mubr.f32.gmra.mxu0 %v1780
    %v1851 = vpop.f32.mrf.mxu0
    %v1852 = vadd.f32 0.0, %v1851
    %v1853 = vpop.f32.mrf.mxu0
    %1854 = vdwg.mxu0
    %v1856 = vsel %vm1398, %v671, 0
    %v1859 = vsel %vm1398, %v1325, 0
    %1861 = vmatprep.subr.mxu0 0.0
    %1862 = vmatpush1.xpose.msra.mxu0 0.0
    %1863 = vmatprep.subr.mxu0 0.0
    %1864 = vmatpush1.xpose.msra.mxu0 0.0
    %1865 = vmatprep.subr.mxu0 0.0
    %1866 = vmatpush1.xpose.msra.mxu0 0.0
    %1867 = vmatprep.subr.mxu0 0.0
    %1868 = vmatpush1.xpose.msra.mxu0 0.0
    %1869 = vmatprep.subr.mxu0 0.0
    %1870 = vmatpush1.xpose.msra.mxu0 0.0
    %1871 = vmatprep.subr.mxu0 0.0
    %1872 = vmatpush1.xpose.msra.mxu0 0.0
    %1873 = vmatprep.subr.mxu0 0.0
    %1874 = vmatpush1.xpose.msra.mxu0 0.0
    %1875 = vmatprep.subr.mxu0 0.0
    %1876 = vmatpush1.xpose.msra.mxu0 0.0
    %1877 = vmatprep.subr.mxu0 0.0
    %1878 = vmatpush1.xpose.msra.mxu0 0.0
    %1879 = vmatprep.subr.mxu0 0.0
    %1880 = vmatpush1.xpose.msra.mxu0 0.0
    %1881 = vmatprep.subr.mxu0 0.0
    %1882 = vmatpush1.xpose.msra.mxu0 0.0
    %1883 = vmatprep.subr.mxu0 0.0
    %1884 = vmatpush1.xpose.msra.mxu0 0.0
    %1885 = vmatprep.subr.mxu0 0.0
    %1886 = vmatpush1.xpose.msra.mxu0 0.0
    %1887 = vmatprep.subr.mxu0 0.0
    %1888 = vmatpush1.xpose.msra.mxu0 0.0
    %1889 = vmatprep.subr.mxu0 0.0
    %1890 = vmatpush1.xpose.msra.mxu0 0.0
    %1891 = vmatprep.subr.mxu0 0.0
    %1892 = vmatpush1.xpose.msra.mxu0 %v1859
    %1893 = vmatprep.subr.mxu0 0.0
    %1894 = vmatpush2.xpose.msra.mxu0 0.0
    %1895 = vmatprep.subr.mxu0 0.0
    %1896 = vmatpush2.xpose.msra.mxu0 0.0
    %1897 = vmatprep.subr.mxu0 0.0
    %1898 = vmatpush2.xpose.msra.mxu0 0.0
    %1899 = vmatprep.subr.mxu0 0.0
    %1900 = vmatpush2.xpose.msra.mxu0 0.0
    %1901 = vmatprep.subr.mxu0 0.0
    %1902 = vmatpush2.xpose.msra.mxu0 0.0
    %1903 = vmatprep.subr.mxu0 0.0
    %1904 = vmatpush2.xpose.msra.mxu0 0.0
    %1905 = vmatprep.subr.mxu0 0.0
    %1906 = vmatpush2.xpose.msra.mxu0 0.0
    %1907 = vmatprep.subr.mxu0 0.0
    %1908 = vmatpush2.xpose.msra.mxu0 0.0
    %1909 = vmatprep.subr.mxu0 0.0
    %1910 = vmatpush2.xpose.msra.mxu0 0.0
    %1911 = vmatprep.subr.mxu0 0.0
    %1912 = vmatpush2.xpose.msra.mxu0 0.0
    %1913 = vmatprep.subr.mxu0 0.0
    %1914 = vmatpush2.xpose.msra.mxu0 0.0
    %1915 = vmatprep.subr.mxu0 0.0
    %1916 = vmatpush2.xpose.msra.mxu0 0.0
    %1917 = vmatprep.subr.mxu0 0.0
    %1918 = vmatpush2.xpose.msra.mxu0 0.0
    %1919 = vmatprep.subr.mxu0 0.0
    %1920 = vmatpush2.xpose.msra.mxu0 0.0
    %1921 = vmatprep.subr.mxu0 0.0
    %1922 = vmatpush2.xpose.msra.mxu0 0.0
    %1923 = vmatprep.subr.mxu0 0.0
    %1924 = vmatpush2.xpose.msra.mxu0 0.0
    %1925 = vmatprep.mubr.f32.mxu0 0.0
    %1926 = vmatmul.mubr.f32.gmra.mxu0 %v1856
    %v1927 = vpop.f32.mrf.mxu0
    %v1928 = vadd.f32 0.0, %v1927
    %v1929 = vpop.f32.mrf.mxu0
    %1930 = vdwg.mxu0
    %v1932 = vsel %vm1398, %v741, 0
    %v1935 = vsel %vm1398, %v1395, 0
    %1937 = vmatprep.subr.mxu0 0.0
    %1938 = vmatpush1.xpose.msra.mxu0 0.0
    %1939 = vmatprep.subr.mxu0 0.0
    %1940 = vmatpush1.xpose.msra.mxu0 0.0
    %1941 = vmatprep.subr.mxu0 0.0
    %1942 = vmatpush1.xpose.msra.mxu0 0.0
    %1943 = vmatprep.subr.mxu0 0.0
    %1944 = vmatpush1.xpose.msra.mxu0 0.0
    %1945 = vmatprep.subr.mxu0 0.0
    %1946 = vmatpush1.xpose.msra.mxu0 0.0
    %1947 = vmatprep.subr.mxu0 0.0
    %1948 = vmatpush1.xpose.msra.mxu0 0.0
    %1949 = vmatprep.subr.mxu0 0.0
    %1950 = vmatpush1.xpose.msra.mxu0 0.0
    %1951 = vmatprep.subr.mxu0 0.0
    %1952 = vmatpush1.xpose.msra.mxu0 0.0
    %1953 = vmatprep.subr.mxu0 0.0
    %1954 = vmatpush1.xpose.msra.mxu0 0.0
    %1955 = vmatprep.subr.mxu0 0.0
    %1956 = vmatpush1.xpose.msra.mxu0 0.0
    %1957 = vmatprep.subr.mxu0 0.0
    %1958 = vmatpush1.xpose.msra.mxu0 0.0
    %1959 = vmatprep.subr.mxu0 0.0
    %1960 = vmatpush1.xpose.msra.mxu0 0.0
    %1961 = vmatprep.subr.mxu0 0.0
    %1962 = vmatpush1.xpose.msra.mxu0 0.0
    %1963 = vmatprep.subr.mxu0 0.0
    %1964 = vmatpush1.xpose.msra.mxu0 0.0
    %1965 = vmatprep.subr.mxu0 0.0
    %1966 = vmatpush1.xpose.msra.mxu0 0.0
    %1967 = vmatprep.subr.mxu0 0.0
    %1968 = vmatpush1.xpose.msra.mxu0 %v1935
    %1969 = vmatprep.subr.mxu0 0.0
    %1970 = vmatpush2.xpose.msra.mxu0 0.0
    %1971 = vmatprep.subr.mxu0 0.0
    %1972 = vmatpush2.xpose.msra.mxu0 0.0
    %1973 = vmatprep.subr.mxu0 0.0
    %1974 = vmatpush2.xpose.msra.mxu0 0.0
    %1975 = vmatprep.subr.mxu0 0.0
    %1976 = vmatpush2.xpose.msra.mxu0 0.0
    %1977 = vmatprep.subr.mxu0 0.0
    %1978 = vmatpush2.xpose.msra.mxu0 0.0
    %1979 = vmatprep.subr.mxu0 0.0
    %1980 = vmatpush2.xpose.msra.mxu0 0.0
    %1981 = vmatprep.subr.mxu0 0.0
    %1982 = vmatpush2.xpose.msra.mxu0 0.0
    %1983 = vmatprep.subr.mxu0 0.0
    %1984 = vmatpush2.xpose.msra.mxu0 0.0
    %1985 = vmatprep.subr.mxu0 0.0
    %1986 = vmatpush2.xpose.msra.mxu0 0.0
    %1987 = vmatprep.subr.mxu0 0.0
    %1988 = vmatpush2.xpose.msra.mxu0 0.0
    %1989 = vmatprep.subr.mxu0 0.0
    %1990 = vmatpush2.xpose.msra.mxu0 0.0
    %1991 = vmatprep.subr.mxu0 0.0
    %1992 = vmatpush2.xpose.msra.mxu0 0.0
    %1993 = vmatprep.subr.mxu0 0.0
    %1994 = vmatpush2.xpose.msra.mxu0 0.0
    %1995 = vmatprep.subr.mxu0 0.0
    %1996 = vmatpush2.xpose.msra.mxu0 0.0
    %1997 = vmatprep.subr.mxu0 0.0
    %1998 = vmatpush2.xpose.msra.mxu0 0.0
    %1999 = vmatprep.subr.mxu0 0.0
    %2000 = vmatpush2.xpose.msra.mxu0 0.0
    %2001 = vmatprep.mubr.f32.mxu0 0.0
    %2002 = vmatmul.mubr.f32.gmra.mxu0 %v1932
    %v2003 = vpop.f32.mrf.mxu0
    %v2004 = vadd.f32 0.0, %v2003
    %v2005 = vpop.f32.mrf.mxu0
    %2006 = vdwg.mxu0
    %vm2007 = vcmask 64512
    %v2008 = vsel %vm2007, %v1472, -inf
    %2009 = vmax.xlane.f32.xlu0 %v2008
    %v2010 = vpop.xlane.xlu0 %2009
    %v2011 = vsel %vm2007, %v1548, -inf
    %2012 = vmax.xlane.f32.xlu0 %v2011
    %v2013 = vpop.xlane.xlu0 %2012
    %v2014 = vsel %vm2007, %v1624, -inf
    %2015 = vmax.xlane.f32.xlu0 %v2014
    %v2016 = vpop.xlane.xlu0 %2015
    %v2017 = vsel %vm2007, %v1700, -inf
    %2018 = vmax.xlane.f32.xlu0 %v2017
    %v2019 = vpop.xlane.xlu0 %2018
    %v2020 = vsel %vm2007, %v1776, -inf
    %2021 = vmax.xlane.f32.xlu0 %v2020
    %v2022 = vpop.xlane.xlu0 %2021
    %v2023 = vsel %vm2007, %v1852, -inf
    %2024 = vmax.xlane.f32.xlu0 %v2023
    %v2025 = vpop.xlane.xlu0 %2024
    %v2026 = vsel %vm2007, %v1928, -inf
    %2027 = vmax.xlane.f32.xlu0 %v2026
    %v2028 = vpop.xlane.xlu0 %2027
    %v2029 = vsel %vm2007, %v2004, -inf
    %2030 = vmax.xlane.f32.xlu0 %v2029
    %v2031 = vpop.xlane.xlu0 %2030
    %v2032 = vsub.f32 %v1472, %v2010
    %v2033 = vsub.f32 %v1548, %v2013
    %v2034 = vsub.f32 %v1624, %v2016
    %v2035 = vsub.f32 %v1700, %v2019
    %v2036 = vsub.f32 %v1776, %v2022
    %v2037 = vsub.f32 %v1852, %v2025
    %v2038 = vsub.f32 %v1928, %v2028
    %v2039 = vsub.f32 %v2004, %v2031
    %v2040 = vmul.f32 %v2032, 1.442695
    %v2041 = vpow.pop %v2040
    %v2042 = vmul.f32 %v2033, 1.442695
    %v2043 = vpow.pop %v2042
    %v2044 = vmul.f32 %v2034, 1.442695
    %v2045 = vpow.pop %v2044
    %v2046 = vmul.f32 %v2035, 1.442695
    %v2047 = vpow.pop %v2046
    %v2048 = vmul.f32 %v2036, 1.442695
    %v2049 = vpow.pop %v2048
    %v2050 = vmul.f32 %v2037, 1.442695
    %v2051 = vpow.pop %v2050
    %v2052 = vmul.f32 %v2038, 1.442695
    %v2053 = vpow.pop %v2052
    %v2054 = vmul.f32 %v2039, 1.442695
    %v2055 = vpow.pop %v2054
    %v2056 = vsel %vm2007, %v2041, 0.0
    %2057 = vadd.xlane.f32.xlu0 %v2056
    %v2058 = vpop.xlane.xlu0 %2057
    %v2059 = vsel %vm2007, %v2043, 0.0
    %2060 = vadd.xlane.f32.xlu0 %v2059
    %v2061 = vpop.xlane.xlu0 %2060
    %v2062 = vsel %vm2007, %v2045, 0.0
    %2063 = vadd.xlane.f32.xlu0 %v2062
    %v2064 = vpop.xlane.xlu0 %2063
    %v2065 = vsel %vm2007, %v2047, 0.0
    %2066 = vadd.xlane.f32.xlu0 %v2065
    %v2067 = vpop.xlane.xlu0 %2066
    %v2068 = vsel %vm2007, %v2049, 0.0
    %2069 = vadd.xlane.f32.xlu0 %v2068
    %v2070 = vpop.xlane.xlu0 %2069
    %v2071 = vsel %vm2007, %v2051, 0.0
    %2072 = vadd.xlane.f32.xlu0 %v2071
    %v2073 = vpop.xlane.xlu0 %2072
    %v2074 = vsel %vm2007, %v2053, 0.0
    %2075 = vadd.xlane.f32.xlu0 %v2074
    %v2076 = vpop.xlane.xlu0 %2075
    %v2077 = vsel %vm2007, %v2055, 0.0
    %2078 = vadd.xlane.f32.xlu0 %v2077
    %v2079 = vpop.xlane.xlu0 %2078
    %v2080 = vrcp.pop %v2058
    %v2081 = vrcp.pop %v2061
    %v2082 = vrcp.pop %v2064
    %v2083 = vrcp.pop %v2067
    %v2084 = vrcp.pop %v2070
    %v2085 = vrcp.pop %v2073
    %v2086 = vrcp.pop %v2076
    %v2087 = vrcp.pop %v2079
    %v2088 = vmul.f32 %v2041, %v2080
    %v2089 = vmul.f32 %v2043, %v2081
    %v2090 = vmul.f32 %v2045, %v2082
    %v2091 = vmul.f32 %v2047, %v2083
    %v2092 = vmul.f32 %v2049, %v2084
    %v2093 = vmul.f32 %v2051, %v2085
    %v2094 = vmul.f32 %v2053, %v2086
    %v2095 = vmul.f32 %v2055, %v2087
    %2096 = vrot.lane.b32.xlu0 %v902, 112
    %v2097 = vpop.permute.xlu0 %2096
    %v2100 = vsel %vm2007, %v2088, 0
    %2102 = vmatprep.subr.mxu0 0.0
    %2103 = vmatpush1.msra.mxu0 0.0
    %2104 = vmatprep.subr.mxu0 0.0
    %2105 = vmatpush1.msra.mxu0 0.0
    %2106 = vmatprep.subr.mxu0 0.0
    %2107 = vmatpush1.msra.mxu0 0.0
    %2108 = vmatprep.subr.mxu0 0.0
    %2109 = vmatpush1.msra.mxu0 0.0
    %2110 = vmatprep.subr.mxu0 0.0
    %2111 = vmatpush1.msra.mxu0 0.0
    %2112 = vmatprep.subr.mxu0 0.0
    %2113 = vmatpush1.msra.mxu0 0.0
    %2114 = vmatprep.subr.mxu0 0.0
    %2115 = vmatpush1.msra.mxu0 0.0
    %2116 = vmatprep.subr.mxu0 0.0
    %2117 = vmatpush1.msra.mxu0 0.0
    %2118 = vmatprep.subr.mxu0 0.0
    %2119 = vmatpush1.msra.mxu0 0.0
    %2120 = vmatprep.subr.mxu0 0.0
    %2121 = vmatpush1.msra.mxu0 0.0
    %2122 = vmatprep.subr.mxu0 0.0
    %2123 = vmatpush1.msra.mxu0 0.0
    %2124 = vmatprep.subr.mxu0 0.0
    %2125 = vmatpush1.msra.mxu0 0.0
    %2126 = vmatprep.subr.mxu0 0.0
    %2127 = vmatpush1.msra.mxu0 0.0
    %2128 = vmatprep.subr.mxu0 0.0
    %2129 = vmatpush1.msra.mxu0 0.0
    %2130 = vmatprep.subr.mxu0 0.0
    %2131 = vmatpush1.msra.mxu0 0.0
    %2132 = vmatprep.subr.mxu0 0.0
    %2133 = vmatpush1.msra.mxu0 %v2097
    %2134 = vmatprep.subr.mxu0 0.0
    %2135 = vmatpush2.msra.mxu0 0.0
    %2136 = vmatprep.subr.mxu0 0.0
    %2137 = vmatpush2.msra.mxu0 0.0
    %2138 = vmatprep.subr.mxu0 0.0
    %2139 = vmatpush2.msra.mxu0 0.0
    %2140 = vmatprep.subr.mxu0 0.0
    %2141 = vmatpush2.msra.mxu0 0.0
    %2142 = vmatprep.subr.mxu0 0.0
    %2143 = vmatpush2.msra.mxu0 0.0
    %2144 = vmatprep.subr.mxu0 0.0
    %2145 = vmatpush2.msra.mxu0 0.0
    %2146 = vmatprep.subr.mxu0 0.0
    %2147 = vmatpush2.msra.mxu0 0.0
    %2148 = vmatprep.subr.mxu0 0.0
    %2149 = vmatpush2.msra.mxu0 0.0
    %2150 = vmatprep.subr.mxu0 0.0
    %2151 = vmatpush2.msra.mxu0 0.0
    %2152 = vmatprep.subr.mxu0 0.0
    %2153 = vmatpush2.msra.mxu0 0.0
    %2154 = vmatprep.subr.mxu0 0.0
    %2155 = vmatpush2.msra.mxu0 0.0
    %2156 = vmatprep.subr.mxu0 0.0
    %2157 = vmatpush2.msra.mxu0 0.0
    %2158 = vmatprep.subr.mxu0 0.0
    %2159 = vmatpush2.msra.mxu0 0.0
    %2160 = vmatprep.subr.mxu0 0.0
    %2161 = vmatpush2.msra.mxu0 0.0
    %2162 = vmatprep.subr.mxu0 0.0
    %2163 = vmatpush2.msra.mxu0 0.0
    %2164 = vmatprep.subr.mxu0 0.0
    %2165 = vmatpush2.msra.mxu0 0.0
    %2166 = vmatprep.mubr.f32.mxu0 0.0
    %2167 = vmatmul.mubr.f32.gmra.mxu0 %v2100
    %v2168 = vpop.f32.mrf.mxu0
    %v2169 = vadd.f32 0.0, %v2168
    %v2170 = vpop.f32.mrf.mxu0
    %2171 = vdwg.mxu0
    %2172 = vrot.lane.b32.xlu0 %v972, 112
    %v2173 = vpop.permute.xlu0 %2172
    %v2176 = vsel %vm2007, %v2089, 0
    %2178 = vmatprep.subr.mxu0 0.0
    %2179 = vmatpush1.msra.mxu0 0.0
    %2180 = vmatprep.subr.mxu0 0.0
    %2181 = vmatpush1.msra.mxu0 0.0
    %2182 = vmatprep.subr.mxu0 0.0
    %2183 = vmatpush1.msra.mxu0 0.0
    %2184 = vmatprep.subr.mxu0 0.0
    %2185 = vmatpush1.msra.mxu0 0.0
    %2186 = vmatprep.subr.mxu0 0.0
    %2187 = vmatpush1.msra.mxu0 0.0
    %2188 = vmatprep.subr.mxu0 0.0
    %2189 = vmatpush1.msra.mxu0 0.0
    %2190 = vmatprep.subr.mxu0 0.0
    %2191 = vmatpush1.msra.mxu0 0.0
    %2192 = vmatprep.subr.mxu0 0.0
    %2193 = vmatpush1.msra.mxu0 0.0
    %2194 = vmatprep.subr.mxu0 0.0
    %2195 = vmatpush1.msra.mxu0 0.0
    %2196 = vmatprep.subr.mxu0 0.0
    %2197 = vmatpush1.msra.mxu0 0.0
    %2198 = vmatprep.subr.mxu0 0.0
    %2199 = vmatpush1.msra.mxu0 0.0
    %2200 = vmatprep.subr.mxu0 0.0
    %2201 = vmatpush1.msra.mxu0 0.0
    %2202 = vmatprep.subr.mxu0 0.0
    %2203 = vmatpush1.msra.mxu0 0.0
    %2204 = vmatprep.subr.mxu0 0.0
    %2205 = vmatpush1.msra.mxu0 0.0
    %2206 = vmatprep.subr.mxu0 0.0
    %2207 = vmatpush1.msra.mxu0 0.0
    %2208 = vmatprep.subr.mxu0 0.0
    %2209 = vmatpush1.msra.mxu0 %v2173
    %2210 = vmatprep.subr.mxu0 0.0
    %2211 = vmatpush2.msra.mxu0 0.0
    %2212 = vmatprep.subr.mxu0 0.0
    %2213 = vmatpush2.msra.mxu0 0.0
    %2214 = vmatprep.subr.mxu0 0.0
    %2215 = vmatpush2.msra.mxu0 0.0
    %2216 = vmatprep.subr.mxu0 0.0
    %2217 = vmatpush2.msra.mxu0 0.0
    %2218 = vmatprep.subr.mxu0 0.0
    %2219 = vmatpush2.msra.mxu0 0.0
    %2220 = vmatprep.subr.mxu0 0.0
    %2221 = vmatpush2.msra.mxu0 0.0
    %2222 = vmatprep.subr.mxu0 0.0
    %2223 = vmatpush2.msra.mxu0 0.0
    %2224 = vmatprep.subr.mxu0 0.0
    %2225 = vmatpush2.msra.mxu0 0.0
    %2226 = vmatprep.subr.mxu0 0.0
    %2227 = vmatpush2.msra.mxu0 0.0
    %2228 = vmatprep.subr.mxu0 0.0
    %2229 = vmatpush2.msra.mxu0 0.0
    %2230 = vmatprep.subr.mxu0 0.0
    %2231 = vmatpush2.msra.mxu0 0.0
    %2232 = vmatprep.subr.mxu0 0.0
    %2233 = vmatpush2.msra.mxu0 0.0
    %2234 = vmatprep.subr.mxu0 0.0
    %2235 = vmatpush2.msra.mxu0 0.0
    %2236 = vmatprep.subr.mxu0 0.0
    %2237 = vmatpush2.msra.mxu0 0.0
    %2238 = vmatprep.subr.mxu0 0.0
    %2239 = vmatpush2.msra.mxu0 0.0
    %2240 = vmatprep.subr.mxu0 0.0
    %2241 = vmatpush2.msra.mxu0 0.0
    %2242 = vmatprep.mubr.f32.mxu0 0.0
    %2243 = vmatmul.mubr.f32.gmra.mxu0 %v2176
    %v2244 = vpop.f32.mrf.mxu0
    %v2245 = vadd.f32 0.0, %v2244
    %v2246 = vpop.f32.mrf.mxu0
    %2247 = vdwg.mxu0
    %2248 = vrot.lane.b32.xlu0 %v1042, 112
    %v2249 = vpop.permute.xlu0 %2248
    %v2252 = vsel %vm2007, %v2090, 0
    %2254 = vmatprep.subr.mxu0 0.0
    %2255 = vmatpush1.msra.mxu0 0.0
    %2256 = vmatprep.subr.mxu0 0.0
    %2257 = vmatpush1.msra.mxu0 0.0
    %2258 = vmatprep.subr.mxu0 0.0
    %2259 = vmatpush1.msra.mxu0 0.0
    %2260 = vmatprep.subr.mxu0 0.0
    %2261 = vmatpush1.msra.mxu0 0.0
    %2262 = vmatprep.subr.mxu0 0.0
    %2263 = vmatpush1.msra.mxu0 0.0
    %2264 = vmatprep.subr.mxu0 0.0
    %2265 = vmatpush1.msra.mxu0 0.0
    %2266 = vmatprep.subr.mxu0 0.0
    %2267 = vmatpush1.msra.mxu0 0.0
    %2268 = vmatprep.subr.mxu0 0.0
    %2269 = vmatpush1.msra.mxu0 0.0
    %2270 = vmatprep.subr.mxu0 0.0
    %2271 = vmatpush1.msra.mxu0 0.0
    %2272 = vmatprep.subr.mxu0 0.0
    %2273 = vmatpush1.msra.mxu0 0.0
    %2274 = vmatprep.subr.mxu0 0.0
    %2275 = vmatpush1.msra.mxu0 0.0
    %2276 = vmatprep.subr.mxu0 0.0
    %2277 = vmatpush1.msra.mxu0 0.0
    %2278 = vmatprep.subr.mxu0 0.0
    %2279 = vmatpush1.msra.mxu0 0.0
    %2280 = vmatprep.subr.mxu0 0.0
    %2281 = vmatpush1.msra.mxu0 0.0
    %2282 = vmatprep.subr.mxu0 0.0
    %2283 = vmatpush1.msra.mxu0 0.0
    %2284 = vmatprep.subr.mxu0 0.0
    %2285 = vmatpush1.msra.mxu0 %v2249
    %2286 = vmatprep.subr.mxu0 0.0
    %2287 = vmatpush2.msra.mxu0 0.0
    %2288 = vmatprep.subr.mxu0 0.0
    %2289 = vmatpush2.msra.mxu0 0.0
    %2290 = vmatprep.subr.mxu0 0.0
    %2291 = vmatpush2.msra.mxu0 0.0
    %2292 = vmatprep.subr.mxu0 0.0
    %2293 = vmatpush2.msra.mxu0 0.0
    %2294 = vmatprep.subr.mxu0 0.0
    %2295 = vmatpush2.msra.mxu0 0.0
    %2296 = vmatprep.subr.mxu0 0.0
    %2297 = vmatpush2.msra.mxu0 0.0
    %2298 = vmatprep.subr.mxu0 0.0
    %2299 = vmatpush2.msra.mxu0 0.0
    %2300 = vmatprep.subr.mxu0 0.0
    %2301 = vmatpush2.msra.mxu0 0.0
    %2302 = vmatprep.subr.mxu0 0.0
    %2303 = vmatpush2.msra.mxu0 0.0
    %2304 = vmatprep.subr.mxu0 0.0
    %2305 = vmatpush2.msra.mxu0 0.0
    %2306 = vmatprep.subr.mxu0 0.0
    %2307 = vmatpush2.msra.mxu0 0.0
    %2308 = vmatprep.subr.mxu0 0.0
    %2309 = vmatpush2.msra.mxu0 0.0
    %2310 = vmatprep.subr.mxu0 0.0
    %2311 = vmatpush2.msra.mxu0 0.0
    %2312 = vmatprep.subr.mxu0 0.0
    %2313 = vmatpush2.msra.mxu0 0.0
    %2314 = vmatprep.subr.mxu0 0.0
    %2315 = vmatpush2.msra.mxu0 0.0
    %2316 = vmatprep.subr.mxu0 0.0
    %2317 = vmatpush2.msra.mxu0 0.0
    %2318 = vmatprep.mubr.f32.mxu0 0.0
    %2319 = vmatmul.mubr.f32.gmra.mxu0 %v2252
    %v2320 = vpop.f32.mrf.mxu0
    %v2321 = vadd.f32 0.0, %v2320
    %v2322 = vpop.f32.mrf.mxu0
    %2323 = vdwg.mxu0
    %2324 = vrot.lane.b32.xlu0 %v1112, 112
    %v2325 = vpop.permute.xlu0 %2324
    %v2328 = vsel %vm2007, %v2091, 0
    %2330 = vmatprep.subr.mxu0 0.0
    %2331 = vmatpush1.msra.mxu0 0.0
    %2332 = vmatprep.subr.mxu0 0.0
    %2333 = vmatpush1.msra.mxu0 0.0
    %2334 = vmatprep.subr.mxu0 0.0
    %2335 = vmatpush1.msra.mxu0 0.0
    %2336 = vmatprep.subr.mxu0 0.0
    %2337 = vmatpush1.msra.mxu0 0.0
    %2338 = vmatprep.subr.mxu0 0.0
    %2339 = vmatpush1.msra.mxu0 0.0
    %2340 = vmatprep.subr.mxu0 0.0
    %2341 = vmatpush1.msra.mxu0 0.0
    %2342 = vmatprep.subr.mxu0 0.0
    %2343 = vmatpush1.msra.mxu0 0.0
    %2344 = vmatprep.subr.mxu0 0.0
    %2345 = vmatpush1.msra.mxu0 0.0
    %2346 = vmatprep.subr.mxu0 0.0
    %2347 = vmatpush1.msra.mxu0 0.0
    %2348 = vmatprep.subr.mxu0 0.0
    %2349 = vmatpush1.msra.mxu0 0.0
    %2350 = vmatprep.subr.mxu0 0.0
    %2351 = vmatpush1.msra.mxu0 0.0
    %2352 = vmatprep.subr.mxu0 0.0
    %2353 = vmatpush1.msra.mxu0 0.0
    %2354 = vmatprep.subr.mxu0 0.0
    %2355 = vmatpush1.msra.mxu0 0.0
    %2356 = vmatprep.subr.mxu0 0.0
    %2357 = vmatpush1.msra.mxu0 0.0
    %2358 = vmatprep.subr.mxu0 0.0
    %2359 = vmatpush1.msra.mxu0 0.0
    %2360 = vmatprep.subr.mxu0 0.0
    %2361 = vmatpush1.msra.mxu0 %v2325
    %2362 = vmatprep.subr.mxu0 0.0
    %2363 = vmatpush2.msra.mxu0 0.0
    %2364 = vmatprep.subr.mxu0 0.0
    %2365 = vmatpush2.msra.mxu0 0.0
    %2366 = vmatprep.subr.mxu0 0.0
    %2367 = vmatpush2.msra.mxu0 0.0
    %2368 = vmatprep.subr.mxu0 0.0
    %2369 = vmatpush2.msra.mxu0 0.0
    %2370 = vmatprep.subr.mxu0 0.0
    %2371 = vmatpush2.msra.mxu0 0.0
    %2372 = vmatprep.subr.mxu0 0.0
    %2373 = vmatpush2.msra.mxu0 0.0
    %2374 = vmatprep.subr.mxu0 0.0
    %2375 = vmatpush2.msra.mxu0 0.0
    %2376 = vmatprep.subr.mxu0 0.0
    %2377 = vmatpush2.msra.mxu0 0.0
    %2378 = vmatprep.subr.mxu0 0.0
    %2379 = vmatpush2.msra.mxu0 0.0
    %2380 = vmatprep.subr.mxu0 0.0
    %2381 = vmatpush2.msra.mxu0 0.0
    %2382 = vmatprep.subr.mxu0 0.0
    %2383 = vmatpush2.msra.mxu0 0.0
    %2384 = vmatprep.subr.mxu0 0.0
    %2385 = vmatpush2.msra.mxu0 0.0
    %2386 = vmatprep.subr.mxu0 0.0
    %2387 = vmatpush2.msra.mxu0 0.0
    %2388 = vmatprep.subr.mxu0 0.0
    %2389 = vmatpush2.msra.mxu0 0.0
    %2390 = vmatprep.subr.mxu0 0.0
    %2391 = vmatpush2.msra.mxu0 0.0
    %2392 = vmatprep.subr.mxu0 0.0
    %2393 = vmatpush2.msra.mxu0 0.0
    %2394 = vmatprep.mubr.f32.mxu0 0.0
    %2395 = vmatmul.mubr.f32.gmra.mxu0 %v2328
    %v2396 = vpop.f32.mrf.mxu0
    %v2397 = vadd.f32 0.0, %v2396
    %v2398 = vpop.f32.mrf.mxu0
    %2399 = vdwg.mxu0
    %2400 = vrot.lane.b32.xlu0 %v1185, 112
    %v2401 = vpop.permute.xlu0 %2400
    %v2404 = vsel %vm2007, %v2092, 0
    %2406 = vmatprep.subr.mxu0 0.0
    %2407 = vmatpush1.msra.mxu0 0.0
    %2408 = vmatprep.subr.mxu0 0.0
    %2409 = vmatpush1.msra.mxu0 0.0
    %2410 = vmatprep.subr.mxu0 0.0
    %2411 = vmatpush1.msra.mxu0 0.0
    %2412 = vmatprep.subr.mxu0 0.0
    %2413 = vmatpush1.msra.mxu0 0.0
    %2414 = vmatprep.subr.mxu0 0.0
    %2415 = vmatpush1.msra.mxu0 0.0
    %2416 = vmatprep.subr.mxu0 0.0
    %2417 = vmatpush1.msra.mxu0 0.0
    %2418 = vmatprep.subr.mxu0 0.0
    %2419 = vmatpush1.msra.mxu0 0.0
    %2420 = vmatprep.subr.mxu0 0.0
    %2421 = vmatpush1.msra.mxu0 0.0
    %2422 = vmatprep.subr.mxu0 0.0
    %2423 = vmatpush1.msra.mxu0 0.0
    %2424 = vmatprep.subr.mxu0 0.0
    %2425 = vmatpush1.msra.mxu0 0.0
    %2426 = vmatprep.subr.mxu0 0.0
    %2427 = vmatpush1.msra.mxu0 0.0
    %2428 = vmatprep.subr.mxu0 0.0
    %2429 = vmatpush1.msra.mxu0 0.0
    %2430 = vmatprep.subr.mxu0 0.0
    %2431 = vmatpush1.msra.mxu0 0.0
    %2432 = vmatprep.subr.mxu0 0.0
    %2433 = vmatpush1.msra.mxu0 0.0
    %2434 = vmatprep.subr.mxu0 0.0
    %2435 = vmatpush1.msra.mxu0 0.0
    %2436 = vmatprep.subr.mxu0 0.0
    %2437 = vmatpush1.msra.mxu0 %v2401
    %2438 = vmatprep.subr.mxu0 0.0
    %2439 = vmatpush2.msra.mxu0 0.0
    %2440 = vmatprep.subr.mxu0 0.0
    %2441 = vmatpush2.msra.mxu0 0.0
    %2442 = vmatprep.subr.mxu0 0.0
    %2443 = vmatpush2.msra.mxu0 0.0
    %2444 = vmatprep.subr.mxu0 0.0
    %2445 = vmatpush2.msra.mxu0 0.0
    %2446 = vmatprep.subr.mxu0 0.0
    %2447 = vmatpush2.msra.mxu0 0.0
    %2448 = vmatprep.subr.mxu0 0.0
    %2449 = vmatpush2.msra.mxu0 0.0
    %2450 = vmatprep.subr.mxu0 0.0
    %2451 = vmatpush2.msra.mxu0 0.0
    %2452 = vmatprep.subr.mxu0 0.0
    %2453 = vmatpush2.msra.mxu0 0.0
    %2454 = vmatprep.subr.mxu0 0.0
    %2455 = vmatpush2.msra.mxu0 0.0
    %2456 = vmatprep.subr.mxu0 0.0
    %2457 = vmatpush2.msra.mxu0 0.0
    %2458 = vmatprep.subr.mxu0 0.0
    %2459 = vmatpush2.msra.mxu0 0.0
    %2460 = vmatprep.subr.mxu0 0.0
    %2461 = vmatpush2.msra.mxu0 0.0
    %2462 = vmatprep.subr.mxu0 0.0
    %2463 = vmatpush2.msra.mxu0 0.0
    %2464 = vmatprep.subr.mxu0 0.0
    %2465 = vmatpush2.msra.mxu0 0.0
    %2466 = vmatprep.subr.mxu0 0.0
    %2467 = vmatpush2.msra.mxu0 0.0
    %2468 = vmatprep.subr.mxu0 0.0
    %2469 = vmatpush2.msra.mxu0 0.0
    %2470 = vmatprep.mubr.f32.mxu0 0.0
    %2471 = vmatmul.mubr.f32.gmra.mxu0 %v2404
    %v2472 = vpop.f32.mrf.mxu0
    %v2473 = vadd.f32 0.0, %v2472
    %v2474 = vpop.f32.mrf.mxu0
    %2475 = vdwg.mxu0
    %2476 = vrot.lane.b32.xlu0 %v1255, 112
    %v2477 = vpop.permute.xlu0 %2476
    %v2480 = vsel %vm2007, %v2093, 0
    %2482 = vmatprep.subr.mxu0 0.0
    %2483 = vmatpush1.msra.mxu0 0.0
    %2484 = vmatprep.subr.mxu0 0.0
    %2485 = vmatpush1.msra.mxu0 0.0
    %2486 = vmatprep.subr.mxu0 0.0
    %2487 = vmatpush1.msra.mxu0 0.0
    %2488 = vmatprep.subr.mxu0 0.0
    %2489 = vmatpush1.msra.mxu0 0.0
    %2490 = vmatprep.subr.mxu0 0.0
    %2491 = vmatpush1.msra.mxu0 0.0
    %2492 = vmatprep.subr.mxu0 0.0
    %2493 = vmatpush1.msra.mxu0 0.0
    %2494 = vmatprep.subr.mxu0 0.0
    %2495 = vmatpush1.msra.mxu0 0.0
    %2496 = vmatprep.subr.mxu0 0.0
    %2497 = vmatpush1.msra.mxu0 0.0
    %2498 = vmatprep.subr.mxu0 0.0
    %2499 = vmatpush1.msra.mxu0 0.0
    %2500 = vmatprep.subr.mxu0 0.0
    %2501 = vmatpush1.msra.mxu0 0.0
    %2502 = vmatprep.subr.mxu0 0.0
    %2503 = vmatpush1.msra.mxu0 0.0
    %2504 = vmatprep.subr.mxu0 0.0
    %2505 = vmatpush1.msra.mxu0 0.0
    %2506 = vmatprep.subr.mxu0 0.0
    %2507 = vmatpush1.msra.mxu0 0.0
    %2508 = vmatprep.subr.mxu0 0.0
    %2509 = vmatpush1.msra.mxu0 0.0
    %2510 = vmatprep.subr.mxu0 0.0
    %2511 = vmatpush1.msra.mxu0 0.0
    %2512 = vmatprep.subr.mxu0 0.0
    %2513 = vmatpush1.msra.mxu0 %v2477
    %2514 = vmatprep.subr.mxu0 0.0
    %2515 = vmatpush2.msra.mxu0 0.0
    %2516 = vmatprep.subr.mxu0 0.0
    %2517 = vmatpush2.msra.mxu0 0.0
    %2518 = vmatprep.subr.mxu0 0.0
    %2519 = vmatpush2.msra.mxu0 0.0
    %2520 = vmatprep.subr.mxu0 0.0
    %2521 = vmatpush2.msra.mxu0 0.0
    %2522 = vmatprep.subr.mxu0 0.0
    %2523 = vmatpush2.msra.mxu0 0.0
    %2524 = vmatprep.subr.mxu0 0.0
    %2525 = vmatpush2.msra.mxu0 0.0
    %2526 = vmatprep.subr.mxu0 0.0
    %2527 = vmatpush2.msra.mxu0 0.0
    %2528 = vmatprep.subr.mxu0 0.0
    %2529 = vmatpush2.msra.mxu0 0.0
    %2530 = vmatprep.subr.mxu0 0.0
    %2531 = vmatpush2.msra.mxu0 0.0
    %2532 = vmatprep.subr.mxu0 0.0
    %2533 = vmatpush2.msra.mxu0 0.0
    %2534 = vmatprep.subr.mxu0 0.0
    %2535 = vmatpush2.msra.mxu0 0.0
    %2536 = vmatprep.subr.mxu0 0.0
    %2537 = vmatpush2.msra.mxu0 0.0
    %2538 = vmatprep.subr.mxu0 0.0
    %2539 = vmatpush2.msra.mxu0 0.0
    %2540 = vmatprep.subr.mxu0 0.0
    %2541 = vmatpush2.msra.mxu0 0.0
    %2542 = vmatprep.subr.mxu0 0.0
    %2543 = vmatpush2.msra.mxu0 0.0
    %2544 = vmatprep.subr.mxu0 0.0
    %2545 = vmatpush2.msra.mxu0 0.0
    %2546 = vmatprep.mubr.f32.mxu0 0.0
    %2547 = vmatmul.mubr.f32.gmra.mxu0 %v2480
    %v2548 = vpop.f32.mrf.mxu0
    %v2549 = vadd.f32 0.0, %v2548
    %v2550 = vpop.f32.mrf.mxu0
    %2551 = vdwg.mxu0
    %2552 = vrot.lane.b32.xlu0 %v1325, 112
    %v2553 = vpop.permute.xlu0 %2552
    %v2556 = vsel %vm2007, %v2094, 0
    %2558 = vmatprep.subr.mxu0 0.0
    %2559 = vmatpush1.msra.mxu0 0.0
    %2560 = vmatprep.subr.mxu0 0.0
    %2561 = vmatpush1.msra.mxu0 0.0
    %2562 = vmatprep.subr.mxu0 0.0
    %2563 = vmatpush1.msra.mxu0 0.0
    %2564 = vmatprep.subr.mxu0 0.0
    %2565 = vmatpush1.msra.mxu0 0.0
    %2566 = vmatprep.subr.mxu0 0.0
    %2567 = vmatpush1.msra.mxu0 0.0
    %2568 = vmatprep.subr.mxu0 0.0
    %2569 = vmatpush1.msra.mxu0 0.0
    %2570 = vmatprep.subr.mxu0 0.0
    %2571 = vmatpush1.msra.mxu0 0.0
    %2572 = vmatprep.subr.mxu0 0.0
    %2573 = vmatpush1.msra.mxu0 0.0
    %2574 = vmatprep.subr.mxu0 0.0
    %2575 = vmatpush1.msra.mxu0 0.0
    %2576 = vmatprep.subr.mxu0 0.0
    %2577 = vmatpush1.msra.mxu0 0.0
    %2578 = vmatprep.subr.mxu0 0.0
    %2579 = vmatpush1.msra.mxu0 0.0
    %2580 = vmatprep.subr.mxu0 0.0
    %2581 = vmatpush1.msra.mxu0 0.0
    %2582 = vmatprep.subr.mxu0 0.0
    %2583 = vmatpush1.msra.mxu0 0.0
    %2584 = vmatprep.subr.mxu0 0.0
    %2585 = vmatpush1.msra.mxu0 0.0
    %2586 = vmatprep.subr.mxu0 0.0
    %2587 = vmatpush1.msra.mxu0 0.0
    %2588 = vmatprep.subr.mxu0 0.0
    %2589 = vmatpush1.msra.mxu0 %v2553
    %2590 = vmatprep.subr.mxu0 0.0
    %2591 = vmatpush2.msra.mxu0 0.0
    %2592 = vmatprep.subr.mxu0 0.0
    %2593 = vmatpush2.msra.mxu0 0.0
    %2594 = vmatprep.subr.mxu0 0.0
    %2595 = vmatpush2.msra.mxu0 0.0
    %2596 = vmatprep.subr.mxu0 0.0
    %2597 = vmatpush2.msra.mxu0 0.0
    %2598 = vmatprep.subr.mxu0 0.0
    %2599 = vmatpush2.msra.mxu0 0.0
    %2600 = vmatprep.subr.mxu0 0.0
    %2601 = vmatpush2.msra.mxu0 0.0
    %2602 = vmatprep.subr.mxu0 0.0
    %2603 = vmatpush2.msra.mxu0 0.0
    %2604 = vmatprep.subr.mxu0 0.0
    %2605 = vmatpush2.msra.mxu0 0.0
    %2606 = vmatprep.subr.mxu0 0.0
    %2607 = vmatpush2.msra.mxu0 0.0
    %2608 = vmatprep.subr.mxu0 0.0
    %2609 = vmatpush2.msra.mxu0 0.0
    %2610 = vmatprep.subr.mxu0 0.0
    %2611 = vmatpush2.msra.mxu0 0.0
    %2612 = vmatprep.subr.mxu0 0.0
    %2613 = vmatpush2.msra.mxu0 0.0
    %2614 = vmatprep.subr.mxu0 0.0
    %2615 = vmatpush2.msra.mxu0 0.0
    %2616 = vmatprep.subr.mxu0 0.0
    %2617 = vmatpush2.msra.mxu0 0.0
    %2618 = vmatprep.subr.mxu0 0.0
    %2619 = vmatpush2.msra.mxu0 0.0
    %2620 = vmatprep.subr.mxu0 0.0
    %2621 = vmatpush2.msra.mxu0 0.0
    %2622 = vmatprep.mubr.f32.mxu0 0.0
    %2623 = vmatmul.mubr.f32.gmra.mxu0 %v2556
    %v2624 = vpop.f32.mrf.mxu0
    %v2625 = vadd.f32 0.0, %v2624
    %v2626 = vpop.f32.mrf.mxu0
    %2627 = vdwg.mxu0
    %2628 = vrot.lane.b32.xlu0 %v1395, 112
    %v2629 = vpop.permute.xlu0 %2628
    %v2632 = vsel %vm2007, %v2095, 0
    %2634 = vmatprep.subr.mxu0 0.0
    %2635 = vmatpush1.msra.mxu0 0.0
    %2636 = vmatprep.subr.mxu0 0.0
    %2637 = vmatpush1.msra.mxu0 0.0
    %2638 = vmatprep.subr.mxu0 0.0
    %2639 = vmatpush1.msra.mxu0 0.0
    %2640 = vmatprep.subr.mxu0 0.0
    %2641 = vmatpush1.msra.mxu0 0.0
    %2642 = vmatprep.subr.mxu0 0.0
    %2643 = vmatpush1.msra.mxu0 0.0
    %2644 = vmatprep.subr.mxu0 0.0
    %2645 = vmatpush1.msra.mxu0 0.0
    %2646 = vmatprep.subr.mxu0 0.0
    %2647 = vmatpush1.msra.mxu0 0.0
    %2648 = vmatprep.subr.mxu0 0.0
    %2649 = vmatpush1.msra.mxu0 0.0
    %2650 = vmatprep.subr.mxu0 0.0
    %2651 = vmatpush1.msra.mxu0 0.0
    %2652 = vmatprep.subr.mxu0 0.0
    %2653 = vmatpush1.msra.mxu0 0.0
    %2654 = vmatprep.subr.mxu0 0.0
    %2655 = vmatpush1.msra.mxu0 0.0
    %2656 = vmatprep.subr.mxu0 0.0
    %2657 = vmatpush1.msra.mxu0 0.0
    %2658 = vmatprep.subr.mxu0 0.0
    %2659 = vmatpush1.msra.mxu0 0.0
    %2660 = vmatprep.subr.mxu0 0.0
    %2661 = vmatpush1.msra.mxu0 0.0
    %2662 = vmatprep.subr.mxu0 0.0
    %2663 = vmatpush1.msra.mxu0 0.0
    %2664 = vmatprep.subr.mxu0 0.0
    %2665 = vmatpush1.msra.mxu0 %v2629
    %2666 = vmatprep.subr.mxu0 0.0
    %2667 = vmatpush2.msra.mxu0 0.0
    %2668 = vmatprep.subr.mxu0 0.0
    %2669 = vmatpush2.msra.mxu0 0.0
    %2670 = vmatprep.subr.mxu0 0.0
    %2671 = vmatpush2.msra.mxu0 0.0
    %2672 = vmatprep.subr.mxu0 0.0
    %2673 = vmatpush2.msra.mxu0 0.0
    %2674 = vmatprep.subr.mxu0 0.0
    %2675 = vmatpush2.msra.mxu0 0.0
    %2676 = vmatprep.subr.mxu0 0.0
    %2677 = vmatpush2.msra.mxu0 0.0
    %2678 = vmatprep.subr.mxu0 0.0
    %2679 = vmatpush2.msra.mxu0 0.0
    %2680 = vmatprep.subr.mxu0 0.0
    %2681 = vmatpush2.msra.mxu0 0.0
    %2682 = vmatprep.subr.mxu0 0.0
    %2683 = vmatpush2.msra.mxu0 0.0
    %2684 = vmatprep.subr.mxu0 0.0
    %2685 = vmatpush2.msra.mxu0 0.0
    %2686 = vmatprep.subr.mxu0 0.0
    %2687 = vmatpush2.msra.mxu0 0.0
    %2688 = vmatprep.subr.mxu0 0.0
    %2689 = vmatpush2.msra.mxu0 0.0
    %2690 = vmatprep.subr.mxu0 0.0
    %2691 = vmatpush2.msra.mxu0 0.0
    %2692 = vmatprep.subr.mxu0 0.0
    %2693 = vmatpush2.msra.mxu0 0.0
    %2694 = vmatprep.subr.mxu0 0.0
    %2695 = vmatpush2.msra.mxu0 0.0
    %2696 = vmatprep.subr.mxu0 0.0
    %2697 = vmatpush2.msra.mxu0 0.0
    %2698 = vmatprep.mubr.f32.mxu0 0.0
    %2699 = vmatmul.mubr.f32.gmra.mxu0 %v2632
    %v2700 = vpop.f32.mrf.mxu0
    %v2701 = vadd.f32 0.0, %v2700
    %v2702 = vpop.f32.mrf.mxu0
    %2703 = vdwg.mxu0
    %v2704 = vld [vmem:[%s6] sm:$0xff]
    %v2705 = vld [vmem:[%s6 + $0x8] sm:$0xff]
    %v2706 = vld [vmem:[%s6 + $0x10] sm:$0xff]
    %v2707 = vld [vmem:[%s6 + $0x18] sm:$0xff]
    %v2708 = vld [vmem:[%s6 + $0x20] sm:$0xff]
    %v2709 = vld [vmem:[%s6 + $0x28] sm:$0xff]
    %v2710 = vld [vmem:[%s6 + $0x30] sm:$0xff]
    %v2711 = vld [vmem:[%s6 + $0x38] sm:$0xff]
    %v2712 = vld [vmem:[%s6 + $0x40] sm:$0xff]
    %v2713 = vld [vmem:[%s6 + $0x48] sm:$0xff]
    %v2714 = vld [vmem:[%s6 + $0x50] sm:$0xff]
    %v2715 = vld [vmem:[%s6 + $0x58] sm:$0xff]
    %v2716 = vld [vmem:[%s6 + $0x60] sm:$0xff]
    %v2717 = vld [vmem:[%s6 + $0x68] sm:$0xff]
    %v2718 = vld [vmem:[%s6 + $0x70] sm:$0xff]
    %v2719 = vld [vmem:[%s6 + $0x78] sm:$0xff]
    %v2721 = vsel %vm1398, %v2169, 0
    %2723 = vmatprep.subr.mxu0 0.0
    %2724 = vmatpush1.msra.mxu0 0.0
    %2725 = vmatprep.subr.mxu0 0.0
    %2726 = vmatpush1.msra.mxu0 0.0
    %2727 = vmatprep.subr.mxu0 0.0
    %2728 = vmatpush1.msra.mxu0 0.0
    %2729 = vmatprep.subr.mxu0 0.0
    %2730 = vmatpush1.msra.mxu0 0.0
    %2731 = vmatprep.subr.mxu0 0.0
    %2732 = vmatpush1.msra.mxu0 0.0
    %2733 = vmatprep.subr.mxu0 0.0
    %2734 = vmatpush1.msra.mxu0 0.0
    %2735 = vmatprep.subr.mxu0 0.0
    %2736 = vmatpush1.msra.mxu0 0.0
    %2737 = vmatprep.subr.mxu0 0.0
    %2738 = vmatpush1.msra.mxu0 0.0
    %2739 = vmatprep.subr.mxu0 0.0
    %2740 = vmatpush1.msra.mxu0 0.0
    %2741 = vmatprep.subr.mxu0 0.0
    %2742 = vmatpush1.msra.mxu0 0.0
    %2743 = vmatprep.subr.mxu0 0.0
    %2744 = vmatpush1.msra.mxu0 0.0
    %2745 = vmatprep.subr.mxu0 0.0
    %2746 = vmatpush1.msra.mxu0 0.0
    %2747 = vmatprep.subr.mxu0 0.0
    %2748 = vmatpush1.msra.mxu0 0.0
    %2749 = vmatprep.subr.mxu0 0.0
    %2750 = vmatpush1.msra.mxu0 0.0
    %2751 = vmatprep.subr.mxu0 0.0
    %2752 = vmatpush1.msra.mxu0 %v2705
    %2753 = vmatprep.subr.mxu0 0.0
    %2754 = vmatpush1.msra.mxu0 %v2704
    %2755 = vmatprep.subr.mxu0 0.0
    %2756 = vmatpush2.msra.mxu0 0.0
    %2757 = vmatprep.subr.mxu0 0.0
    %2758 = vmatpush2.msra.mxu0 0.0
    %2759 = vmatprep.subr.mxu0 0.0
    %2760 = vmatpush2.msra.mxu0 0.0
    %2761 = vmatprep.subr.mxu0 0.0
    %2762 = vmatpush2.msra.mxu0 0.0
    %2763 = vmatprep.subr.mxu0 0.0
    %2764 = vmatpush2.msra.mxu0 0.0
    %2765 = vmatprep.subr.mxu0 0.0
    %2766 = vmatpush2.msra.mxu0 0.0
    %2767 = vmatprep.subr.mxu0 0.0
    %2768 = vmatpush2.msra.mxu0 0.0
    %2769 = vmatprep.subr.mxu0 0.0
    %2770 = vmatpush2.msra.mxu0 0.0
    %2771 = vmatprep.subr.mxu0 0.0
    %2772 = vmatpush2.msra.mxu0 0.0
    %2773 = vmatprep.subr.mxu0 0.0
    %2774 = vmatpush2.msra.mxu0 0.0
    %2775 = vmatprep.subr.mxu0 0.0
    %2776 = vmatpush2.msra.mxu0 0.0
    %2777 = vmatprep.subr.mxu0 0.0
    %2778 = vmatpush2.msra.mxu0 0.0
    %2779 = vmatprep.subr.mxu0 0.0
    %2780 = vmatpush2.msra.mxu0 0.0
    %2781 = vmatprep.subr.mxu0 0.0
    %2782 = vmatpush2.msra.mxu0 0.0
    %2783 = vmatprep.subr.mxu0 0.0
    %2784 = vmatpush2.msra.mxu0 0.0
    %2785 = vmatprep.subr.mxu0 0.0
    %2786 = vmatpush2.msra.mxu0 0.0
    %2787 = vmatprep.mubr.f32.mxu0 0.0
    %2788 = vmatmul.mubr.f32.gmra.mxu0 %v2721
    %v2789 = vpop.f32.mrf.mxu0
    %v2790 = vadd.f32 0.0, %v2789
    %v2791 = vpop.f32.mrf.mxu0
    %2792 = vdwg.mxu0
    %v2794 = vsel %vm1398, %v2245, 0
    %2796 = vmatprep.subr.mxu0 0.0
    %2797 = vmatpush1.msra.mxu0 0.0
    %2798 = vmatprep.subr.mxu0 0.0
    %2799 = vmatpush1.msra.mxu0 0.0
    %2800 = vmatprep.subr.mxu0 0.0
    %2801 = vmatpush1.msra.mxu0 0.0
    %2802 = vmatprep.subr.mxu0 0.0
    %2803 = vmatpush1.msra.mxu0 0.0
    %2804 = vmatprep.subr.mxu0 0.0
    %2805 = vmatpush1.msra.mxu0 0.0
    %2806 = vmatprep.subr.mxu0 0.0
    %2807 = vmatpush1.msra.mxu0 0.0
    %2808 = vmatprep.subr.mxu0 0.0
    %2809 = vmatpush1.msra.mxu0 0.0
    %2810 = vmatprep.subr.mxu0 0.0
    %2811 = vmatpush1.msra.mxu0 0.0
    %2812 = vmatprep.subr.mxu0 0.0
    %2813 = vmatpush1.msra.mxu0 0.0
    %2814 = vmatprep.subr.mxu0 0.0
    %2815 = vmatpush1.msra.mxu0 0.0
    %2816 = vmatprep.subr.mxu0 0.0
    %2817 = vmatpush1.msra.mxu0 0.0
    %2818 = vmatprep.subr.mxu0 0.0
    %2819 = vmatpush1.msra.mxu0 0.0
    %2820 = vmatprep.subr.mxu0 0.0
    %2821 = vmatpush1.msra.mxu0 0.0
    %2822 = vmatprep.subr.mxu0 0.0
    %2823 = vmatpush1.msra.mxu0 0.0
    %2824 = vmatprep.subr.mxu0 0.0
    %2825 = vmatpush1.msra.mxu0 %v2707
    %2826 = vmatprep.subr.mxu0 0.0
    %2827 = vmatpush1.msra.mxu0 %v2706
    %2828 = vmatprep.subr.mxu0 0.0
    %2829 = vmatpush2.msra.mxu0 0.0
    %2830 = vmatprep.subr.mxu0 0.0
    %2831 = vmatpush2.msra.mxu0 0.0
    %2832 = vmatprep.subr.mxu0 0.0
    %2833 = vmatpush2.msra.mxu0 0.0
    %2834 = vmatprep.subr.mxu0 0.0
    %2835 = vmatpush2.msra.mxu0 0.0
    %2836 = vmatprep.subr.mxu0 0.0
    %2837 = vmatpush2.msra.mxu0 0.0
    %2838 = vmatprep.subr.mxu0 0.0
    %2839 = vmatpush2.msra.mxu0 0.0
    %2840 = vmatprep.subr.mxu0 0.0
    %2841 = vmatpush2.msra.mxu0 0.0
    %2842 = vmatprep.subr.mxu0 0.0
    %2843 = vmatpush2.msra.mxu0 0.0
    %2844 = vmatprep.subr.mxu0 0.0
    %2845 = vmatpush2.msra.mxu0 0.0
    %2846 = vmatprep.subr.mxu0 0.0
    %2847 = vmatpush2.msra.mxu0 0.0
    %2848 = vmatprep.subr.mxu0 0.0
    %2849 = vmatpush2.msra.mxu0 0.0
    %2850 = vmatprep.subr.mxu0 0.0
    %2851 = vmatpush2.msra.mxu0 0.0
    %2852 = vmatprep.subr.mxu0 0.0
    %2853 = vmatpush2.msra.mxu0 0.0
    %2854 = vmatprep.subr.mxu0 0.0
    %2855 = vmatpush2.msra.mxu0 0.0
    %2856 = vmatprep.subr.mxu0 0.0
    %2857 = vmatpush2.msra.mxu0 0.0
    %2858 = vmatprep.subr.mxu0 0.0
    %2859 = vmatpush2.msra.mxu0 0.0
    %2860 = vmatprep.mubr.f32.mxu0 0.0
    %2861 = vmatmul.mubr.f32.gmra.mxu0 %v2794
    %v2862 = vpop.f32.mrf.mxu0
    %v2863 = vadd.f32 0.0, %v2862
    %v2864 = vpop.f32.mrf.mxu0
    %2865 = vdwg.mxu0
    %v2867 = vsel %vm1398, %v2321, 0
    %2869 = vmatprep.subr.mxu0 0.0
    %2870 = vmatpush1.msra.mxu0 0.0
    %2871 = vmatprep.subr.mxu0 0.0
    %2872 = vmatpush1.msra.mxu0 0.0
    %2873 = vmatprep.subr.mxu0 0.0
    %2874 = vmatpush1.msra.mxu0 0.0
    %2875 = vmatprep.subr.mxu0 0.0
    %2876 = vmatpush1.msra.mxu0 0.0
    %2877 = vmatprep.subr.mxu0 0.0
    %2878 = vmatpush1.msra.mxu0 0.0
    %2879 = vmatprep.subr.mxu0 0.0
    %2880 = vmatpush1.msra.mxu0 0.0
    %2881 = vmatprep.subr.mxu0 0.0
    %2882 = vmatpush1.msra.mxu0 0.0
    %2883 = vmatprep.subr.mxu0 0.0
    %2884 = vmatpush1.msra.mxu0 0.0
    %2885 = vmatprep.subr.mxu0 0.0
    %2886 = vmatpush1.msra.mxu0 0.0
    %2887 = vmatprep.subr.mxu0 0.0
    %2888 = vmatpush1.msra.mxu0 0.0
    %2889 = vmatprep.subr.mxu0 0.0
    %2890 = vmatpush1.msra.mxu0 0.0
    %2891 = vmatprep.subr.mxu0 0.0
    %2892 = vmatpush1.msra.mxu0 0.0
    %2893 = vmatprep.subr.mxu0 0.0
    %2894 = vmatpush1.msra.mxu0 0.0
    %2895 = vmatprep.subr.mxu0 0.0
    %2896 = vmatpush1.msra.mxu0 0.0
    %2897 = vmatprep.subr.mxu0 0.0
    %2898 = vmatpush1.msra.mxu0 %v2709
    %2899 = vmatprep.subr.mxu0 0.0
    %2900 = vmatpush1.msra.mxu0 %v2708
    %2901 = vmatprep.subr.mxu0 0.0
    %2902 = vmatpush2.msra.mxu0 0.0
    %2903 = vmatprep.subr.mxu0 0.0
    %2904 = vmatpush2.msra.mxu0 0.0
    %2905 = vmatprep.subr.mxu0 0.0
    %2906 = vmatpush2.msra.mxu0 0.0
    %2907 = vmatprep.subr.mxu0 0.0
    %2908 = vmatpush2.msra.mxu0 0.0
    %2909 = vmatprep.subr.mxu0 0.0
    %2910 = vmatpush2.msra.mxu0 0.0
    %2911 = vmatprep.subr.mxu0 0.0
    %2912 = vmatpush2.msra.mxu0 0.0
    %2913 = vmatprep.subr.mxu0 0.0
    %2914 = vmatpush2.msra.mxu0 0.0
    %2915 = vmatprep.subr.mxu0 0.0
    %2916 = vmatpush2.msra.mxu0 0.0
    %2917 = vmatprep.subr.mxu0 0.0
    %2918 = vmatpush2.msra.mxu0 0.0
    %2919 = vmatprep.subr.mxu0 0.0
    %2920 = vmatpush2.msra.mxu0 0.0
    %2921 = vmatprep.subr.mxu0 0.0
    %2922 = vmatpush2.msra.mxu0 0.0
    %2923 = vmatprep.subr.mxu0 0.0
    %2924 = vmatpush2.msra.mxu0 0.0
    %2925 = vmatprep.subr.mxu0 0.0
    %2926 = vmatpush2.msra.mxu0 0.0
    %2927 = vmatprep.subr.mxu0 0.0
    %2928 = vmatpush2.msra.mxu0 0.0
    %2929 = vmatprep.subr.mxu0 0.0
    %2930 = vmatpush2.msra.mxu0 0.0
    %2931 = vmatprep.subr.mxu0 0.0
    %2932 = vmatpush2.msra.mxu0 0.0
    %2933 = vmatprep.mubr.f32.mxu0 0.0
    %2934 = vmatmul.mubr.f32.gmra.mxu0 %v2867
    %v2935 = vpop.f32.mrf.mxu0
    %v2936 = vadd.f32 0.0, %v2935
    %v2937 = vpop.f32.mrf.mxu0
    %2938 = vdwg.mxu0
    %v2940 = vsel %vm1398, %v2397, 0
    %2942 = vmatprep.subr.mxu0 0.0
    %2943 = vmatpush1.msra.mxu0 0.0
    %2944 = vmatprep.subr.mxu0 0.0
    %2945 = vmatpush1.msra.mxu0 0.0
    %2946 = vmatprep.subr.mxu0 0.0
    %2947 = vmatpush1.msra.mxu0 0.0
    %2948 = vmatprep.subr.mxu0 0.0
    %2949 = vmatpush1.msra.mxu0 0.0
    %2950 = vmatprep.subr.mxu0 0.0
    %2951 = vmatpush1.msra.mxu0 0.0
    %2952 = vmatprep.subr.mxu0 0.0
    %2953 = vmatpush1.msra.mxu0 0.0
    %2954 = vmatprep.subr.mxu0 0.0
    %2955 = vmatpush1.msra.mxu0 0.0
    %2956 = vmatprep.subr.mxu0 0.0
    %2957 = vmatpush1.msra.mxu0 0.0
    %2958 = vmatprep.subr.mxu0 0.0
    %2959 = vmatpush1.msra.mxu0 0.0
    %2960 = vmatprep.subr.mxu0 0.0
    %2961 = vmatpush1.msra.mxu0 0.0
    %2962 = vmatprep.subr.mxu0 0.0
    %2963 = vmatpush1.msra.mxu0 0.0
    %2964 = vmatprep.subr.mxu0 0.0
    %2965 = vmatpush1.msra.mxu0 0.0
    %2966 = vmatprep.subr.mxu0 0.0
    %2967 = vmatpush1.msra.mxu0 0.0
    %2968 = vmatprep.subr.mxu0 0.0
    %2969 = vmatpush1.msra.mxu0 0.0
    %2970 = vmatprep.subr.mxu0 0.0
    %2971 = vmatpush1.msra.mxu0 %v2711
    %2972 = vmatprep.subr.mxu0 0.0
    %2973 = vmatpush1.msra.mxu0 %v2710
    %2974 = vmatprep.subr.mxu0 0.0
    %2975 = vmatpush2.msra.mxu0 0.0
    %2976 = vmatprep.subr.mxu0 0.0
    %2977 = vmatpush2.msra.mxu0 0.0
    %2978 = vmatprep.subr.mxu0 0.0
    %2979 = vmatpush2.msra.mxu0 0.0
    %2980 = vmatprep.subr.mxu0 0.0
    %2981 = vmatpush2.msra.mxu0 0.0
    %2982 = vmatprep.subr.mxu0 0.0
    %2983 = vmatpush2.msra.mxu0 0.0
    %2984 = vmatprep.subr.mxu0 0.0
    %2985 = vmatpush2.msra.mxu0 0.0
    %2986 = vmatprep.subr.mxu0 0.0
    %2987 = vmatpush2.msra.mxu0 0.0
    %2988 = vmatprep.subr.mxu0 0.0
    %2989 = vmatpush2.msra.mxu0 0.0
    %2990 = vmatprep.subr.mxu0 0.0
    %2991 = vmatpush2.msra.mxu0 0.0
    %2992 = vmatprep.subr.mxu0 0.0
    %2993 = vmatpush2.msra.mxu0 0.0
    %2994 = vmatprep.subr.mxu0 0.0
    %2995 = vmatpush2.msra.mxu0 0.0
    %2996 = vmatprep.subr.mxu0 0.0
    %2997 = vmatpush2.msra.mxu0 0.0
    %2998 = vmatprep.subr.mxu0 0.0
    %2999 = vmatpush2.msra.mxu0 0.0
    %3000 = vmatprep.subr.mxu0 0.0
    %3001 = vmatpush2.msra.mxu0 0.0
    %3002 = vmatprep.subr.mxu0 0.0
    %3003 = vmatpush2.msra.mxu0 0.0
    %3004 = vmatprep.subr.mxu0 0.0
    %3005 = vmatpush2.msra.mxu0 0.0
    %3006 = vmatprep.mubr.f32.mxu0 0.0
    %3007 = vmatmul.mubr.f32.gmra.mxu0 %v2940
    %v3008 = vpop.f32.mrf.mxu0
    %v3009 = vadd.f32 0.0, %v3008
    %v3010 = vpop.f32.mrf.mxu0
    %3011 = vdwg.mxu0
    %v3013 = vsel %vm1398, %v2473, 0
    %3015 = vmatprep.subr.mxu0 0.0
    %3016 = vmatpush1.msra.mxu0 0.0
    %3017 = vmatprep.subr.mxu0 0.0
    %3018 = vmatpush1.msra.mxu0 0.0
    %3019 = vmatprep.subr.mxu0 0.0
    %3020 = vmatpush1.msra.mxu0 0.0
    %3021 = vmatprep.subr.mxu0 0.0
    %3022 = vmatpush1.msra.mxu0 0.0
    %3023 = vmatprep.subr.mxu0 0.0
    %3024 = vmatpush1.msra.mxu0 0.0
    %3025 = vmatprep.subr.mxu0 0.0
    %3026 = vmatpush1.msra.mxu0 0.0
    %3027 = vmatprep.subr.mxu0 0.0
    %3028 = vmatpush1.msra.mxu0 0.0
    %3029 = vmatprep.subr.mxu0 0.0
    %3030 = vmatpush1.msra.mxu0 0.0
    %3031 = vmatprep.subr.mxu0 0.0
    %3032 = vmatpush1.msra.mxu0 0.0
    %3033 = vmatprep.subr.mxu0 0.0
    %3034 = vmatpush1.msra.mxu0 0.0
    %3035 = vmatprep.subr.mxu0 0.0
    %3036 = vmatpush1.msra.mxu0 0.0
    %3037 = vmatprep.subr.mxu0 0.0
    %3038 = vmatpush1.msra.mxu0 0.0
    %3039 = vmatprep.subr.mxu0 0.0
    %3040 = vmatpush1.msra.mxu0 0.0
    %3041 = vmatprep.subr.mxu0 0.0
    %3042 = vmatpush1.msra.mxu0 0.0
    %3043 = vmatprep.subr.mxu0 0.0
    %3044 = vmatpush1.msra.mxu0 %v2713
    %3045 = vmatprep.subr.mxu0 0.0
    %3046 = vmatpush1.msra.mxu0 %v2712
    %3047 = vmatprep.subr.mxu0 0.0
    %3048 = vmatpush2.msra.mxu0 0.0
    %3049 = vmatprep.subr.mxu0 0.0
    %3050 = vmatpush2.msra.mxu0 0.0
    %3051 = vmatprep.subr.mxu0 0.0
    %3052 = vmatpush2.msra.mxu0 0.0
    %3053 = vmatprep.subr.mxu0 0.0
    %3054 = vmatpush2.msra.mxu0 0.0
    %3055 = vmatprep.subr.mxu0 0.0
    %3056 = vmatpush2.msra.mxu0 0.0
    %3057 = vmatprep.subr.mxu0 0.0
    %3058 = vmatpush2.msra.mxu0 0.0
    %3059 = vmatprep.subr.mxu0 0.0
    %3060 = vmatpush2.msra.mxu0 0.0
    %3061 = vmatprep.subr.mxu0 0.0
    %3062 = vmatpush2.msra.mxu0 0.0
    %3063 = vmatprep.subr.mxu0 0.0
    %3064 = vmatpush2.msra.mxu0 0.0
    %3065 = vmatprep.subr.mxu0 0.0
    %3066 = vmatpush2.msra.mxu0 0.0
    %3067 = vmatprep.subr.mxu0 0.0
    %3068 = vmatpush2.msra.mxu0 0.0
    %3069 = vmatprep.subr.mxu0 0.0
    %3070 = vmatpush2.msra.mxu0 0.0
    %3071 = vmatprep.subr.mxu0 0.0
    %3072 = vmatpush2.msra.mxu0 0.0
    %3073 = vmatprep.subr.mxu0 0.0
    %3074 = vmatpush2.msra.mxu0 0.0
    %3075 = vmatprep.subr.mxu0 0.0
    %3076 = vmatpush2.msra.mxu0 0.0
    %3077 = vmatprep.subr.mxu0 0.0
    %3078 = vmatpush2.msra.mxu0 0.0
    %3079 = vmatprep.mubr.f32.mxu0 0.0
    %3080 = vmatmul.mubr.f32.gmra.mxu0 %v3013
    %v3081 = vpop.f32.mrf.mxu0
    %v3082 = vadd.f32 0.0, %v3081
    %v3083 = vpop.f32.mrf.mxu0
    %3084 = vdwg.mxu0
    %v3086 = vsel %vm1398, %v2549, 0
    %3088 = vmatprep.subr.mxu0 0.0
    %3089 = vmatpush1.msra.mxu0 0.0
    %3090 = vmatprep.subr.mxu0 0.0
    %3091 = vmatpush1.msra.mxu0 0.0
    %3092 = vmatprep.subr.mxu0 0.0
    %3093 = vmatpush1.msra.mxu0 0.0
    %3094 = vmatprep.subr.mxu0 0.0
    %3095 = vmatpush1.msra.mxu0 0.0
    %3096 = vmatprep.subr.mxu0 0.0
    %3097 = vmatpush1.msra.mxu0 0.0
    %3098 = vmatprep.subr.mxu0 0.0
    %3099 = vmatpush1.msra.mxu0 0.0
    %3100 = vmatprep.subr.mxu0 0.0
    %3101 = vmatpush1.msra.mxu0 0.0
    %3102 = vmatprep.subr.mxu0 0.0
    %3103 = vmatpush1.msra.mxu0 0.0
    %3104 = vmatprep.subr.mxu0 0.0
    %3105 = vmatpush1.msra.mxu0 0.0
    %3106 = vmatprep.subr.mxu0 0.0
    %3107 = vmatpush1.msra.mxu0 0.0
    %3108 = vmatprep.subr.mxu0 0.0
    %3109 = vmatpush1.msra.mxu0 0.0
    %3110 = vmatprep.subr.mxu0 0.0
    %3111 = vmatpush1.msra.mxu0 0.0
    %3112 = vmatprep.subr.mxu0 0.0
    %3113 = vmatpush1.msra.mxu0 0.0
    %3114 = vmatprep.subr.mxu0 0.0
    %3115 = vmatpush1.msra.mxu0 0.0
    %3116 = vmatprep.subr.mxu0 0.0
    %3117 = vmatpush1.msra.mxu0 %v2715
    %3118 = vmatprep.subr.mxu0 0.0
    %3119 = vmatpush1.msra.mxu0 %v2714
    %3120 = vmatprep.subr.mxu0 0.0
    %3121 = vmatpush2.msra.mxu0 0.0
    %3122 = vmatprep.subr.mxu0 0.0
    %3123 = vmatpush2.msra.mxu0 0.0
    %3124 = vmatprep.subr.mxu0 0.0
    %3125 = vmatpush2.msra.mxu0 0.0
    %3126 = vmatprep.subr.mxu0 0.0
    %3127 = vmatpush2.msra.mxu0 0.0
    %3128 = vmatprep.subr.mxu0 0.0
    %3129 = vmatpush2.msra.mxu0 0.0
    %3130 = vmatprep.subr.mxu0 0.0
    %3131 = vmatpush2.msra.mxu0 0.0
    %3132 = vmatprep.subr.mxu0 0.0
    %3133 = vmatpush2.msra.mxu0 0.0
    %3134 = vmatprep.subr.mxu0 0.0
    %3135 = vmatpush2.msra.mxu0 0.0
    %3136 = vmatprep.subr.mxu0 0.0
    %3137 = vmatpush2.msra.mxu0 0.0
    %3138 = vmatprep.subr.mxu0 0.0
    %3139 = vmatpush2.msra.mxu0 0.0
    %3140 = vmatprep.subr.mxu0 0.0
    %3141 = vmatpush2.msra.mxu0 0.0
    %3142 = vmatprep.subr.mxu0 0.0
    %3143 = vmatpush2.msra.mxu0 0.0
    %3144 = vmatprep.subr.mxu0 0.0
    %3145 = vmatpush2.msra.mxu0 0.0
    %3146 = vmatprep.subr.mxu0 0.0
    %3147 = vmatpush2.msra.mxu0 0.0
    %3148 = vmatprep.subr.mxu0 0.0
    %3149 = vmatpush2.msra.mxu0 0.0
    %3150 = vmatprep.subr.mxu0 0.0
    %3151 = vmatpush2.msra.mxu0 0.0
    %3152 = vmatprep.mubr.f32.mxu0 0.0
    %3153 = vmatmul.mubr.f32.gmra.mxu0 %v3086
    %v3154 = vpop.f32.mrf.mxu0
    %v3155 = vadd.f32 0.0, %v3154
    %v3156 = vpop.f32.mrf.mxu0
    %3157 = vdwg.mxu0
    %v3159 = vsel %vm1398, %v2625, 0
    %3161 = vmatprep.subr.mxu0 0.0
    %3162 = vmatpush1.msra.mxu0 0.0
    %3163 = vmatprep.subr.mxu0 0.0
    %3164 = vmatpush1.msra.mxu0 0.0
    %3165 = vmatprep.subr.mxu0 0.0
    %3166 = vmatpush1.msra.mxu0 0.0
    %3167 = vmatprep.subr.mxu0 0.0
    %3168 = vmatpush1.msra.mxu0 0.0
    %3169 = vmatprep.subr.mxu0 0.0
    %3170 = vmatpush1.msra.mxu0 0.0
    %3171 = vmatprep.subr.mxu0 0.0
    %3172 = vmatpush1.msra.mxu0 0.0
    %3173 = vmatprep.subr.mxu0 0.0
    %3174 = vmatpush1.msra.mxu0 0.0
    %3175 = vmatprep.subr.mxu0 0.0
    %3176 = vmatpush1.msra.mxu0 0.0
    %3177 = vmatprep.subr.mxu0 0.0
    %3178 = vmatpush1.msra.mxu0 0.0
    %3179 = vmatprep.subr.mxu0 0.0
    %3180 = vmatpush1.msra.mxu0 0.0
    %3181 = vmatprep.subr.mxu0 0.0
    %3182 = vmatpush1.msra.mxu0 0.0
    %3183 = vmatprep.subr.mxu0 0.0
    %3184 = vmatpush1.msra.mxu0 0.0
    %3185 = vmatprep.subr.mxu0 0.0
    %3186 = vmatpush1.msra.mxu0 0.0
    %3187 = vmatprep.subr.mxu0 0.0
    %3188 = vmatpush1.msra.mxu0 0.0
    %3189 = vmatprep.subr.mxu0 0.0
    %3190 = vmatpush1.msra.mxu0 %v2717
    %3191 = vmatprep.subr.mxu0 0.0
    %3192 = vmatpush1.msra.mxu0 %v2716
    %3193 = vmatprep.subr.mxu0 0.0
    %3194 = vmatpush2.msra.mxu0 0.0
    %3195 = vmatprep.subr.mxu0 0.0
    %3196 = vmatpush2.msra.mxu0 0.0
    %3197 = vmatprep.subr.mxu0 0.0
    %3198 = vmatpush2.msra.mxu0 0.0
    %3199 = vmatprep.subr.mxu0 0.0
    %3200 = vmatpush2.msra.mxu0 0.0
    %3201 = vmatprep.subr.mxu0 0.0
    %3202 = vmatpush2.msra.mxu0 0.0
    %3203 = vmatprep.subr.mxu0 0.0
    %3204 = vmatpush2.msra.mxu0 0.0
    %3205 = vmatprep.subr.mxu0 0.0
    %3206 = vmatpush2.msra.mxu0 0.0
    %3207 = vmatprep.subr.mxu0 0.0
    %3208 = vmatpush2.msra.mxu0 0.0
    %3209 = vmatprep.subr.mxu0 0.0
    %3210 = vmatpush2.msra.mxu0 0.0
    %3211 = vmatprep.subr.mxu0 0.0
    %3212 = vmatpush2.msra.mxu0 0.0
    %3213 = vmatprep.subr.mxu0 0.0
    %3214 = vmatpush2.msra.mxu0 0.0
    %3215 = vmatprep.subr.mxu0 0.0
    %3216 = vmatpush2.msra.mxu0 0.0
    %3217 = vmatprep.subr.mxu0 0.0
    %3218 = vmatpush2.msra.mxu0 0.0
    %3219 = vmatprep.subr.mxu0 0.0
    %3220 = vmatpush2.msra.mxu0 0.0
    %3221 = vmatprep.subr.mxu0 0.0
    %3222 = vmatpush2.msra.mxu0 0.0
    %3223 = vmatprep.subr.mxu0 0.0
    %3224 = vmatpush2.msra.mxu0 0.0
    %3225 = vmatprep.mubr.f32.mxu0 0.0
    %3226 = vmatmul.mubr.f32.gmra.mxu0 %v3159
    %v3227 = vpop.f32.mrf.mxu0
    %v3228 = vadd.f32 0.0, %v3227
    %v3229 = vpop.f32.mrf.mxu0
    %3230 = vdwg.mxu0
    %v3232 = vsel %vm1398, %v2701, 0
    %3234 = vmatprep.subr.mxu0 0.0
    %3235 = vmatpush1.msra.mxu0 0.0
    %3236 = vmatprep.subr.mxu0 0.0
    %3237 = vmatpush1.msra.mxu0 0.0
    %3238 = vmatprep.subr.mxu0 0.0
    %3239 = vmatpush1.msra.mxu0 0.0
    %3240 = vmatprep.subr.mxu0 0.0
    %3241 = vmatpush1.msra.mxu0 0.0
    %3242 = vmatprep.subr.mxu0 0.0
    %3243 = vmatpush1.msra.mxu0 0.0
    %3244 = vmatprep.subr.mxu0 0.0
    %3245 = vmatpush1.msra.mxu0 0.0
    %3246 = vmatprep.subr.mxu0 0.0
    %3247 = vmatpush1.msra.mxu0 0.0
    %3248 = vmatprep.subr.mxu0 0.0
    %3249 = vmatpush1.msra.mxu0 0.0
    %3250 = vmatprep.subr.mxu0 0.0
    %3251 = vmatpush1.msra.mxu0 0.0
    %3252 = vmatprep.subr.mxu0 0.0
    %3253 = vmatpush1.msra.mxu0 0.0
    %3254 = vmatprep.subr.mxu0 0.0
    %3255 = vmatpush1.msra.mxu0 0.0
    %3256 = vmatprep.subr.mxu0 0.0
    %3257 = vmatpush1.msra.mxu0 0.0
    %3258 = vmatprep.subr.mxu0 0.0
    %3259 = vmatpush1.msra.mxu0 0.0
    %3260 = vmatprep.subr.mxu0 0.0
    %3261 = vmatpush1.msra.mxu0 0.0
    %3262 = vmatprep.subr.mxu0 0.0
    %3263 = vmatpush1.msra.mxu0 %v2719
    %3264 = vmatprep.subr.mxu0 0.0
    %3265 = vmatpush1.msra.mxu0 %v2718
    %3266 = vmatprep.subr.mxu0 0.0
    %3267 = vmatpush2.msra.mxu0 0.0
    %3268 = vmatprep.subr.mxu0 0.0
    %3269 = vmatpush2.msra.mxu0 0.0
    %3270 = vmatprep.subr.mxu0 0.0
    %3271 = vmatpush2.msra.mxu0 0.0
    %3272 = vmatprep.subr.mxu0 0.0
    %3273 = vmatpush2.msra.mxu0 0.0
    %3274 = vmatprep.subr.mxu0 0.0
    %3275 = vmatpush2.msra.mxu0 0.0
    %3276 = vmatprep.subr.mxu0 0.0
    %3277 = vmatpush2.msra.mxu0 0.0
    %3278 = vmatprep.subr.mxu0 0.0
    %3279 = vmatpush2.msra.mxu0 0.0
    %3280 = vmatprep.subr.mxu0 0.0
    %3281 = vmatpush2.msra.mxu0 0.0
    %3282 = vmatprep.subr.mxu0 0.0
    %3283 = vmatpush2.msra.mxu0 0.0
    %3284 = vmatprep.subr.mxu0 0.0
    %3285 = vmatpush2.msra.mxu0 0.0
    %3286 = vmatprep.subr.mxu0 0.0
    %3287 = vmatpush2.msra.mxu0 0.0
    %3288 = vmatprep.subr.mxu0 0.0
    %3289 = vmatpush2.msra.mxu0 0.0
    %3290 = vmatprep.subr.mxu0 0.0
    %3291 = vmatpush2.msra.mxu0 0.0
    %3292 = vmatprep.subr.mxu0 0.0
    %3293 = vmatpush2.msra.mxu0 0.0
    %3294 = vmatprep.subr.mxu0 0.0
    %3295 = vmatpush2.msra.mxu0 0.0
    %3296 = vmatprep.subr.mxu0 0.0
    %3297 = vmatpush2.msra.mxu0 0.0
    %3298 = vmatprep.mubr.f32.mxu0 0.0
    %3299 = vmatmul.mubr.f32.gmra.mxu0 %v3232
    %v3300 = vpop.f32.mrf.mxu0
    %v3301 = vadd.f32 0.0, %v3300
    %v3302 = vpop.f32.mrf.mxu0
    %3303 = vdwg.mxu0
    %v3304 = vadd.f32 %v2790, %v2863
    %v3305 = vadd.f32 %v3304, %v2936
    %v3306 = vadd.f32 %v3305, %v3009
    %v3307 = vadd.f32 %v3082, %v3155
    %v3308 = vadd.f32 %v3307, %v3228
    %v3309 = vadd.f32 %v3308, %v3301
    %v3310 = vld [vmem:[%s7] sm:$0x1]
    %v3312 = vlaneseq
    %v3313 = vshrl.u32 %v3312, 7
    %v3314 = vsub.s32 0, %v3313
    %v3315 = vrot.slane %v3310, %v3314
    %v3317 = vadd.f32 %v3306, %v3315
    %v3318 = vadd.f32 %v3309, %v3315
    %3319 = vst [vmem:[#allocation10] sm:$0xff] %v3317
    %3320 = vst [vmem:[#allocation10 + $0x8] sm:$0xff] %v3318
    // Predicated region
    $region50: #{tpu_custom_call.1} parent=1 // pred_check
      _
    $region51: #{tpu_custom_call.1} parent=1 // pred_check_branch
      %3322 = sbr.rel (0) target = $region53
    $region52: #{tpu_custom_call.1} parent=1 // pred_region
      %s3324 = ssub.s32 256, 256
      %3325 = vsyncadd [#allocation4], %s3324
      %s3326 = sshll.u32 [#allocation10], 4
      %s3327 = int_to_ptr.vmem [resolvable:$true] %s3326
      %3332 = dma.vmem_to_hbm [thread:$0]  %s3327, 256, %s8, [#allocation4], 128, 128, 8
    $region53: #{tpu_custom_call.1} parent=1 // pred_fallthru
      _
    // Predicated region
    $region54: #{tpu_custom_call.1} parent=1 // pred_check
      _
    $region55: #{tpu_custom_call.1} parent=1 // pred_check_branch
      %3334 = sbr.rel (0) target = $region57
    $region56: #{tpu_custom_call.1} parent=1 // pred_region
      %3335 = dma.done [#allocation4], 256
    $region57: #{tpu_custom_call.1} parent=1 // pred_fallthru
      _
    %3336 = vsyncpa [#allocation3], 1
    %3337 = vsyncpa [#allocation6], 1
    %3338 = vsyncpa [#allocation9], 1
    %3339 = vsyncpa [#allocation4], 1

</llo_original>
